<compile_context>
chip_gen: v7x
topology: tpu7x:2x2x1
jax: 0.10.0
libtpu: 0.0.40
codegen_flags: <defaults>
</compile_context>

<pallas_src>
import jax
import jax.numpy as jnp
from jax.experimental import pallas as pl
from jax.experimental.pallas import tpu as pltpu

# Patch / weight / conv-activation dtype.  bf16 halves DMA bytes on every TPU
# generation; accumulation + epilogue remain f32.
COMPUTE_DTYPE = jnp.bfloat16

LANES = 128
K1 = 16 * 5 * 5          # fc1 true input width
K1_PAD = 512             # lane-aligned fc1 input width


def _round_up(x, m):
    return (x + m - 1) // m * m


def _pick_tile(m_rows, tile):
    """Sublane-aligned tile that yields >=2 grid steps whenever m_rows allows,
    so the 'parallel' grid axis shards across both TensorCores on v7x."""
    if m_rows >= 2 * tile:
        tm = tile
    else:
        tm = max(8, _round_up(pl.cdiv(m_rows, 2), 8))
    return tm, _round_up(m_rows, tm)


# ----------------------------- Pallas kernels ------------------------------

def _conv_relu_pool_kernel(p_ref, w00_ref, w01_ref, w10_ref, w11_ref, b_ref,
                           o_ref):
    """Fused conv (superpatch matmul) + 2x2 max pool + bias + ReLU.

    p_ref holds, per pooled pixel, the 6x6xC union window of the four conv
    receptive fields; w_uv is the 5x5xC kernel embedded at offset (u, v) in
    that layout, so p @ w_uv is the pre-pool conv value at pool position
    (u, v).  Bias-add and ReLU are monotone, hence
    maxpool(relu(conv + b)) == relu(max_uv(p @ w_uv) + b).
    """
    p = p_ref[...]
    m = jnp.dot(p, w00_ref[...], preferred_element_type=jnp.float32)
    m = jnp.maximum(m, jnp.dot(p, w01_ref[...],
                               preferred_element_type=jnp.float32))
    m = jnp.maximum(m, jnp.dot(p, w10_ref[...],
                               preferred_element_type=jnp.float32))
    m = jnp.maximum(m, jnp.dot(p, w11_ref[...],
                               preferred_element_type=jnp.float32))
    o_ref[...] = jnp.maximum(m + b_ref[...], 0.0).astype(o_ref.dtype)


def _mlp_kernel(x_ref, w1_ref, b1_ref, w2_ref, b2_ref, w3_ref, b3_ref, o_ref):
    """fc1 + ReLU + fc2 + ReLU + fc3 fused; all weights resident in VMEM.

    x/w1 are bf16 (HBM-facing); h stays f32 and fc2/fc3 weights are f32, so
    intermediate activations are never down-cast between layers.
    """
    h = jnp.dot(x_ref[...], w1_ref[...], preferred_element_type=jnp.float32)
    h = jnp.maximum(h + b1_ref[...], 0.0)
    h = jnp.dot(h, w2_ref[...], preferred_element_type=jnp.float32)
    h = jnp.maximum(h + b2_ref[...], 0.0)
    h = jnp.dot(h, w3_ref[...], preferred_element_type=jnp.float32)
    o_ref[...] = (h + b3_ref[...]).astype(o_ref.dtype)


# ----------------------------- layer wrappers -------------------------------

def conv_relu_pool(x_nhwc, w, b, *, tile_m=1024):
    """Fused valid Conv2d (stride 1) + ReLU + MaxPool(2,2).

    x_nhwc: (B, H, W, C);  w: (OC, C, KH, KW) (PyTorch layout);  b: (OC,)
    Returns (B, PH, PW, OC) in COMPUTE_DTYPE, PH = (H-KH+1)//2, PW = (W-KW+1)//2.
    """
    B, H, W, C = x_nhwc.shape
    oc, ic, kh, kw = w.shape
    assert ic == C
    OH, OW = H - kh + 1, W - kw + 1
    PH, PW = OH // 2, OW // 2
    KSH, KSW = kh + 1, kw + 1            # 6x6 union window of the 2x2 pool
    K = KSH * KSW * C                    # superpatch width (108 / 216)
    K_pad = _round_up(K, LANES)          # 108 -> 128, 216 -> 256
    N_pad = LANES                        # 6 / 16 -> 128 (lane-dense stores)

    M = B * PH * PW
    tm, M_pad = _pick_tile(M, tile_m)

    # One superpatch per pooled pixel, K ordered (kh6, kw6, c): taps are
    # cheap strided slices concatenated on the channel axis — no big transpose.
    xc = x_nhwc.astype(COMPUTE_DTYPE)
    taps = [xc[:, i:i + 2 * PH:2, j:j + 2 * PW:2, :]
            for i in range(KSH) for j in range(KSW)]       # each (B,PH,PW,C)
    p = jnp.concatenate(taps, axis=-1).reshape(M, K)
    p = jnp.pad(p, ((0, M_pad - M), (0, K_pad - K)))

    # Four resident weights: 5x5xC kernel embedded at pool offset (u,v) inside
    # the 6x6xC superpatch K-layout (the tiny weight is permuted, not the patch).
    w_hwcn = jnp.transpose(w, (2, 3, 1, 0)).astype(COMPUTE_DTYPE)  # (KH,KW,C,OC)

    def embed(u, v):
        full = jnp.zeros((KSH, KSW, C, oc), COMPUTE_DTYPE)
        full = full.at[u:u + kh, v:v + kw].set(w_hwcn)
        full = full.reshape(K, oc)
        return jnp.pad(full, ((0, K_pad - K), (0, N_pad - oc)))

    ws = [embed(u, v) for u in (0, 1) for v in (0, 1)]
    b2 = jnp.pad(b, (0, N_pad - oc)).reshape(1, N_pad).astype(jnp.float32)

    itm = jnp.dtype(COMPUTE_DTYPE).itemsize
    cost = pl.CostEstimate(
        flops=2 * 4 * M_pad * K_pad * N_pad,
        transcendentals=0,
        bytes_accessed=(M_pad * K_pad + 4 * K_pad * N_pad + M_pad * N_pad) * itm
                       + N_pad * 4)

    patch_spec = pl.BlockSpec((tm, K_pad), lambda i: (i, 0))
    w_spec = pl.BlockSpec((K_pad, N_pad), lambda i: (0, 0))
    out = pl.pallas_call(
        _conv_relu_pool_kernel,
        out_shape=jax.ShapeDtypeStruct((M_pad, N_pad), COMPUTE_DTYPE),
        grid=(M_pad // tm,),
        in_specs=[patch_spec, w_spec, w_spec, w_spec, w_spec,
                  pl.BlockSpec((1, N_pad), lambda i: (0, 0))],
        out_specs=pl.BlockSpec((tm, N_pad), lambda i: (i, 0)),
        compiler_params=pltpu.CompilerParams(
            dimension_semantics=("parallel",)),
        cost_estimate=cost,
    )(p, *ws, b2)

    return out[:M, :oc].reshape(B, PH, PW, oc)


def _pack_fc_params(params):
    """Pack fc weights: transpose to (in, out), zero-pad K/N to lane multiples.

    fc1 consumes features flattened as (ph, pw, c) (channel-last), while
    PyTorch's .view flattens (c, h, w), so fc1_w is permuted accordingly.
    fc1 is bf16 (its LHS is the bf16 conv2 output); fc2/fc3 stay f32 so the
    f32 hidden activations are never down-cast.
    """
    w1 = params["fc1_w"].reshape(120, 16, 5, 5).transpose(0, 2, 3, 1)
    w1 = w1.reshape(120, K1).T                                   # (400, 120)
    w1 = jnp.pad(w1, ((0, K1_PAD - K1), (0, LANES - 120))).astype(COMPUTE_DTYPE)
    b1 = jnp.pad(params["fc1_b"], (0, LANES - 120)).reshape(1, LANES)
    w2 = jnp.pad(params["fc2_w"].T, ((0, LANES - 120), (0, LANES - 84)))
    b2 = jnp.pad(params["fc2_b"], (0, LANES - 84)).reshape(1, LANES)
    w3 = jnp.pad(params["fc3_w"].T, ((0, LANES - 84), (0, LANES - 10)))
    b3 = jnp.pad(params["fc3_b"], (0, LANES - 10)).reshape(1, LANES)
    f32 = jnp.float32
    return (w1, b1.astype(f32), w2.astype(f32), b2.astype(f32),
            w3.astype(f32), b3.astype(f32))


def fused_mlp(x, w1, b1, w2, b2, w3, b3, *, tile_b=1024):
    """x: (B, 400) -> (B_pad, 128) f32 padded logits (first 10 columns valid)."""
    B, K = x.shape
    assert K == K1
    tb, B_pad = _pick_tile(B, tile_b)
    x = jnp.pad(x.astype(COMPUTE_DTYPE), ((0, B_pad - B), (0, K1_PAD - K)))

    cost = pl.CostEstimate(
        flops=2 * B_pad * (K1_PAD * LANES + 2 * LANES * LANES),
        transcendentals=0,
        bytes_accessed=(B_pad * K1_PAD + K1_PAD * LANES) * 2
                       + 2 * LANES * LANES * 4 + 3 * LANES * 4
                       + B_pad * LANES * 4)

    return pl.pallas_call(
        _mlp_kernel,
        out_shape=jax.ShapeDtypeStruct((B_pad, LANES), jnp.float32),
        grid=(B_pad // tb,),
        in_specs=[pl.BlockSpec((tb, K1_PAD), lambda i: (i, 0)),
                  pl.BlockSpec((K1_PAD, LANES), lambda i: (0, 0)),
                  pl.BlockSpec((1, LANES), lambda i: (0, 0)),
                  pl.BlockSpec((LANES, LANES), lambda i: (0, 0)),
                  pl.BlockSpec((1, LANES), lambda i: (0, 0)),
                  pl.BlockSpec((LANES, LANES), lambda i: (0, 0)),
                  pl.BlockSpec((1, LANES), lambda i: (0, 0))],
        out_specs=pl.BlockSpec((tb, LANES), lambda i: (i, 0)),
        compiler_params=pltpu.CompilerParams(
            dimension_semantics=("parallel",)),
        cost_estimate=cost,
    )(x, w1, b1, w2, b2, w3, b3)


# ------------------------------ parameters ---------------------------------

def init_params(key):
    """Deterministic init mimicking PyTorch's U(-1/sqrt(fan_in), 1/sqrt(fan_in))."""
    def uniform(key, shape, fan_in):
        bound = 1.0 / jnp.sqrt(jnp.float32(fan_in))
        return jax.random.uniform(key, shape, jnp.float32, -bound, bound)

    ks = jax.random.split(key, 10)
    return {
        "conv1_w": uniform(ks[0], (6, 3, 5, 5), 3 * 5 * 5),
        "conv1_b": uniform(ks[1], (6,), 3 * 5 * 5),
        "conv2_w": uniform(ks[2], (16, 6, 5, 5), 6 * 5 * 5),
        "conv2_b": uniform(ks[3], (16,), 6 * 5 * 5),
        "fc1_w": uniform(ks[4], (120, 16 * 5 * 5), 16 * 5 * 5),
        "fc1_b": uniform(ks[5], (120,), 16 * 5 * 5),
        "fc2_w": uniform(ks[6], (84, 120), 120),
        "fc2_b": uniform(ks[7], (84,), 120),
        "fc3_w": uniform(ks[8], (10, 84), 84),
        "fc3_b": uniform(ks[9], (10,), 84),
    }


# ------------------------------- forward -----------------------------------

@jax.jit
def small_forward(params, x):
    """x: (B, 3, 32, 32) NCHW float32 (PyTorch layout) -> (B, 10) f32 logits."""
    B = x.shape[0]
    x = jnp.transpose(x.astype(COMPUTE_DTYPE), (0, 2, 3, 1))     # NHWC, bf16
    x = conv_relu_pool(x, params["conv1_w"], params["conv1_b"])  # (B, 14, 14, 6)
    x = conv_relu_pool(x, params["conv2_w"], params["conv2_b"])  # (B, 5, 5, 16)
    x = x.reshape(B, 5 * 5 * 16)                                 # (ph, pw, c)
    w1, b1, w2, b2, w3, b3 = _pack_fc_params(params)
    out = fused_mlp(x, w1, b1, w2, b2, w3, b3)                   # (B_pad, 128)
    return out[:B, :10]


def _reference_forward(params, x):
    """Pure-JAX/XLA f32 reference mirroring the PyTorch module (validation only)."""
    def conv(x, w, b):
        y = jax.lax.conv_general_dilated(
            x, w, window_strides=(1, 1), padding="VALID",
            dimension_numbers=("NCHW", "OIHW", "NCHW"))
        return y + b[None, :, None, None]

    def pool(x):
        return jax.lax.reduce_window(x, -jnp.inf, jax.lax.max,
                                     (1, 1, 2, 2), (1, 1, 2, 2), "VALID")

    x = pool(jax.nn.relu(conv(x, params["conv1_w"], params["conv1_b"])))
    x = pool(jax.nn.relu(conv(x, params["conv2_w"], params["conv2_b"])))
    x = x.reshape(x.shape[0], -1)
    x = jax.nn.relu(x @ params["fc1_w"].T + params["fc1_b"])
    x = jax.nn.relu(x @ params["fc2_w"].T + params["fc2_b"])
    return x @ params["fc3_w"].T + params["fc3_b"]


if __name__ == "__main__":
    key = jax.random.PRNGKey(0)
    pkey, xkey = jax.random.split(key)
    params = init_params(pkey)
    # fc1 expects 16*5*5 features, which implies 32x32 spatial input (CIFAR-like).
    x = jax.random.normal(xkey, (2, 3, 32, 32), jnp.float32)

    out = small_forward(params, x)
    jax.block_until_ready(out)
    assert out.shape == (2, 10), out.shape

    ref = _reference_forward(params, x)
    tol = 2e-3 if jnp.dtype(COMPUTE_DTYPE) == jnp.dtype(jnp.float32) else 5e-2
    max_err = float(jnp.max(jnp.abs(out - ref)))
    assert max_err < tol, f"mismatch vs reference: max abs err = {max_err}"

    print("KERNEL_OK")
</pallas_src>

<mosaic_0001>
module attributes {stable_mosaic.version = 11 : i64} {
  func.func @_conv_relu_pool_kernel(%arg0: i32, %arg1: memref<200x128xbf16, #tpu.memory_space<vmem>>, %arg2: memref<128x128xbf16, #tpu.memory_space<vmem>>, %arg3: memref<128x128xbf16, #tpu.memory_space<vmem>>, %arg4: memref<128x128xbf16, #tpu.memory_space<vmem>>, %arg5: memref<128x128xbf16, #tpu.memory_space<vmem>>, %arg6: memref<1x128xf32, #tpu.memory_space<vmem>>, %arg7: memref<200x128xbf16, #tpu.memory_space<vmem>>) attributes {dimension_semantics = [#tpu.dimension_semantics<parallel>], iteration_bounds = array<i64: 2>, scalar_prefetch = 0 : i64, scratch_operands = 0 : i64, tpu.core_type = #tpu.core_type<tc>, window_params = [{transform_indices = @transform_0, window_bounds = array<i64: 200, 128>}, {pipeline_mode = #tpu.pipeline_mode<synchronous>, transform_indices = @transform_1, window_bounds = array<i64: 128, 128>}, {pipeline_mode = #tpu.pipeline_mode<synchronous>, transform_indices = @transform_2, window_bounds = array<i64: 128, 128>}, {pipeline_mode = #tpu.pipeline_mode<synchronous>, transform_indices = @transform_3, window_bounds = array<i64: 128, 128>}, {pipeline_mode = #tpu.pipeline_mode<synchronous>, transform_indices = @transform_4, window_bounds = array<i64: 128, 128>}, {pipeline_mode = #tpu.pipeline_mode<synchronous>, transform_indices = @transform_5, window_bounds = array<i64: 1, 128>}, {transform_indices = @transform_6, window_bounds = array<i64: 200, 128>}]} {
    %c0 = arith.constant 0 : index
    %c0_0 = arith.constant 0 : index
    %0 = vector.load %arg1[%c0, %c0_0] : memref<200x128xbf16, #tpu.memory_space<vmem>>, vector<200x128xbf16>
    %c0_1 = arith.constant 0 : index
    %c0_2 = arith.constant 0 : index
    %1 = vector.load %arg2[%c0_1, %c0_2] : memref<128x128xbf16, #tpu.memory_space<vmem>>, vector<128x128xbf16>
    %cst = arith.constant dense<0.000000e+00> : vector<200x128xf32>
    %2 = tpu.matmul %0, %1, %cst {dimension_numbers = #tpu.dot_dimension_numbers<[1], [0], [0], [1], [0, 0, 1, 1], [], []>} : vector<200x128xbf16>, vector<128x128xbf16>, vector<200x128xf32> -> vector<200x128xf32>
    %c0_3 = arith.constant 0 : index
    %c0_4 = arith.constant 0 : index
    %3 = vector.load %arg3[%c0_3, %c0_4] : memref<128x128xbf16, #tpu.memory_space<vmem>>, vector<128x128xbf16>
    %cst_5 = arith.constant dense<0.000000e+00> : vector<200x128xf32>
    %4 = tpu.matmul %0, %3, %cst_5 {dimension_numbers = #tpu.dot_dimension_numbers<[1], [0], [0], [1], [0, 0, 1, 1], [], []>} : vector<200x128xbf16>, vector<128x128xbf16>, vector<200x128xf32> -> vector<200x128xf32>
    %5 = arith.maximumf %2, %4 : vector<200x128xf32>
    %c0_6 = arith.constant 0 : index
    %c0_7 = arith.constant 0 : index
    %6 = vector.load %arg4[%c0_6, %c0_7] : memref<128x128xbf16, #tpu.memory_space<vmem>>, vector<128x128xbf16>
    %cst_8 = arith.constant dense<0.000000e+00> : vector<200x128xf32>
    %7 = tpu.matmul %0, %6, %cst_8 {dimension_numbers = #tpu.dot_dimension_numbers<[1], [0], [0], [1], [0, 0, 1, 1], [], []>} : vector<200x128xbf16>, vector<128x128xbf16>, vector<200x128xf32> -> vector<200x128xf32>
    %8 = arith.maximumf %5, %7 : vector<200x128xf32>
    %c0_9 = arith.constant 0 : index
    %c0_10 = arith.constant 0 : index
    %9 = vector.load %arg5[%c0_9, %c0_10] : memref<128x128xbf16, #tpu.memory_space<vmem>>, vector<128x128xbf16>
    %cst_11 = arith.constant dense<0.000000e+00> : vector<200x128xf32>
    %10 = tpu.matmul %0, %9, %cst_11 {dimension_numbers = #tpu.dot_dimension_numbers<[1], [0], [0], [1], [0, 0, 1, 1], [], []>} : vector<200x128xbf16>, vector<128x128xbf16>, vector<200x128xf32> -> vector<200x128xf32>
    %11 = arith.maximumf %8, %10 : vector<200x128xf32>
    %c0_12 = arith.constant 0 : index
    %c0_13 = arith.constant 0 : index
    %12 = vector.load %arg6[%c0_12, %c0_13] : memref<1x128xf32, #tpu.memory_space<vmem>>, vector<1x128xf32>
    %13 = vector.broadcast %12 : vector<1x128xf32> to vector<200x128xf32>
    %14 = arith.addf %11, %13 : vector<200x128xf32>
    %cst_14 = arith.constant 0.000000e+00 : f32
    %15 = vector.broadcast %cst_14 : f32 to vector<200x128xf32>
    %16 = arith.maximumf %14, %15 : vector<200x128xf32>
    %17 = arith.truncf %16 : vector<200x128xf32> to vector<200x128xbf16>
    %c0_15 = arith.constant 0 : index
    %c0_16 = arith.constant 0 : index
    %18 = vector.load %arg7[%c0_15, %c0_16] : memref<200x128xbf16, #tpu.memory_space<vmem>>, vector<200x128xbf16>
    tpu.vector_store %arg7[%c0_15, %c0_16], %17 {strides = array<i32>} : memref<200x128xbf16, #tpu.memory_space<vmem>>, vector<200x128xbf16>,
    return
  }
  func.func @transform_0(%arg0: i32) -> (i32, i32) {
    %c0_i32 = arith.constant 0 : i32
    %c0_i32_0 = arith.constant 0 : i32
    return %arg0, %c0_i32 : i32, i32
  }
  func.func @transform_1(%arg0: i32) -> (i32, i32) {
    %c0_i32 = arith.constant 0 : i32
    %c0_i32_0 = arith.constant 0 : i32
    %c0_i32_1 = arith.constant 0 : i32
    return %c0_i32, %c0_i32_0 : i32, i32
  }
  func.func @transform_2(%arg0: i32) -> (i32, i32) {
    %c0_i32 = arith.constant 0 : i32
    %c0_i32_0 = arith.constant 0 : i32
    %c0_i32_1 = arith.constant 0 : i32
    return %c0_i32, %c0_i32_0 : i32, i32
  }
  func.func @transform_3(%arg0: i32) -> (i32, i32) {
    %c0_i32 = arith.constant 0 : i32
    %c0_i32_0 = arith.constant 0 : i32
    %c0_i32_1 = arith.constant 0 : i32
    return %c0_i32, %c0_i32_0 : i32, i32
  }
  func.func @transform_4(%arg0: i32) -> (i32, i32) {
    %c0_i32 = arith.constant 0 : i32
    %c0_i32_0 = arith.constant 0 : i32
    %c0_i32_1 = arith.constant 0 : i32
    return %c0_i32, %c0_i32_0 : i32, i32
  }
  func.func @transform_5(%arg0: i32) -> (i32, i32) {
    %c0_i32 = arith.constant 0 : i32
    %c0_i32_0 = arith.constant 0 : i32
    %c0_i32_1 = arith.constant 0 : i32
    return %c0_i32, %c0_i32_0 : i32, i32
  }
  func.func @transform_6(%arg0: i32) -> (i32, i32) {
    %c0_i32 = arith.constant 0 : i32
    %c0_i32_0 = arith.constant 0 : i32
    return %arg0, %c0_i32 : i32, i32
  }
}

module attributes {stable_mosaic.version = 11 : i64} {
  func.func @_conv_relu_pool_kernel(%arg0: i32, %arg1: memref<32x256xbf16, #tpu.memory_space<vmem>>, %arg2: memref<256x128xbf16, #tpu.memory_space<vmem>>, %arg3: memref<256x128xbf16, #tpu.memory_space<vmem>>, %arg4: memref<256x128xbf16, #tpu.memory_space<vmem>>, %arg5: memref<256x128xbf16, #tpu.memory_space<vmem>>, %arg6: memref<1x128xf32, #tpu.memory_space<vmem>>, %arg7: memref<32x128xbf16, #tpu.memory_space<vmem>>) attributes {dimension_semantics = [#tpu.dimension_semantics<parallel>], iteration_bounds = array<i64: 2>, scalar_prefetch = 0 : i64, scratch_operands = 0 : i64, tpu.core_type = #tpu.core_type<tc>, window_params = [{transform_indices = @transform_0, window_bounds = array<i64: 32, 256>}, {pipeline_mode = #tpu.pipeline_mode<synchronous>, transform_indices = @transform_1, window_bounds = array<i64: 256, 128>}, {pipeline_mode = #tpu.pipeline_mode<synchronous>, transform_indices = @transform_2, window_bounds = array<i64: 256, 128>}, {pipeline_mode = #tpu.pipeline_mode<synchronous>, transform_indices = @transform_3, window_bounds = array<i64: 256, 128>}, {pipeline_mode = #tpu.pipeline_mode<synchronous>, transform_indices = @transform_4, window_bounds = array<i64: 256, 128>}, {pipeline_mode = #tpu.pipeline_mode<synchronous>, transform_indices = @transform_5, window_bounds = array<i64: 1, 128>}, {transform_indices = @transform_6, window_bounds = array<i64: 32, 128>}]} {
    %c0 = arith.constant 0 : index
    %c0_0 = arith.constant 0 : index
    %0 = vector.load %arg1[%c0, %c0_0] : memref<32x256xbf16, #tpu.memory_space<vmem>>, vector<32x256xbf16>
    %c0_1 = arith.constant 0 : index
    %c0_2 = arith.constant 0 : index
    %1 = vector.load %arg2[%c0_1, %c0_2] : memref<256x128xbf16, #tpu.memory_space<vmem>>, vector<256x128xbf16>
    %cst = arith.constant dense<0.000000e+00> : vector<32x128xf32>
    %2 = tpu.matmul %0, %1, %cst {dimension_numbers = #tpu.dot_dimension_numbers<[1], [0], [0], [1], [0, 0, 1, 1], [], []>} : vector<32x256xbf16>, vector<256x128xbf16>, vector<32x128xf32> -> vector<32x128xf32>
    %c0_3 = arith.constant 0 : index
    %c0_4 = arith.constant 0 : index
    %3 = vector.load %arg3[%c0_3, %c0_4] : memref<256x128xbf16, #tpu.memory_space<vmem>>, vector<256x128xbf16>
    %cst_5 = arith.constant dense<0.000000e+00> : vector<32x128xf32>
    %4 = tpu.matmul %0, %3, %cst_5 {dimension_numbers = #tpu.dot_dimension_numbers<[1], [0], [0], [1], [0, 0, 1, 1], [], []>} : vector<32x256xbf16>, vector<256x128xbf16>, vector<32x128xf32> -> vector<32x128xf32>
    %5 = arith.maximumf %2, %4 : vector<32x128xf32>
    %c0_6 = arith.constant 0 : index
    %c0_7 = arith.constant 0 : index
    %6 = vector.load %arg4[%c0_6, %c0_7] : memref<256x128xbf16, #tpu.memory_space<vmem>>, vector<256x128xbf16>
    %cst_8 = arith.constant dense<0.000000e+00> : vector<32x128xf32>
    %7 = tpu.matmul %0, %6, %cst_8 {dimension_numbers = #tpu.dot_dimension_numbers<[1], [0], [0], [1], [0, 0, 1, 1], [], []>} : vector<32x256xbf16>, vector<256x128xbf16>, vector<32x128xf32> -> vector<32x128xf32>
    %8 = arith.maximumf %5, %7 : vector<32x128xf32>
    %c0_9 = arith.constant 0 : index
    %c0_10 = arith.constant 0 : index
    %9 = vector.load %arg5[%c0_9, %c0_10] : memref<256x128xbf16, #tpu.memory_space<vmem>>, vector<256x128xbf16>
    %cst_11 = arith.constant dense<0.000000e+00> : vector<32x128xf32>
    %10 = tpu.matmul %0, %9, %cst_11 {dimension_numbers = #tpu.dot_dimension_numbers<[1], [0], [0], [1], [0, 0, 1, 1], [], []>} : vector<32x256xbf16>, vector<256x128xbf16>, vector<32x128xf32> -> vector<32x128xf32>
    %11 = arith.maximumf %8, %10 : vector<32x128xf32>
    %c0_12 = arith.constant 0 : index
    %c0_13 = arith.constant 0 : index
    %12 = vector.load %arg6[%c0_12, %c0_13] : memref<1x128xf32, #tpu.memory_space<vmem>>, vector<1x128xf32>
    %13 = vector.broadcast %12 : vector<1x128xf32> to vector<32x128xf32>
    %14 = arith.addf %11, %13 : vector<32x128xf32>
    %cst_14 = arith.constant 0.000000e+00 : f32
    %15 = vector.broadcast %cst_14 : f32 to vector<32x128xf32>
    %16 = arith.maximumf %14, %15 : vector<32x128xf32>
    %17 = arith.truncf %16 : vector<32x128xf32> to vector<32x128xbf16>
    %c0_15 = arith.constant 0 : index
    %c0_16 = arith.constant 0 : index
    %18 = vector.load %arg7[%c0_15, %c0_16] : memref<32x128xbf16, #tpu.memory_space<vmem>>, vector<32x128xbf16>
    tpu.vector_store %arg7[%c0_15, %c0_16], %17 {strides = array<i32>} : memref<32x128xbf16, #tpu.memory_space<vmem>>, vector<32x128xbf16>,
    return
  }
  func.func @transform_0(%arg0: i32) -> (i32, i32) {
    %c0_i32 = arith.constant 0 : i32
    %c0_i32_0 = arith.constant 0 : i32
    return %arg0, %c0_i32 : i32, i32
  }
  func.func @transform_1(%arg0: i32) -> (i32, i32) {
    %c0_i32 = arith.constant 0 : i32
    %c0_i32_0 = arith.constant 0 : i32
    %c0_i32_1 = arith.constant 0 : i32
    return %c0_i32, %c0_i32_0 : i32, i32
  }
  func.func @transform_2(%arg0: i32) -> (i32, i32) {
    %c0_i32 = arith.constant 0 : i32
    %c0_i32_0 = arith.constant 0 : i32
    %c0_i32_1 = arith.constant 0 : i32
    return %c0_i32, %c0_i32_0 : i32, i32
  }
  func.func @transform_3(%arg0: i32) -> (i32, i32) {
    %c0_i32 = arith.constant 0 : i32
    %c0_i32_0 = arith.constant 0 : i32
    %c0_i32_1 = arith.constant 0 : i32
    return %c0_i32, %c0_i32_0 : i32, i32
  }
  func.func @transform_4(%arg0: i32) -> (i32, i32) {
    %c0_i32 = arith.constant 0 : i32
    %c0_i32_0 = arith.constant 0 : i32
    %c0_i32_1 = arith.constant 0 : i32
    return %c0_i32, %c0_i32_0 : i32, i32
  }
  func.func @transform_5(%arg0: i32) -> (i32, i32) {
    %c0_i32 = arith.constant 0 : i32
    %c0_i32_0 = arith.constant 0 : i32
    %c0_i32_1 = arith.constant 0 : i32
    return %c0_i32, %c0_i32_0 : i32, i32
  }
  func.func @transform_6(%arg0: i32) -> (i32, i32) {
    %c0_i32 = arith.constant 0 : i32
    %c0_i32_0 = arith.constant 0 : i32
    return %arg0, %c0_i32 : i32, i32
  }
}

module attributes {stable_mosaic.version = 11 : i64} {
  func.func @_mlp_kernel(%arg0: i32, %arg1: memref<8x512xbf16, #tpu.memory_space<vmem>>, %arg2: memref<512x128xbf16, #tpu.memory_space<vmem>>, %arg3: memref<1x128xf32, #tpu.memory_space<vmem>>, %arg4: memref<128x128xf32, #tpu.memory_space<vmem>>, %arg5: memref<1x128xf32, #tpu.memory_space<vmem>>, %arg6: memref<128x128xf32, #tpu.memory_space<vmem>>, %arg7: memref<1x128xf32, #tpu.memory_space<vmem>>, %arg8: memref<8x128xf32, #tpu.memory_space<vmem>>) attributes {dimension_semantics = [#tpu.dimension_semantics<parallel>], iteration_bounds = array<i64: 1>, scalar_prefetch = 0 : i64, scratch_operands = 0 : i64, tpu.core_type = #tpu.core_type<tc>, window_params = [{transform_indices = @transform_0, window_bounds = array<i64: 8, 512>}, {pipeline_mode = #tpu.pipeline_mode<synchronous>, transform_indices = @transform_1, window_bounds = array<i64: 512, 128>}, {pipeline_mode = #tpu.pipeline_mode<synchronous>, transform_indices = @transform_2, window_bounds = array<i64: 1, 128>}, {pipeline_mode = #tpu.pipeline_mode<synchronous>, transform_indices = @transform_3, window_bounds = array<i64: 128, 128>}, {pipeline_mode = #tpu.pipeline_mode<synchronous>, transform_indices = @transform_4, window_bounds = array<i64: 1, 128>}, {pipeline_mode = #tpu.pipeline_mode<synchronous>, transform_indices = @transform_5, window_bounds = array<i64: 128, 128>}, {pipeline_mode = #tpu.pipeline_mode<synchronous>, transform_indices = @transform_6, window_bounds = array<i64: 1, 128>}, {transform_indices = @transform_7, window_bounds = array<i64: 8, 128>}]} {
    %c0 = arith.constant 0 : index
    %c0_0 = arith.constant 0 : index
    %0 = vector.load %arg1[%c0, %c0_0] : memref<8x512xbf16, #tpu.memory_space<vmem>>, vector<8x512xbf16>
    %c0_1 = arith.constant 0 : index
    %c0_2 = arith.constant 0 : index
    %1 = vector.load %arg2[%c0_1, %c0_2] : memref<512x128xbf16, #tpu.memory_space<vmem>>, vector<512x128xbf16>
    %cst = arith.constant dense<0.000000e+00> : vector<8x128xf32>
    %2 = tpu.matmul %0, %1, %cst {dimension_numbers = #tpu.dot_dimension_numbers<[1], [0], [0], [1], [0, 0, 1, 1], [], []>} : vector<8x512xbf16>, vector<512x128xbf16>, vector<8x128xf32> -> vector<8x128xf32>
    %c0_3 = arith.constant 0 : index
    %c0_4 = arith.constant 0 : index
    %3 = vector.load %arg3[%c0_3, %c0_4] : memref<1x128xf32, #tpu.memory_space<vmem>>, vector<1x128xf32>
    %4 = vector.broadcast %3 : vector<1x128xf32> to vector<8x128xf32>
    %5 = arith.addf %2, %4 : vector<8x128xf32>
    %cst_5 = arith.constant 0.000000e+00 : f32
    %6 = vector.broadcast %cst_5 : f32 to vector<8x128xf32>
    %7 = arith.maximumf %5, %6 : vector<8x128xf32>
    %c0_6 = arith.constant 0 : index
    %c0_7 = arith.constant 0 : index
    %8 = vector.load %arg4[%c0_6, %c0_7] : memref<128x128xf32, #tpu.memory_space<vmem>>, vector<128x128xf32>
    %cst_8 = arith.constant dense<0.000000e+00> : vector<8x128xf32>
    %9 = tpu.matmul %7, %8, %cst_8 {dimension_numbers = #tpu.dot_dimension_numbers<[1], [0], [0], [1], [0, 0, 1, 1], [], []>} : vector<8x128xf32>, vector<128x128xf32>, vector<8x128xf32> -> vector<8x128xf32>
    %c0_9 = arith.constant 0 : index
    %c0_10 = arith.constant 0 : index
    %10 = vector.load %arg5[%c0_9, %c0_10] : memref<1x128xf32, #tpu.memory_space<vmem>>, vector<1x128xf32>
    %11 = vector.broadcast %10 : vector<1x128xf32> to vector<8x128xf32>
    %12 = arith.addf %9, %11 : vector<8x128xf32>
    %cst_11 = arith.constant 0.000000e+00 : f32
    %13 = vector.broadcast %cst_11 : f32 to vector<8x128xf32>
    %14 = arith.maximumf %12, %13 : vector<8x128xf32>
    %c0_12 = arith.constant 0 : index
    %c0_13 = arith.constant 0 : index
    %15 = vector.load %arg6[%c0_12, %c0_13] : memref<128x128xf32, #tpu.memory_space<vmem>>, vector<128x128xf32>
    %cst_14 = arith.constant dense<0.000000e+00> : vector<8x128xf32>
    %16 = tpu.matmul %14, %15, %cst_14 {dimension_numbers = #tpu.dot_dimension_numbers<[1], [0], [0], [1], [0, 0, 1, 1], [], []>} : vector<8x128xf32>, vector<128x128xf32>, vector<8x128xf32> -> vector<8x128xf32>
    %c0_15 = arith.constant 0 : index
    %c0_16 = arith.constant 0 : index
    %17 = vector.load %arg7[%c0_15, %c0_16] : memref<1x128xf32, #tpu.memory_space<vmem>>, vector<1x128xf32>
    %18 = vector.broadcast %17 : vector<1x128xf32> to vector<8x128xf32>
    %19 = arith.addf %16, %18 : vector<8x128xf32>
    %c0_17 = arith.constant 0 : index
    %c0_18 = arith.constant 0 : index
    %20 = vector.load %arg8[%c0_17, %c0_18] : memref<8x128xf32, #tpu.memory_space<vmem>>, vector<8x128xf32>
    tpu.vector_store %arg8[%c0_17, %c0_18], %19 {strides = array<i32>} : memref<8x128xf32, #tpu.memory_space<vmem>>, vector<8x128xf32>,
    return
  }
  func.func @transform_0(%arg0: i32) -> (i32, i32) {
    %c0_i32 = arith.constant 0 : i32
    %c0_i32_0 = arith.constant 0 : i32
    return %arg0, %c0_i32 : i32, i32
  }
  func.func @transform_1(%arg0: i32) -> (i32, i32) {
    %c0_i32 = arith.constant 0 : i32
    %c0_i32_0 = arith.constant 0 : i32
    %c0_i32_1 = arith.constant 0 : i32
    return %c0_i32, %c0_i32_0 : i32, i32
  }
  func.func @transform_2(%arg0: i32) -> (i32, i32) {
    %c0_i32 = arith.constant 0 : i32
    %c0_i32_0 = arith.constant 0 : i32
    %c0_i32_1 = arith.constant 0 : i32
    return %c0_i32, %c0_i32_0 : i32, i32
  }
  func.func @transform_3(%arg0: i32) -> (i32, i32) {
    %c0_i32 = arith.constant 0 : i32
    %c0_i32_0 = arith.constant 0 : i32
    %c0_i32_1 = arith.constant 0 : i32
    return %c0_i32, %c0_i32_0 : i32, i32
  }
  func.func @transform_4(%arg0: i32) -> (i32, i32) {
    %c0_i32 = arith.constant 0 : i32
    %c0_i32_0 = arith.constant 0 : i32
    %c0_i32_1 = arith.constant 0 : i32
    return %c0_i32, %c0_i32_0 : i32, i32
  }
  func.func @transform_5(%arg0: i32) -> (i32, i32) {
    %c0_i32 = arith.constant 0 : i32
    %c0_i32_0 = arith.constant 0 : i32
    %c0_i32_1 = arith.constant 0 : i32
    return %c0_i32, %c0_i32_0 : i32, i32
  }
  func.func @transform_6(%arg0: i32) -> (i32, i32) {
    %c0_i32 = arith.constant 0 : i32
    %c0_i32_0 = arith.constant 0 : i32
    %c0_i32_1 = arith.constant 0 : i32
    return %c0_i32, %c0_i32_0 : i32, i32
  }
  func.func @transform_7(%arg0: i32) -> (i32, i32) {
    %c0_i32 = arith.constant 0 : i32
    %c0_i32_0 = arith.constant 0 : i32
    return %arg0, %c0_i32 : i32, i32
  }
}

</mosaic_0001>

<llo_original>
// kernel: small_forward.3
$region0: #{small_forward.3}
  #allocation0 [shape = 'u32[]', space=smem, size = 0x4, offset = 0x4, fixed_abs, tag = 'smem constant byte address 0x4 - core index']
  #allocation1 [shape = 'u32[144,128]{1,0:T(1,128)}', space=vmem, size = 0x12000, scoped, tag = 'internal scratch']
  %s0 = inlined_call_operand.vmem [shape: bf16[400,128], index: 0, kind: input, shape index: {}]
  %s1 = inlined_call_operand.vmem [shape: bf16[128,128], index: 1, kind: input, shape index: {}]
  %s2 = inlined_call_operand.vmem [shape: bf16[128,128], index: 2, kind: input, shape index: {}]
  %s3 = inlined_call_operand.vmem [shape: bf16[128,128], index: 3, kind: input, shape index: {}]
  %s4 = inlined_call_operand.vmem [shape: bf16[128,128], index: 4, kind: input, shape index: {}]
  %s5 = inlined_call_operand.vmem [shape: f32[1,128], index: 5, kind: input, shape index: {}]
  %s6 = inlined_call_operand.vmem [shape: bf16[400,128], index: 6, kind: output, shape index: {}]
  %s7 = sld [smem:[#allocation0]]
  $region57: #{small_forward.3} parent=0
    _
  %s9 = ssub.s32 1, %s7
  %s10 = scalar_select 0, %s9, %s7
  loop: start=0, step=1, limit=4
  $region2: #{small_forward.3} parent=0 // loop_pre_header
    _
  $region3: #{small_forward.3} parent=0 // loop_header
    %s12 = sphi 0, %s16
    %p13 = scmp.ge.s32.totalorder %s12, 4
    %s22 = sphi 0, %s24
    %s25 = sphi 0, %s22
    %s26 = sphi 0, %s25
    %s42 = sphi 0, %s26
    %s46 = sphi 0, %s46
    %s48 = sphi 0, %s46
    %s49 = sphi 0, %s48
    %s63 = sphi 0, %s49
    %s67 = sphi 0, %s67
    %s69 = sphi 0, %s67
    %s70 = sphi 0, %s69
    %s84 = sphi 0, %s70
    %s88 = sphi 0, %s88
    %s90 = sphi 0, %s88
    %s91 = sphi 0, %s90
    %s105 = sphi 0, %s91
    %s109 = sphi 0, %s109
    %s111 = sphi 0, %s109
    %s112 = sphi 0, %s111
    %s126 = sphi 0, %s112
    %s130 = sphi 0, %s130
    %s132 = sphi 0, %s130
    %s133 = sphi 0, %s132
    %s147 = sphi 0, %s133
    %s153 = sphi 0, %s155
    %s156 = sphi 0, %s153
    %s157 = sphi 0, %s156
    %s173 = sphi 0, %s157
  $region4: #{small_forward.3} parent=0 // loop_header_branch
    %15 = sbr.rel (%p13) target = $region8
  $region5: #{small_forward.3} parent=0 // loop_body
    %s17 = ssub.s32 %s12, 1
    %s18 = ssub.s32 %s12, 2
    %s19 = sadd.s32 %s12, 1
    %s20 = ssub.s32 %s12, %s19
    %p21 = scmp.eq.s32.totalorder %s20, 0
    %s23 = sadd.s32 %s22, 1
    %s24 = scalar_select %p21, %s22, %s23
    %p27 = pneg %p21
    %p28 = scmp.eq.s32.totalorder %s12, 1
    %p29 = por %p27, %p28
    %p30 = scmp.ne.s32.totalorder %s22, %s25
    %p31 = scmp.eq.s32.totalorder %s12, 0
    %p32 = por %p30, %p31
    %p33 = scmp.ne.s32.totalorder %s22, %s25
    %p34 = scmp.eq.s32.totalorder %s17, 1
    %p35 = por %p33, %p34
    %p36 = scmp.ne.s32.totalorder %s25, %s26
    %p37 = scmp.eq.s32.totalorder %s17, 0
    %p38 = por %p36, %p37
    %p39 = scmp.ne.s32.totalorder %s25, %s26
    %p40 = scmp.eq.s32.totalorder %s18, 1
    %p41 = por %p39, %p40
    %p43 = scmp.ne.s32.totalorder %s26, %s42
    %p44 = scmp.eq.s32.totalorder %s18, 0
    %p45 = por %p43, %p44
    %s47 = sadd.s32 %s46, 1
    %p50 = scmp.eq.s32.totalorder %s12, 1
    %p51 = scmp.ne.s32.totalorder %s46, %s48
    %p52 = scmp.eq.s32.totalorder %s12, 0
    %p53 = por %p51, %p52
    %p54 = scmp.ne.s32.totalorder %s46, %s48
    %p55 = scmp.eq.s32.totalorder %s17, 1
    %p56 = por %p54, %p55
    %p57 = scmp.ne.s32.totalorder %s48, %s49
    %p58 = scmp.eq.s32.totalorder %s17, 0
    %p59 = por %p57, %p58
    %p60 = scmp.ne.s32.totalorder %s48, %s49
    %p61 = scmp.eq.s32.totalorder %s18, 1
    %p62 = por %p60, %p61
    %p64 = scmp.ne.s32.totalorder %s49, %s63
    %p65 = scmp.eq.s32.totalorder %s18, 0
    %p66 = por %p64, %p65
    %s68 = sadd.s32 %s67, 1
    %p71 = scmp.eq.s32.totalorder %s12, 1
    %p72 = scmp.ne.s32.totalorder %s67, %s69
    %p73 = scmp.eq.s32.totalorder %s12, 0
    %p74 = por %p72, %p73
    %p75 = scmp.ne.s32.totalorder %s67, %s69
    %p76 = scmp.eq.s32.totalorder %s17, 1
    %p77 = por %p75, %p76
    %p78 = scmp.ne.s32.totalorder %s69, %s70
    %p79 = scmp.eq.s32.totalorder %s17, 0
    %p80 = por %p78, %p79
    %p81 = scmp.ne.s32.totalorder %s69, %s70
    %p82 = scmp.eq.s32.totalorder %s18, 1
    %p83 = por %p81, %p82
    %p85 = scmp.ne.s32.totalorder %s70, %s84
    %p86 = scmp.eq.s32.totalorder %s18, 0
    %p87 = por %p85, %p86
    %s89 = sadd.s32 %s88, 1
    %p92 = scmp.eq.s32.totalorder %s12, 1
    %p93 = scmp.ne.s32.totalorder %s88, %s90
    %p94 = scmp.eq.s32.totalorder %s12, 0
    %p95 = por %p93, %p94
    %p96 = scmp.ne.s32.totalorder %s88, %s90
    %p97 = scmp.eq.s32.totalorder %s17, 1
    %p98 = por %p96, %p97
    %p99 = scmp.ne.s32.totalorder %s90, %s91
    %p100 = scmp.eq.s32.totalorder %s17, 0
    %p101 = por %p99, %p100
    %p102 = scmp.ne.s32.totalorder %s90, %s91
    %p103 = scmp.eq.s32.totalorder %s18, 1
    %p104 = por %p102, %p103
    %p106 = scmp.ne.s32.totalorder %s91, %s105
    %p107 = scmp.eq.s32.totalorder %s18, 0
    %p108 = por %p106, %p107
    %s110 = sadd.s32 %s109, 1
    %p113 = scmp.eq.s32.totalorder %s12, 1
    %p114 = scmp.ne.s32.totalorder %s109, %s111
    %p115 = scmp.eq.s32.totalorder %s12, 0
    %p116 = por %p114, %p115
    %p117 = scmp.ne.s32.totalorder %s109, %s111
    %p118 = scmp.eq.s32.totalorder %s17, 1
    %p119 = por %p117, %p118
    %p120 = scmp.ne.s32.totalorder %s111, %s112
    %p121 = scmp.eq.s32.totalorder %s17, 0
    %p122 = por %p120, %p121
    %p123 = scmp.ne.s32.totalorder %s111, %s112
    %p124 = scmp.eq.s32.totalorder %s18, 1
    %p125 = por %p123, %p124
    %p127 = scmp.ne.s32.totalorder %s112, %s126
    %p128 = scmp.eq.s32.totalorder %s18, 0
    %p129 = por %p127, %p128
    %s131 = sadd.s32 %s130, 1
    %p134 = scmp.eq.s32.totalorder %s12, 1
    %p135 = scmp.ne.s32.totalorder %s130, %s132
    %p136 = scmp.eq.s32.totalorder %s12, 0
    %p137 = por %p135, %p136
    %p138 = scmp.ne.s32.totalorder %s130, %s132
    %p139 = scmp.eq.s32.totalorder %s17, 1
    %p140 = por %p138, %p139
    %p141 = scmp.ne.s32.totalorder %s132, %s133
    %p142 = scmp.eq.s32.totalorder %s17, 0
    %p143 = por %p141, %p142
    %p144 = scmp.ne.s32.totalorder %s132, %s133
    %p145 = scmp.eq.s32.totalorder %s18, 1
    %p146 = por %p144, %p145
    %p148 = scmp.ne.s32.totalorder %s133, %s147
    %p149 = scmp.eq.s32.totalorder %s18, 0
    %p150 = por %p148, %p149
    %s151 = ssub.s32 %s12, %s19
    %p152 = scmp.eq.s32.totalorder %s151, 0
    %s154 = sadd.s32 %s153, 1
    %s155 = scalar_select %p152, %s153, %s154
    %p158 = pneg %p152
    %p159 = scmp.eq.s32.totalorder %s12, 1
    %p160 = por %p158, %p159
    %p161 = scmp.ne.s32.totalorder %s153, %s156
    %p162 = scmp.eq.s32.totalorder %s12, 0
    %p163 = por %p161, %p162
    %p164 = scmp.ne.s32.totalorder %s153, %s156
    %p165 = scmp.eq.s32.totalorder %s17, 1
    %p166 = por %p164, %p165
    %p167 = scmp.ne.s32.totalorder %s156, %s157
    %p168 = scmp.eq.s32.totalorder %s17, 0
    %p169 = por %p167, %p168
    %p170 = scmp.ne.s32.totalorder %s156, %s157
    %p171 = scmp.eq.s32.totalorder %s18, 1
    %p172 = por %p170, %p171
    %p174 = scmp.ne.s32.totalorder %s157, %s173
    %p175 = scmp.eq.s32.totalorder %s18, 0
    %p176 = por %p174, %p175
    %p177 = scmp.le.s32.totalorder 1, %s12
    %p178 = scmp.lt.s32.totalorder %s12, 3
    %p179 = pnand %p177, %p178
    %p180 = pneg %p179
    // Predicated region
    $region9: #{small_forward.3} parent=5 // pred_check
      _
    $region10: #{small_forward.3} parent=5 // pred_check_branch
      %182 = sbr.rel (%p179) target = $region12
    $region11: #{small_forward.3} parent=5 // pred_region
      %s183 = ssub.s32 %s12, 1
      // Predicated region
      $region13: #{small_forward.3} parent=11 // pred_check
        %p184 = pneg %p59
      $region14: #{small_forward.3} parent=11 // pred_check_branch
        %186 = sbr.rel (%p184) target = $region16
      $region15: #{small_forward.3} parent=11 // pred_region
        _
      $region16: #{small_forward.3} parent=11 // pred_fallthru
        _
      // Predicated region
      $region17: #{small_forward.3} parent=11 // pred_check
        %p187 = pneg %p80
      $region18: #{small_forward.3} parent=11 // pred_check_branch
        %189 = sbr.rel (%p187) target = $region20
      $region19: #{small_forward.3} parent=11 // pred_region
        _
      $region20: #{small_forward.3} parent=11 // pred_fallthru
        _
      // Predicated region
      $region21: #{small_forward.3} parent=11 // pred_check
        %p190 = pneg %p101
      $region22: #{small_forward.3} parent=11 // pred_check_branch
        %192 = sbr.rel (%p190) target = $region24
      $region23: #{small_forward.3} parent=11 // pred_region
        _
      $region24: #{small_forward.3} parent=11 // pred_fallthru
        _
      // Predicated region
      $region25: #{small_forward.3} parent=11 // pred_check
        %p193 = pneg %p122
      $region26: #{small_forward.3} parent=11 // pred_check_branch
        %195 = sbr.rel (%p193) target = $region28
      $region27: #{small_forward.3} parent=11 // pred_region
        _
      $region28: #{small_forward.3} parent=11 // pred_fallthru
        _
      // Predicated region
      $region29: #{small_forward.3} parent=11 // pred_check
        %p196 = pneg %p143
      $region30: #{small_forward.3} parent=11 // pred_check_branch
        %198 = sbr.rel (%p196) target = $region32
      $region31: #{small_forward.3} parent=11 // pred_region
        _
      $region32: #{small_forward.3} parent=11 // pred_fallthru
        _
    $region12: #{small_forward.3} parent=5 // pred_fallthru
      _
    %p199 = scmp.lt.s32.totalorder %s12, 2
    // Predicated region
    $region33: #{small_forward.3} parent=5 // pred_check
      %p200 = pneg %p199
    $region34: #{small_forward.3} parent=5 // pred_check_branch
      %202 = sbr.rel (%p200) target = $region36
    $region35: #{small_forward.3} parent=5 // pred_region
      // Predicated region
      $region37: #{small_forward.3} parent=35 // pred_check
        %p203 = pneg %p32
      $region38: #{small_forward.3} parent=35 // pred_check_branch
        %205 = sbr.rel (%p203) target = $region40
      $region39: #{small_forward.3} parent=35 // pred_region
        %s206 = smul.u32 25, %s12
        %p207 = scmp.lt.s32.totalorder %s206, 49
        %s208 = scalar_select %p207, %s206, 49
        %s209 = smul.addr %s208, 4
        %s210 = scalar_lea.vmem %s0, %s209
        %s211 = smul.u32 25, %s12
      $region40: #{small_forward.3} parent=35 // pred_fallthru
        _
    $region36: #{small_forward.3} parent=5 // pred_fallthru
      _
    %p212 = scmp.le.s32.totalorder 1, %s12
    %p213 = scmp.lt.s32.totalorder %s12, 3
    %p214 = pnand %p212, %p213
    %p215 = pneg %p214
    // Predicated region
    $region41: #{small_forward.3} parent=5 // pred_check
      _
    $region42: #{small_forward.3} parent=5 // pred_check_branch
      %217 = sbr.rel (%p214) target = $region44
    $region43: #{small_forward.3} parent=5 // pred_region
      %s218 = ssub.s32 %s12, 1
      %s219 = smul.u32 25, %s17
      %p220 = scmp.lt.s32.totalorder %s219, 49
      %s221 = scalar_select %p220, %s219, 49
      %s222 = smul.addr %s221, 4
      %s223 = scalar_lea.vmem %s0, %s222
      %p224 = pneg %p38
      %p225 = pneg %p35
      %p226 = pneg %p59
      %p227 = pneg %p56
      %p228 = pneg %p80
      %p229 = pneg %p77
      %p230 = pneg %p101
      %p231 = pneg %p98
      %p232 = pneg %p122
      %p233 = pneg %p119
      %p234 = pneg %p143
      %p235 = pneg %p140
      %p236 = pneg %p169
      %p237 = pneg %p166
      %s238 = smul.u32 25, %s17
      %p239 = scmp.lt.s32.totalorder %s238, 49
      %s240 = scalar_select %p239, %s238, 49
      %s241 = smul.addr %s240, 4
      %s242 = scalar_lea.vmem %s6, %s241
      %s243 = smul.u32 25, %s17
      %p244 = scmp.lt.s32.totalorder %s243, 49
      %s245 = scalar_select %p244, %s243, 49
      %s246 = smul.addr %s245, 4
      %s247 = scalar_lea.vmem %s0, %s246
      %s248 = smul.u32 25, %s17
      %s249 = smul.u32 25, %s17
      %p250 = scmp.lt.s32.totalorder %s249, 49
      %s251 = scalar_select %p250, %s249, 49
      %s252 = smul.addr %s251, 4
      %s253 = scalar_lea.vmem %s6, %s252
      %s254 = smul.u32 25, %s17
      %v256 = vld [vmem:[%s247] sm:$0xf]
      %v257 = vld [vmem:[%s247 + $0x4] sm:$0xf]
      %v258 = vld [vmem:[%s247 + $0x8] sm:$0xf]
      %v259 = vld [vmem:[%s247 + $0xc] sm:$0xf]
      %v260 = vld [vmem:[%s247 + $0x10] sm:$0xf]
      %v261 = vld [vmem:[%s247 + $0x14] sm:$0xf]
      %v262 = vld [vmem:[%s247 + $0x18] sm:$0xf]
      %v263 = vld [vmem:[%s247 + $0x1c] sm:$0xf]
      %v264 = vld [vmem:[%s247 + $0x20] sm:$0xf]
      %v265 = vld [vmem:[%s247 + $0x24] sm:$0xf]
      %v266 = vld [vmem:[%s247 + $0x28] sm:$0xf]
      %v267 = vld [vmem:[%s247 + $0x2c] sm:$0xf]
      %v268 = vld [vmem:[%s247 + $0x30] sm:$0xf]
      %v269 = vld [vmem:[%s247 + $0x34] sm:$0xf]
      %v270 = vld [vmem:[%s247 + $0x38] sm:$0xf]
      %v271 = vld [vmem:[%s247 + $0x3c] sm:$0xf]
      %v272 = vld [vmem:[%s247 + $0x40] sm:$0xf]
      %v273 = vld [vmem:[%s247 + $0x44] sm:$0xf]
      %v274 = vld [vmem:[%s247 + $0x48] sm:$0xf]
      %v275 = vld [vmem:[%s247 + $0x4c] sm:$0xf]
      %v276 = vld [vmem:[%s247 + $0x50] sm:$0xf]
      %v277 = vld [vmem:[%s247 + $0x54] sm:$0xf]
      %v278 = vld [vmem:[%s247 + $0x58] sm:$0xf]
      %v279 = vld [vmem:[%s247 + $0x5c] sm:$0xf]
      %v280 = vld [vmem:[%s247 + $0x60] sm:$0xf]
      %v281 = vld [vmem:[%s1] sm:$0xf]
      %v282 = vld [vmem:[%s1 + $0x4] sm:$0xf]
      %v283 = vld [vmem:[%s1 + $0x8] sm:$0xf]
      %v284 = vld [vmem:[%s1 + $0xc] sm:$0xf]
      %v285 = vld [vmem:[%s1 + $0x10] sm:$0xf]
      %v286 = vld [vmem:[%s1 + $0x14] sm:$0xf]
      %v287 = vld [vmem:[%s1 + $0x18] sm:$0xf]
      %v288 = vld [vmem:[%s1 + $0x1c] sm:$0xf]
      %v289 = vld [vmem:[%s1 + $0x20] sm:$0xf]
      %v290 = vld [vmem:[%s1 + $0x24] sm:$0xf]
      %v291 = vld [vmem:[%s1 + $0x28] sm:$0xf]
      %v292 = vld [vmem:[%s1 + $0x2c] sm:$0xf]
      %v293 = vld [vmem:[%s1 + $0x30] sm:$0xf]
      %v294 = vld [vmem:[%s1 + $0x34] sm:$0xf]
      %v295 = vld [vmem:[%s1 + $0x38] sm:$0xf]
      %v296 = vld [vmem:[%s1 + $0x3c] sm:$0xf]
      %v322 = vunpack.c.l.b16 %v256
      %v323 = vunpack.c.l.b16 %v257
      %v324 = vunpack.c.l.b16 %v258
      %v325 = vunpack.c.l.b16 %v259
      %v326 = vunpack.c.l.b16 %v260
      %v327 = vunpack.c.l.b16 %v261
      %v328 = vunpack.c.l.b16 %v262
      %v329 = vunpack.c.l.b16 %v263
      %v330 = vunpack.c.l.b16 %v264
      %v331 = vunpack.c.l.b16 %v265
      %v332 = vunpack.c.l.b16 %v266
      %v333 = vunpack.c.l.b16 %v267
      %v334 = vunpack.c.l.b16 %v268
      %v335 = vunpack.c.l.b16 %v269
      %v336 = vunpack.c.l.b16 %v270
      %v337 = vunpack.c.l.b16 %v271
      %v338 = vunpack.c.l.b16 %v272
      %v339 = vunpack.c.l.b16 %v273
      %v340 = vunpack.c.l.b16 %v274
      %v341 = vunpack.c.l.b16 %v275
      %v342 = vunpack.c.l.b16 %v276
      %v343 = vunpack.c.l.b16 %v277
      %v344 = vunpack.c.l.b16 %v278
      %v345 = vunpack.c.l.b16 %v279
      %v346 = vunpack.c.l.b16 %v280
      %v347 = vpack.c.b16 %v323, %v322
      %v348 = vpack.c.b16 %v325, %v324
      %v349 = vpack.c.b16 %v327, %v326
      %v350 = vpack.c.b16 %v329, %v328
      %v351 = vpack.c.b16 %v331, %v330
      %v352 = vpack.c.b16 %v333, %v332
      %v353 = vpack.c.b16 %v335, %v334
      %v354 = vpack.c.b16 %v337, %v336
      %v355 = vpack.c.b16 %v339, %v338
      %v356 = vpack.c.b16 %v341, %v340
      %v357 = vpack.c.b16 %v343, %v342
      %v358 = vpack.c.b16 %v345, %v344
      %v359 = vpack.c.b16 %v346, %v346
      %v389 = vunpack.c.l.b16 %v281
      %v390 = vunpack.c.l.b16 %v282
      %v391 = vunpack.c.l.b16 %v283
      %v392 = vunpack.c.l.b16 %v284
      %v393 = vunpack.c.l.b16 %v285
      %v394 = vunpack.c.l.b16 %v286
      %v395 = vunpack.c.l.b16 %v287
      %v396 = vunpack.c.l.b16 %v288
      %v397 = vunpack.c.l.b16 %v289
      %v398 = vunpack.c.l.b16 %v290
      %v399 = vunpack.c.l.b16 %v291
      %v400 = vunpack.c.l.b16 %v292
      %v401 = vunpack.c.l.b16 %v293
      %v402 = vunpack.c.l.b16 %v294
      %v403 = vunpack.c.l.b16 %v295
      %v404 = vunpack.c.l.b16 %v296
      %v405 = vpack.c.b16 %v390, %v389
      %v406 = vpack.c.b16 %v392, %v391
      %v407 = vpack.c.b16 %v394, %v393
      %v408 = vpack.c.b16 %v396, %v395
      %v409 = vpack.c.b16 %v398, %v397
      %v410 = vpack.c.b16 %v400, %v399
      %v411 = vpack.c.b16 %v402, %v401
      %v412 = vpack.c.b16 %v404, %v403
      %421 = vmatprep.subr.bf16.mxu0 0
      %422 = vmatpush1.bf16.msra.mxu0 %v405
      %423 = vmatprep.subr.bf16.mxu0 0
      %424 = vmatpush1.bf16.msra.mxu0 %v406
      %425 = vmatprep.subr.bf16.mxu0 0
      %426 = vmatpush1.bf16.msra.mxu0 %v407
      %427 = vmatprep.subr.bf16.mxu0 0
      %428 = vmatpush1.bf16.msra.mxu0 %v408
      %429 = vmatprep.subr.bf16.mxu0 0
      %430 = vmatpush1.bf16.msra.mxu0 %v409
      %431 = vmatprep.subr.bf16.mxu0 0
      %432 = vmatpush1.bf16.msra.mxu0 %v410
      %433 = vmatprep.subr.bf16.mxu0 0
      %434 = vmatpush1.bf16.msra.mxu0 %v411
      %435 = vmatprep.subr.bf16.mxu0 0
      %436 = vmatpush1.bf16.msra.mxu0 %v412
      %437 = vmatprep.subr.bf16.mxu0 0
      %438 = vmatpush1.bf16.msra.mxu0 0
      %439 = vmatprep.subr.bf16.mxu0 0
      %440 = vmatpush1.bf16.msra.mxu0 0
      %441 = vmatprep.subr.bf16.mxu0 0
      %442 = vmatpush1.bf16.msra.mxu0 0
      %443 = vmatprep.subr.bf16.mxu0 0
      %444 = vmatpush1.bf16.msra.mxu0 0
      %445 = vmatprep.subr.bf16.mxu0 0
      %446 = vmatpush1.bf16.msra.mxu0 0
      %447 = vmatprep.subr.bf16.mxu0 0
      %448 = vmatpush1.bf16.msra.mxu0 0
      %449 = vmatprep.subr.bf16.mxu0 0
      %450 = vmatpush1.bf16.msra.mxu0 0
      %451 = vmatprep.subr.bf16.mxu0 0
      %452 = vmatpush1.bf16.msra.mxu0 0
      %453 = vmatprep.mubr.bf16.mxu0 0
      %454 = vmatmul.mubr.bf16.gmra.mrb[0].mxu0 %v347
      %v455 = vpop.f32.mrb[0].mxu0
      %v456 = vadd.f32 0.0, %v455
      %v457 = vpop.f32.mrb[0].mxu0
      %v458 = vpop.f32.mrb[0].mxu0
      %v459 = vadd.f32 0.0, %v458
      %v460 = vpop.f32.mrb[0].mxu0
      %461 = vmatprep.mubr.bf16.mxu0 0
      %462 = vmatmul.mubr.bf16.gmra.mrb[0].mxu0 %v348
      %v463 = vpop.f32.mrb[0].mxu0
      %v464 = vadd.f32 0.0, %v463
      %v465 = vpop.f32.mrb[0].mxu0
      %v466 = vpop.f32.mrb[0].mxu0
      %v467 = vadd.f32 0.0, %v466
      %v468 = vpop.f32.mrb[0].mxu0
      %469 = vmatprep.mubr.bf16.mxu0 0
      %470 = vmatmul.mubr.bf16.gmra.mrb[0].mxu0 %v349
      %v471 = vpop.f32.mrb[0].mxu0
      %v472 = vadd.f32 0.0, %v471
      %v473 = vpop.f32.mrb[0].mxu0
      %v474 = vpop.f32.mrb[0].mxu0
      %v475 = vadd.f32 0.0, %v474
      %v476 = vpop.f32.mrb[0].mxu0
      %477 = vmatprep.mubr.bf16.mxu0 0
      %478 = vmatmul.mubr.bf16.gmra.mrb[0].mxu0 %v350
      %v479 = vpop.f32.mrb[0].mxu0
      %v480 = vadd.f32 0.0, %v479
      %v481 = vpop.f32.mrb[0].mxu0
      %v482 = vpop.f32.mrb[0].mxu0
      %v483 = vadd.f32 0.0, %v482
      %v484 = vpop.f32.mrb[0].mxu0
      %485 = vmatprep.mubr.bf16.mxu0 0
      %486 = vmatmul.mubr.bf16.gmra.mrb[0].mxu0 %v351
      %v487 = vpop.f32.mrb[0].mxu0
      %v488 = vadd.f32 0.0, %v487
      %v489 = vpop.f32.mrb[0].mxu0
      %v490 = vpop.f32.mrb[0].mxu0
      %v491 = vadd.f32 0.0, %v490
      %v492 = vpop.f32.mrb[0].mxu0
      %493 = vmatprep.mubr.bf16.mxu0 0
      %494 = vmatmul.mubr.bf16.gmra.mrb[0].mxu0 %v352
      %v495 = vpop.f32.mrb[0].mxu0
      %v496 = vadd.f32 0.0, %v495
      %v497 = vpop.f32.mrb[0].mxu0
      %v498 = vpop.f32.mrb[0].mxu0
      %v499 = vadd.f32 0.0, %v498
      %v500 = vpop.f32.mrb[0].mxu0
      %501 = vmatprep.mubr.bf16.mxu0 0
      %502 = vmatmul.mubr.bf16.gmra.mrb[0].mxu0 %v353
      %v503 = vpop.f32.mrb[0].mxu0
      %v504 = vadd.f32 0.0, %v503
      %v505 = vpop.f32.mrb[0].mxu0
      %v506 = vpop.f32.mrb[0].mxu0
      %v507 = vadd.f32 0.0, %v506
      %v508 = vpop.f32.mrb[0].mxu0
      %509 = vmatprep.mubr.bf16.mxu0 0
      %510 = vmatmul.mubr.bf16.gmra.mrb[0].mxu0 %v354
      %v511 = vpop.f32.mrb[0].mxu0
      %v512 = vadd.f32 0.0, %v511
      %v513 = vpop.f32.mrb[0].mxu0
      %v514 = vpop.f32.mrb[0].mxu0
      %v515 = vadd.f32 0.0, %v514
      %v516 = vpop.f32.mrb[0].mxu0
      %517 = vmatprep.mubr.bf16.mxu0 0
      %518 = vmatmul.mubr.bf16.gmra.mrb[0].mxu0 %v355
      %v519 = vpop.f32.mrb[0].mxu0
      %v520 = vadd.f32 0.0, %v519
      %v521 = vpop.f32.mrb[0].mxu0
      %v522 = vpop.f32.mrb[0].mxu0
      %v523 = vadd.f32 0.0, %v522
      %v524 = vpop.f32.mrb[0].mxu0
      %525 = vmatprep.mubr.bf16.mxu0 0
      %526 = vmatmul.mubr.bf16.gmra.mrb[0].mxu0 %v356
      %v527 = vpop.f32.mrb[0].mxu0
      %v528 = vadd.f32 0.0, %v527
      %v529 = vpop.f32.mrb[0].mxu0
      %v530 = vpop.f32.mrb[0].mxu0
      %v531 = vadd.f32 0.0, %v530
      %v532 = vpop.f32.mrb[0].mxu0
      %533 = vmatprep.mubr.bf16.mxu0 0
      %534 = vmatmul.mubr.bf16.gmra.mrb[0].mxu0 %v357
      %v535 = vpop.f32.mrb[0].mxu0
      %v536 = vadd.f32 0.0, %v535
      %v537 = vpop.f32.mrb[0].mxu0
      %v538 = vpop.f32.mrb[0].mxu0
      %v539 = vadd.f32 0.0, %v538
      %v540 = vpop.f32.mrb[0].mxu0
      %541 = vmatprep.mubr.bf16.mxu0 0
      %542 = vmatmul.mubr.bf16.gmra.mrb[0].mxu0 %v358
      %v543 = vpop.f32.mrb[0].mxu0
      %v544 = vadd.f32 0.0, %v543
      %v545 = vpop.f32.mrb[0].mxu0
      %v546 = vpop.f32.mrb[0].mxu0
      %v547 = vadd.f32 0.0, %v546
      %v548 = vpop.f32.mrb[0].mxu0
      %549 = vmatprep.mubr.bf16.mxu0 0
      %550 = vmatmul.mubr.bf16.gmra.mrb[0].mxu0 %v359
      %v551 = vpop.f32.mrb[0].mxu0
      %v552 = vadd.f32 0.0, %v551
      %v553 = vpop.f32.mrb[0].mxu0
      %v554 = vpop.f32.mrb[0].mxu0
      %v555 = vpop.f32.mrb[0].mxu0
      %556 = vdwg.mxu0
      %v557 = vld [vmem:[%s2] sm:$0xf]
      %v558 = vld [vmem:[%s2 + $0x4] sm:$0xf]
      %v559 = vld [vmem:[%s2 + $0x8] sm:$0xf]
      %v560 = vld [vmem:[%s2 + $0xc] sm:$0xf]
      %v561 = vld [vmem:[%s2 + $0x10] sm:$0xf]
      %v562 = vld [vmem:[%s2 + $0x14] sm:$0xf]
      %v563 = vld [vmem:[%s2 + $0x18] sm:$0xf]
      %v564 = vld [vmem:[%s2 + $0x1c] sm:$0xf]
      %v565 = vld [vmem:[%s2 + $0x20] sm:$0xf]
      %v566 = vld [vmem:[%s2 + $0x24] sm:$0xf]
      %v567 = vld [vmem:[%s2 + $0x28] sm:$0xf]
      %v568 = vld [vmem:[%s2 + $0x2c] sm:$0xf]
      %v569 = vld [vmem:[%s2 + $0x30] sm:$0xf]
      %v570 = vld [vmem:[%s2 + $0x34] sm:$0xf]
      %v571 = vld [vmem:[%s2 + $0x38] sm:$0xf]
      %v572 = vld [vmem:[%s2 + $0x3c] sm:$0xf]
      %v589 = vunpack.c.l.b16 %v557
      %v590 = vunpack.c.l.b16 %v558
      %v591 = vunpack.c.l.b16 %v559
      %v592 = vunpack.c.l.b16 %v560
      %v593 = vunpack.c.l.b16 %v561
      %v594 = vunpack.c.l.b16 %v562
      %v595 = vunpack.c.l.b16 %v563
      %v596 = vunpack.c.l.b16 %v564
      %v597 = vunpack.c.l.b16 %v565
      %v598 = vunpack.c.l.b16 %v566
      %v599 = vunpack.c.l.b16 %v567
      %v600 = vunpack.c.l.b16 %v568
      %v601 = vunpack.c.l.b16 %v569
      %v602 = vunpack.c.l.b16 %v570
      %v603 = vunpack.c.l.b16 %v571
      %v604 = vunpack.c.l.b16 %v572
      %v605 = vpack.c.b16 %v590, %v589
      %v606 = vpack.c.b16 %v592, %v591
      %v607 = vpack.c.b16 %v594, %v593
      %v608 = vpack.c.b16 %v596, %v595
      %v609 = vpack.c.b16 %v598, %v597
      %v610 = vpack.c.b16 %v600, %v599
      %v611 = vpack.c.b16 %v602, %v601
      %v612 = vpack.c.b16 %v604, %v603
      %621 = vmatprep.subr.bf16.mxu0 0
      %622 = vmatpush1.bf16.msra.mxu0 %v605
      %623 = vmatprep.subr.bf16.mxu0 0
      %624 = vmatpush1.bf16.msra.mxu0 %v606
      %625 = vmatprep.subr.bf16.mxu0 0
      %626 = vmatpush1.bf16.msra.mxu0 %v607
      %627 = vmatprep.subr.bf16.mxu0 0
      %628 = vmatpush1.bf16.msra.mxu0 %v608
      %629 = vmatprep.subr.bf16.mxu0 0
      %630 = vmatpush1.bf16.msra.mxu0 %v609
      %631 = vmatprep.subr.bf16.mxu0 0
      %632 = vmatpush1.bf16.msra.mxu0 %v610
      %633 = vmatprep.subr.bf16.mxu0 0
      %634 = vmatpush1.bf16.msra.mxu0 %v611
      %635 = vmatprep.subr.bf16.mxu0 0
      %636 = vmatpush1.bf16.msra.mxu0 %v612
      %637 = vmatprep.subr.bf16.mxu0 0
      %638 = vmatpush1.bf16.msra.mxu0 0
      %639 = vmatprep.subr.bf16.mxu0 0
      %640 = vmatpush1.bf16.msra.mxu0 0
      %641 = vmatprep.subr.bf16.mxu0 0
      %642 = vmatpush1.bf16.msra.mxu0 0
      %643 = vmatprep.subr.bf16.mxu0 0
      %644 = vmatpush1.bf16.msra.mxu0 0
      %645 = vmatprep.subr.bf16.mxu0 0
      %646 = vmatpush1.bf16.msra.mxu0 0
      %647 = vmatprep.subr.bf16.mxu0 0
      %648 = vmatpush1.bf16.msra.mxu0 0
      %649 = vmatprep.subr.bf16.mxu0 0
      %650 = vmatpush1.bf16.msra.mxu0 0
      %651 = vmatprep.subr.bf16.mxu0 0
      %652 = vmatpush1.bf16.msra.mxu0 0
      %653 = vmatprep.mubr.bf16.mxu0 0
      %654 = vmatmul.mubr.bf16.gmra.mrb[0].mxu0 %v347
      %v655 = vpop.f32.mrb[0].mxu0
      %v656 = vadd.f32 0.0, %v655
      %v657 = vpop.f32.mrb[0].mxu0
      %v658 = vpop.f32.mrb[0].mxu0
      %v659 = vadd.f32 0.0, %v658
      %v660 = vpop.f32.mrb[0].mxu0
      %661 = vmatprep.mubr.bf16.mxu0 0
      %662 = vmatmul.mubr.bf16.gmra.mrb[0].mxu0 %v348
      %v663 = vpop.f32.mrb[0].mxu0
      %v664 = vadd.f32 0.0, %v663
      %v665 = vpop.f32.mrb[0].mxu0
      %v666 = vpop.f32.mrb[0].mxu0
      %v667 = vadd.f32 0.0, %v666
      %v668 = vpop.f32.mrb[0].mxu0
      %669 = vmatprep.mubr.bf16.mxu0 0
      %670 = vmatmul.mubr.bf16.gmra.mrb[0].mxu0 %v349
      %v671 = vpop.f32.mrb[0].mxu0
      %v672 = vadd.f32 0.0, %v671
      %v673 = vpop.f32.mrb[0].mxu0
      %v674 = vpop.f32.mrb[0].mxu0
      %v675 = vadd.f32 0.0, %v674
      %v676 = vpop.f32.mrb[0].mxu0
      %677 = vmatprep.mubr.bf16.mxu0 0
      %678 = vmatmul.mubr.bf16.gmra.mrb[0].mxu0 %v350
      %v679 = vpop.f32.mrb[0].mxu0
      %v680 = vadd.f32 0.0, %v679
      %v681 = vpop.f32.mrb[0].mxu0
      %v682 = vpop.f32.mrb[0].mxu0
      %v683 = vadd.f32 0.0, %v682
      %v684 = vpop.f32.mrb[0].mxu0
      %685 = vmatprep.mubr.bf16.mxu0 0
      %686 = vmatmul.mubr.bf16.gmra.mrb[0].mxu0 %v351
      %v687 = vpop.f32.mrb[0].mxu0
      %v688 = vadd.f32 0.0, %v687
      %v689 = vpop.f32.mrb[0].mxu0
      %v690 = vpop.f32.mrb[0].mxu0
      %v691 = vadd.f32 0.0, %v690
      %v692 = vpop.f32.mrb[0].mxu0
      %693 = vmatprep.mubr.bf16.mxu0 0
      %694 = vmatmul.mubr.bf16.gmra.mrb[0].mxu0 %v352
      %v695 = vpop.f32.mrb[0].mxu0
      %v696 = vadd.f32 0.0, %v695
      %v697 = vpop.f32.mrb[0].mxu0
      %v698 = vpop.f32.mrb[0].mxu0
      %v699 = vadd.f32 0.0, %v698
      %v700 = vpop.f32.mrb[0].mxu0
      %701 = vmatprep.mubr.bf16.mxu0 0
      %702 = vmatmul.mubr.bf16.gmra.mrb[0].mxu0 %v353
      %v703 = vpop.f32.mrb[0].mxu0
      %v704 = vadd.f32 0.0, %v703
      %v705 = vpop.f32.mrb[0].mxu0
      %v706 = vpop.f32.mrb[0].mxu0
      %v707 = vadd.f32 0.0, %v706
      %v708 = vpop.f32.mrb[0].mxu0
      %709 = vmatprep.mubr.bf16.mxu0 0
      %710 = vmatmul.mubr.bf16.gmra.mrb[0].mxu0 %v354
      %v711 = vpop.f32.mrb[0].mxu0
      %v712 = vadd.f32 0.0, %v711
      %v713 = vpop.f32.mrb[0].mxu0
      %v714 = vpop.f32.mrb[0].mxu0
      %v715 = vadd.f32 0.0, %v714
      %v716 = vpop.f32.mrb[0].mxu0
      %717 = vmatprep.mubr.bf16.mxu0 0
      %718 = vmatmul.mubr.bf16.gmra.mrb[0].mxu0 %v355
      %v719 = vpop.f32.mrb[0].mxu0
      %v720 = vadd.f32 0.0, %v719
      %v721 = vpop.f32.mrb[0].mxu0
      %v722 = vpop.f32.mrb[0].mxu0
      %v723 = vadd.f32 0.0, %v722
      %v724 = vpop.f32.mrb[0].mxu0
      %725 = vmatprep.mubr.bf16.mxu0 0
      %726 = vmatmul.mubr.bf16.gmra.mrb[0].mxu0 %v356
      %v727 = vpop.f32.mrb[0].mxu0
      %v728 = vadd.f32 0.0, %v727
      %v729 = vpop.f32.mrb[0].mxu0
      %v730 = vpop.f32.mrb[0].mxu0
      %v731 = vadd.f32 0.0, %v730
      %v732 = vpop.f32.mrb[0].mxu0
      %733 = vmatprep.mubr.bf16.mxu0 0
      %734 = vmatmul.mubr.bf16.gmra.mrb[0].mxu0 %v357
      %v735 = vpop.f32.mrb[0].mxu0
      %v736 = vadd.f32 0.0, %v735
      %v737 = vpop.f32.mrb[0].mxu0
      %v738 = vpop.f32.mrb[0].mxu0
      %v739 = vadd.f32 0.0, %v738
      %v740 = vpop.f32.mrb[0].mxu0
      %741 = vmatprep.mubr.bf16.mxu0 0
      %742 = vmatmul.mubr.bf16.gmra.mrb[0].mxu0 %v358
      %v743 = vpop.f32.mrb[0].mxu0
      %v744 = vadd.f32 0.0, %v743
      %v745 = vpop.f32.mrb[0].mxu0
      %v746 = vpop.f32.mrb[0].mxu0
      %v747 = vadd.f32 0.0, %v746
      %v748 = vpop.f32.mrb[0].mxu0
      %749 = vmatprep.mubr.bf16.mxu0 0
      %750 = vmatmul.mubr.bf16.gmra.mrb[0].mxu0 %v359
      %v751 = vpop.f32.mrb[0].mxu0
      %v752 = vadd.f32 0.0, %v751
      %v753 = vpop.f32.mrb[0].mxu0
      %v754 = vpop.f32.mrb[0].mxu0
      %v755 = vpop.f32.mrb[0].mxu0
      %756 = vdwg.mxu0
      %v757 = vmax.f32 %v456, %v656
      %v758 = vmax.f32 %v459, %v659
      %v759 = vmax.f32 %v464, %v664
      %v760 = vmax.f32 %v467, %v667
      %v761 = vmax.f32 %v472, %v672
      %v762 = vmax.f32 %v475, %v675
      %v763 = vmax.f32 %v480, %v680
      %v764 = vmax.f32 %v483, %v683
      %v765 = vmax.f32 %v488, %v688
      %v766 = vmax.f32 %v491, %v691
      %v767 = vmax.f32 %v496, %v696
      %v768 = vmax.f32 %v499, %v699
      %v769 = vmax.f32 %v504, %v704
      %v770 = vmax.f32 %v507, %v707
      %v771 = vmax.f32 %v512, %v712
      %v772 = vmax.f32 %v515, %v715
      %v773 = vmax.f32 %v520, %v720
      %v774 = vmax.f32 %v523, %v723
      %v775 = vmax.f32 %v528, %v728
      %v776 = vmax.f32 %v531, %v731
      %v777 = vmax.f32 %v536, %v736
      %v778 = vmax.f32 %v539, %v739
      %v779 = vmax.f32 %v544, %v744
      %v780 = vmax.f32 %v547, %v747
      %v781 = vmax.f32 %v552, %v752
      %v782 = vld [vmem:[%s3] sm:$0xf]
      %v783 = vld [vmem:[%s3 + $0x4] sm:$0xf]
      %v784 = vld [vmem:[%s3 + $0x8] sm:$0xf]
      %v785 = vld [vmem:[%s3 + $0xc] sm:$0xf]
      %v786 = vld [vmem:[%s3 + $0x10] sm:$0xf]
      %v787 = vld [vmem:[%s3 + $0x14] sm:$0xf]
      %v788 = vld [vmem:[%s3 + $0x18] sm:$0xf]
      %v789 = vld [vmem:[%s3 + $0x1c] sm:$0xf]
      %v790 = vld [vmem:[%s3 + $0x20] sm:$0xf]
      %v791 = vld [vmem:[%s3 + $0x24] sm:$0xf]
      %v792 = vld [vmem:[%s3 + $0x28] sm:$0xf]
      %v793 = vld [vmem:[%s3 + $0x2c] sm:$0xf]
      %v794 = vld [vmem:[%s3 + $0x30] sm:$0xf]
      %v795 = vld [vmem:[%s3 + $0x34] sm:$0xf]
      %v796 = vld [vmem:[%s3 + $0x38] sm:$0xf]
      %v797 = vld [vmem:[%s3 + $0x3c] sm:$0xf]
      %v814 = vunpack.c.l.b16 %v782
      %v815 = vunpack.c.l.b16 %v783
      %v816 = vunpack.c.l.b16 %v784
      %v817 = vunpack.c.l.b16 %v785
      %v818 = vunpack.c.l.b16 %v786
      %v819 = vunpack.c.l.b16 %v787
      %v820 = vunpack.c.l.b16 %v788
      %v821 = vunpack.c.l.b16 %v789
      %v822 = vunpack.c.l.b16 %v790
      %v823 = vunpack.c.l.b16 %v791
      %v824 = vunpack.c.l.b16 %v792
      %v825 = vunpack.c.l.b16 %v793
      %v826 = vunpack.c.l.b16 %v794
      %v827 = vunpack.c.l.b16 %v795
      %v828 = vunpack.c.l.b16 %v796
      %v829 = vunpack.c.l.b16 %v797
      %v830 = vpack.c.b16 %v815, %v814
      %v831 = vpack.c.b16 %v817, %v816
      %v832 = vpack.c.b16 %v819, %v818
      %v833 = vpack.c.b16 %v821, %v820
      %v834 = vpack.c.b16 %v823, %v822
      %v835 = vpack.c.b16 %v825, %v824
      %v836 = vpack.c.b16 %v827, %v826
      %v837 = vpack.c.b16 %v829, %v828
      %846 = vmatprep.subr.bf16.mxu0 0
      %847 = vmatpush1.bf16.msra.mxu0 %v830
      %848 = vmatprep.subr.bf16.mxu0 0
      %849 = vmatpush1.bf16.msra.mxu0 %v831
      %850 = vmatprep.subr.bf16.mxu0 0
      %851 = vmatpush1.bf16.msra.mxu0 %v832
      %852 = vmatprep.subr.bf16.mxu0 0
      %853 = vmatpush1.bf16.msra.mxu0 %v833
      %854 = vmatprep.subr.bf16.mxu0 0
      %855 = vmatpush1.bf16.msra.mxu0 %v834
      %856 = vmatprep.subr.bf16.mxu0 0
      %857 = vmatpush1.bf16.msra.mxu0 %v835
      %858 = vmatprep.subr.bf16.mxu0 0
      %859 = vmatpush1.bf16.msra.mxu0 %v836
      %860 = vmatprep.subr.bf16.mxu0 0
      %861 = vmatpush1.bf16.msra.mxu0 %v837
      %862 = vmatprep.subr.bf16.mxu0 0
      %863 = vmatpush1.bf16.msra.mxu0 0
      %864 = vmatprep.subr.bf16.mxu0 0
      %865 = vmatpush1.bf16.msra.mxu0 0
      %866 = vmatprep.subr.bf16.mxu0 0
      %867 = vmatpush1.bf16.msra.mxu0 0
      %868 = vmatprep.subr.bf16.mxu0 0
      %869 = vmatpush1.bf16.msra.mxu0 0
      %870 = vmatprep.subr.bf16.mxu0 0
      %871 = vmatpush1.bf16.msra.mxu0 0
      %872 = vmatprep.subr.bf16.mxu0 0
      %873 = vmatpush1.bf16.msra.mxu0 0
      %874 = vmatprep.subr.bf16.mxu0 0
      %875 = vmatpush1.bf16.msra.mxu0 0
      %876 = vmatprep.subr.bf16.mxu0 0
      %877 = vmatpush1.bf16.msra.mxu0 0
      %878 = vmatprep.mubr.bf16.mxu0 0
      %879 = vmatmul.mubr.bf16.gmra.mrb[0].mxu0 %v347
      %v880 = vpop.f32.mrb[0].mxu0
      %v881 = vadd.f32 0.0, %v880
      %v882 = vpop.f32.mrb[0].mxu0
      %v883 = vpop.f32.mrb[0].mxu0
      %v884 = vadd.f32 0.0, %v883
      %v885 = vpop.f32.mrb[0].mxu0
      %886 = vmatprep.mubr.bf16.mxu0 0
      %887 = vmatmul.mubr.bf16.gmra.mrb[0].mxu0 %v348
      %v888 = vpop.f32.mrb[0].mxu0
      %v889 = vadd.f32 0.0, %v888
      %v890 = vpop.f32.mrb[0].mxu0
      %v891 = vpop.f32.mrb[0].mxu0
      %v892 = vadd.f32 0.0, %v891
      %v893 = vpop.f32.mrb[0].mxu0
      %894 = vmatprep.mubr.bf16.mxu0 0
      %895 = vmatmul.mubr.bf16.gmra.mrb[0].mxu0 %v349
      %v896 = vpop.f32.mrb[0].mxu0
      %v897 = vadd.f32 0.0, %v896
      %v898 = vpop.f32.mrb[0].mxu0
      %v899 = vpop.f32.mrb[0].mxu0
      %v900 = vadd.f32 0.0, %v899
      %v901 = vpop.f32.mrb[0].mxu0
      %902 = vmatprep.mubr.bf16.mxu0 0
      %903 = vmatmul.mubr.bf16.gmra.mrb[0].mxu0 %v350
      %v904 = vpop.f32.mrb[0].mxu0
      %v905 = vadd.f32 0.0, %v904
      %v906 = vpop.f32.mrb[0].mxu0
      %v907 = vpop.f32.mrb[0].mxu0
      %v908 = vadd.f32 0.0, %v907
      %v909 = vpop.f32.mrb[0].mxu0
      %910 = vmatprep.mubr.bf16.mxu0 0
      %911 = vmatmul.mubr.bf16.gmra.mrb[0].mxu0 %v351
      %v912 = vpop.f32.mrb[0].mxu0
      %v913 = vadd.f32 0.0, %v912
      %v914 = vpop.f32.mrb[0].mxu0
      %v915 = vpop.f32.mrb[0].mxu0
      %v916 = vadd.f32 0.0, %v915
      %v917 = vpop.f32.mrb[0].mxu0
      %918 = vmatprep.mubr.bf16.mxu0 0
      %919 = vmatmul.mubr.bf16.gmra.mrb[0].mxu0 %v352
      %v920 = vpop.f32.mrb[0].mxu0
      %v921 = vadd.f32 0.0, %v920
      %v922 = vpop.f32.mrb[0].mxu0
      %v923 = vpop.f32.mrb[0].mxu0
      %v924 = vadd.f32 0.0, %v923
      %v925 = vpop.f32.mrb[0].mxu0
      %926 = vmatprep.mubr.bf16.mxu0 0
      %927 = vmatmul.mubr.bf16.gmra.mrb[0].mxu0 %v353
      %v928 = vpop.f32.mrb[0].mxu0
      %v929 = vadd.f32 0.0, %v928
      %v930 = vpop.f32.mrb[0].mxu0
      %v931 = vpop.f32.mrb[0].mxu0
      %v932 = vadd.f32 0.0, %v931
      %v933 = vpop.f32.mrb[0].mxu0
      %934 = vmatprep.mubr.bf16.mxu0 0
      %935 = vmatmul.mubr.bf16.gmra.mrb[0].mxu0 %v354
      %v936 = vpop.f32.mrb[0].mxu0
      %v937 = vadd.f32 0.0, %v936
      %v938 = vpop.f32.mrb[0].mxu0
      %v939 = vpop.f32.mrb[0].mxu0
      %v940 = vadd.f32 0.0, %v939
      %v941 = vpop.f32.mrb[0].mxu0
      %942 = vmatprep.mubr.bf16.mxu0 0
      %943 = vmatmul.mubr.bf16.gmra.mrb[0].mxu0 %v355
      %v944 = vpop.f32.mrb[0].mxu0
      %v945 = vadd.f32 0.0, %v944
      %v946 = vpop.f32.mrb[0].mxu0
      %v947 = vpop.f32.mrb[0].mxu0
      %v948 = vadd.f32 0.0, %v947
      %v949 = vpop.f32.mrb[0].mxu0
      %950 = vmatprep.mubr.bf16.mxu0 0
      %951 = vmatmul.mubr.bf16.gmra.mrb[0].mxu0 %v356
      %v952 = vpop.f32.mrb[0].mxu0
      %v953 = vadd.f32 0.0, %v952
      %v954 = vpop.f32.mrb[0].mxu0
      %v955 = vpop.f32.mrb[0].mxu0
      %v956 = vadd.f32 0.0, %v955
      %v957 = vpop.f32.mrb[0].mxu0
      %958 = vmatprep.mubr.bf16.mxu0 0
      %959 = vmatmul.mubr.bf16.gmra.mrb[0].mxu0 %v357
      %v960 = vpop.f32.mrb[0].mxu0
      %v961 = vadd.f32 0.0, %v960
      %v962 = vpop.f32.mrb[0].mxu0
      %v963 = vpop.f32.mrb[0].mxu0
      %v964 = vadd.f32 0.0, %v963
      %v965 = vpop.f32.mrb[0].mxu0
      %966 = vmatprep.mubr.bf16.mxu0 0
      %967 = vmatmul.mubr.bf16.gmra.mrb[0].mxu0 %v358
      %v968 = vpop.f32.mrb[0].mxu0
      %v969 = vadd.f32 0.0, %v968
      %v970 = vpop.f32.mrb[0].mxu0
      %v971 = vpop.f32.mrb[0].mxu0
      %v972 = vadd.f32 0.0, %v971
      %v973 = vpop.f32.mrb[0].mxu0
      %974 = vmatprep.mubr.bf16.mxu0 0
      %975 = vmatmul.mubr.bf16.gmra.mrb[0].mxu0 %v359
      %v976 = vpop.f32.mrb[0].mxu0
      %v977 = vadd.f32 0.0, %v976
      %v978 = vpop.f32.mrb[0].mxu0
      %v979 = vpop.f32.mrb[0].mxu0
      %v980 = vpop.f32.mrb[0].mxu0
      %981 = vdwg.mxu0
      %v982 = vmax.f32 %v757, %v881
      %v983 = vmax.f32 %v758, %v884
      %v984 = vmax.f32 %v759, %v889
      %v985 = vmax.f32 %v760, %v892
      %v986 = vmax.f32 %v761, %v897
      %v987 = vmax.f32 %v762, %v900
      %v988 = vmax.f32 %v763, %v905
      %v989 = vmax.f32 %v764, %v908
      %v990 = vmax.f32 %v765, %v913
      %v991 = vmax.f32 %v766, %v916
      %v992 = vmax.f32 %v767, %v921
      %v993 = vmax.f32 %v768, %v924
      %v994 = vmax.f32 %v769, %v929
      %v995 = vmax.f32 %v770, %v932
      %v996 = vmax.f32 %v771, %v937
      %v997 = vmax.f32 %v772, %v940
      %v998 = vmax.f32 %v773, %v945
      %v999 = vmax.f32 %v774, %v948
      %v1000 = vmax.f32 %v775, %v953
      %v1001 = vmax.f32 %v776, %v956
      %v1002 = vmax.f32 %v777, %v961
      %v1003 = vmax.f32 %v778, %v964
      %v1004 = vmax.f32 %v779, %v969
      %v1005 = vmax.f32 %v780, %v972
      %v1006 = vmax.f32 %v781, %v977
      %v1007 = vld [vmem:[%s4] sm:$0xf]
      %v1008 = vld [vmem:[%s4 + $0x4] sm:$0xf]
      %v1009 = vld [vmem:[%s4 + $0x8] sm:$0xf]
      %v1010 = vld [vmem:[%s4 + $0xc] sm:$0xf]
      %v1011 = vld [vmem:[%s4 + $0x10] sm:$0xf]
      %v1012 = vld [vmem:[%s4 + $0x14] sm:$0xf]
      %v1013 = vld [vmem:[%s4 + $0x18] sm:$0xf]
      %v1014 = vld [vmem:[%s4 + $0x1c] sm:$0xf]
      %v1015 = vld [vmem:[%s4 + $0x20] sm:$0xf]
      %v1016 = vld [vmem:[%s4 + $0x24] sm:$0xf]
      %v1017 = vld [vmem:[%s4 + $0x28] sm:$0xf]
      %v1018 = vld [vmem:[%s4 + $0x2c] sm:$0xf]
      %v1019 = vld [vmem:[%s4 + $0x30] sm:$0xf]
      %v1020 = vld [vmem:[%s4 + $0x34] sm:$0xf]
      %v1021 = vld [vmem:[%s4 + $0x38] sm:$0xf]
      %v1022 = vld [vmem:[%s4 + $0x3c] sm:$0xf]
      %v1039 = vunpack.c.l.b16 %v1007
      %v1040 = vunpack.c.l.b16 %v1008
      %v1041 = vunpack.c.l.b16 %v1009
      %v1042 = vunpack.c.l.b16 %v1010
      %v1043 = vunpack.c.l.b16 %v1011
      %v1044 = vunpack.c.l.b16 %v1012
      %v1045 = vunpack.c.l.b16 %v1013
      %v1046 = vunpack.c.l.b16 %v1014
      %v1047 = vunpack.c.l.b16 %v1015
      %v1048 = vunpack.c.l.b16 %v1016
      %v1049 = vunpack.c.l.b16 %v1017
      %v1050 = vunpack.c.l.b16 %v1018
      %v1051 = vunpack.c.l.b16 %v1019
      %v1052 = vunpack.c.l.b16 %v1020
      %v1053 = vunpack.c.l.b16 %v1021
      %v1054 = vunpack.c.l.b16 %v1022
      %v1055 = vpack.c.b16 %v1040, %v1039
      %v1056 = vpack.c.b16 %v1042, %v1041
      %v1057 = vpack.c.b16 %v1044, %v1043
      %v1058 = vpack.c.b16 %v1046, %v1045
      %v1059 = vpack.c.b16 %v1048, %v1047
      %v1060 = vpack.c.b16 %v1050, %v1049
      %v1061 = vpack.c.b16 %v1052, %v1051
      %v1062 = vpack.c.b16 %v1054, %v1053
      %1071 = vmatprep.subr.bf16.mxu0 0
      %1072 = vmatpush1.bf16.msra.mxu0 %v1055
      %1073 = vmatprep.subr.bf16.mxu0 0
      %1074 = vmatpush1.bf16.msra.mxu0 %v1056
      %1075 = vmatprep.subr.bf16.mxu0 0
      %1076 = vmatpush1.bf16.msra.mxu0 %v1057
      %1077 = vmatprep.subr.bf16.mxu0 0
      %1078 = vmatpush1.bf16.msra.mxu0 %v1058
      %1079 = vmatprep.subr.bf16.mxu0 0
      %1080 = vmatpush1.bf16.msra.mxu0 %v1059
      %1081 = vmatprep.subr.bf16.mxu0 0
      %1082 = vmatpush1.bf16.msra.mxu0 %v1060
      %1083 = vmatprep.subr.bf16.mxu0 0
      %1084 = vmatpush1.bf16.msra.mxu0 %v1061
      %1085 = vmatprep.subr.bf16.mxu0 0
      %1086 = vmatpush1.bf16.msra.mxu0 %v1062
      %1087 = vmatprep.subr.bf16.mxu0 0
      %1088 = vmatpush1.bf16.msra.mxu0 0
      %1089 = vmatprep.subr.bf16.mxu0 0
      %1090 = vmatpush1.bf16.msra.mxu0 0
      %1091 = vmatprep.subr.bf16.mxu0 0
      %1092 = vmatpush1.bf16.msra.mxu0 0
      %1093 = vmatprep.subr.bf16.mxu0 0
      %1094 = vmatpush1.bf16.msra.mxu0 0
      %1095 = vmatprep.subr.bf16.mxu0 0
      %1096 = vmatpush1.bf16.msra.mxu0 0
      %1097 = vmatprep.subr.bf16.mxu0 0
      %1098 = vmatpush1.bf16.msra.mxu0 0
      %1099 = vmatprep.subr.bf16.mxu0 0
      %1100 = vmatpush1.bf16.msra.mxu0 0
      %1101 = vmatprep.subr.bf16.mxu0 0
      %1102 = vmatpush1.bf16.msra.mxu0 0
      %1103 = vmatprep.mubr.bf16.mxu0 0
      %1104 = vmatmul.mubr.bf16.gmra.mrb[0].mxu0 %v347
      %v1105 = vpop.f32.mrb[0].mxu0
      %v1106 = vadd.f32 0.0, %v1105
      %v1107 = vpop.f32.mrb[0].mxu0
      %v1108 = vpop.f32.mrb[0].mxu0
      %v1109 = vadd.f32 0.0, %v1108
      %v1110 = vpop.f32.mrb[0].mxu0
      %1111 = vmatprep.mubr.bf16.mxu0 0
      %1112 = vmatmul.mubr.bf16.gmra.mrb[0].mxu0 %v348
      %v1113 = vpop.f32.mrb[0].mxu0
      %v1114 = vadd.f32 0.0, %v1113
      %v1115 = vpop.f32.mrb[0].mxu0
      %v1116 = vpop.f32.mrb[0].mxu0
      %v1117 = vadd.f32 0.0, %v1116
      %v1118 = vpop.f32.mrb[0].mxu0
      %1119 = vmatprep.mubr.bf16.mxu0 0
      %1120 = vmatmul.mubr.bf16.gmra.mrb[0].mxu0 %v349
      %v1121 = vpop.f32.mrb[0].mxu0
      %v1122 = vadd.f32 0.0, %v1121
      %v1123 = vpop.f32.mrb[0].mxu0
      %v1124 = vpop.f32.mrb[0].mxu0
      %v1125 = vadd.f32 0.0, %v1124
      %v1126 = vpop.f32.mrb[0].mxu0
      %1127 = vmatprep.mubr.bf16.mxu0 0
      %1128 = vmatmul.mubr.bf16.gmra.mrb[0].mxu0 %v350
      %v1129 = vpop.f32.mrb[0].mxu0
      %v1130 = vadd.f32 0.0, %v1129
      %v1131 = vpop.f32.mrb[0].mxu0
      %v1132 = vpop.f32.mrb[0].mxu0
      %v1133 = vadd.f32 0.0, %v1132
      %v1134 = vpop.f32.mrb[0].mxu0
      %1135 = vmatprep.mubr.bf16.mxu0 0
      %1136 = vmatmul.mubr.bf16.gmra.mrb[0].mxu0 %v351
      %v1137 = vpop.f32.mrb[0].mxu0
      %v1138 = vadd.f32 0.0, %v1137
      %v1139 = vpop.f32.mrb[0].mxu0
      %v1140 = vpop.f32.mrb[0].mxu0
      %v1141 = vadd.f32 0.0, %v1140
      %v1142 = vpop.f32.mrb[0].mxu0
      %1143 = vmatprep.mubr.bf16.mxu0 0
      %1144 = vmatmul.mubr.bf16.gmra.mrb[0].mxu0 %v352
      %v1145 = vpop.f32.mrb[0].mxu0
      %v1146 = vadd.f32 0.0, %v1145
      %v1147 = vpop.f32.mrb[0].mxu0
      %v1148 = vpop.f32.mrb[0].mxu0
      %v1149 = vadd.f32 0.0, %v1148
      %v1150 = vpop.f32.mrb[0].mxu0
      %1151 = vmatprep.mubr.bf16.mxu0 0
      %1152 = vmatmul.mubr.bf16.gmra.mrb[0].mxu0 %v353
      %v1153 = vpop.f32.mrb[0].mxu0
      %v1154 = vadd.f32 0.0, %v1153
      %v1155 = vpop.f32.mrb[0].mxu0
      %v1156 = vpop.f32.mrb[0].mxu0
      %v1157 = vadd.f32 0.0, %v1156
      %v1158 = vpop.f32.mrb[0].mxu0
      %1159 = vmatprep.mubr.bf16.mxu0 0
      %1160 = vmatmul.mubr.bf16.gmra.mrb[0].mxu0 %v354
      %v1161 = vpop.f32.mrb[0].mxu0
      %v1162 = vadd.f32 0.0, %v1161
      %v1163 = vpop.f32.mrb[0].mxu0
      %v1164 = vpop.f32.mrb[0].mxu0
      %v1165 = vadd.f32 0.0, %v1164
      %v1166 = vpop.f32.mrb[0].mxu0
      %1167 = vmatprep.mubr.bf16.mxu0 0
      %1168 = vmatmul.mubr.bf16.gmra.mrb[0].mxu0 %v355
      %v1169 = vpop.f32.mrb[0].mxu0
      %v1170 = vadd.f32 0.0, %v1169
      %v1171 = vpop.f32.mrb[0].mxu0
      %v1172 = vpop.f32.mrb[0].mxu0
      %v1173 = vadd.f32 0.0, %v1172
      %v1174 = vpop.f32.mrb[0].mxu0
      %1175 = vmatprep.mubr.bf16.mxu0 0
      %1176 = vmatmul.mubr.bf16.gmra.mrb[0].mxu0 %v356
      %v1177 = vpop.f32.mrb[0].mxu0
      %v1178 = vadd.f32 0.0, %v1177
      %v1179 = vpop.f32.mrb[0].mxu0
      %v1180 = vpop.f32.mrb[0].mxu0
      %v1181 = vadd.f32 0.0, %v1180
      %v1182 = vpop.f32.mrb[0].mxu0
      %1183 = vmatprep.mubr.bf16.mxu0 0
      %1184 = vmatmul.mubr.bf16.gmra.mrb[0].mxu0 %v357
      %v1185 = vpop.f32.mrb[0].mxu0
      %v1186 = vadd.f32 0.0, %v1185
      %v1187 = vpop.f32.mrb[0].mxu0
      %v1188 = vpop.f32.mrb[0].mxu0
      %v1189 = vadd.f32 0.0, %v1188
      %v1190 = vpop.f32.mrb[0].mxu0
      %1191 = vmatprep.mubr.bf16.mxu0 0
      %1192 = vmatmul.mubr.bf16.gmra.mrb[0].mxu0 %v358
      %v1193 = vpop.f32.mrb[0].mxu0
      %v1194 = vadd.f32 0.0, %v1193
      %v1195 = vpop.f32.mrb[0].mxu0
      %v1196 = vpop.f32.mrb[0].mxu0
      %v1197 = vadd.f32 0.0, %v1196
      %v1198 = vpop.f32.mrb[0].mxu0
      %1199 = vmatprep.mubr.bf16.mxu0 0
      %1200 = vmatmul.mubr.bf16.gmra.mrb[0].mxu0 %v359
      %v1201 = vpop.f32.mrb[0].mxu0
      %v1202 = vadd.f32 0.0, %v1201
      %v1203 = vpop.f32.mrb[0].mxu0
      %v1204 = vpop.f32.mrb[0].mxu0
      %v1205 = vpop.f32.mrb[0].mxu0
      %1206 = vdwg.mxu0
      %v1207 = vmax.f32 %v982, %v1106
      %v1208 = vmax.f32 %v983, %v1109
      %v1209 = vmax.f32 %v984, %v1114
      %v1210 = vmax.f32 %v985, %v1117
      %v1211 = vmax.f32 %v986, %v1122
      %v1212 = vmax.f32 %v987, %v1125
      %v1213 = vmax.f32 %v988, %v1130
      %v1214 = vmax.f32 %v989, %v1133
      %v1215 = vmax.f32 %v990, %v1138
      %v1216 = vmax.f32 %v991, %v1141
      %v1217 = vmax.f32 %v992, %v1146
      %v1218 = vmax.f32 %v993, %v1149
      %v1219 = vmax.f32 %v994, %v1154
      %v1220 = vmax.f32 %v995, %v1157
      %v1221 = vmax.f32 %v996, %v1162
      %v1222 = vmax.f32 %v997, %v1165
      %v1223 = vmax.f32 %v998, %v1170
      %v1224 = vmax.f32 %v999, %v1173
      %v1225 = vmax.f32 %v1000, %v1178
      %v1226 = vmax.f32 %v1001, %v1181
      %v1227 = vmax.f32 %v1002, %v1186
      %v1228 = vmax.f32 %v1003, %v1189
      %v1229 = vmax.f32 %v1004, %v1194
      %v1230 = vmax.f32 %v1005, %v1197
      %v1231 = vmax.f32 %v1006, %v1202
      %v1232 = vld [vmem:[%s5] sm:$0x1]
      %v1234 = vlaneseq
      %v1235 = vshrl.u32 %v1234, 7
      %v1236 = vsub.s32 0, %v1235
      %v1237 = vrot.slane %v1232, %v1236
      %v1239 = vadd.f32 %v1207, %v1237
      %v1240 = vadd.f32 %v1208, %v1237
      %v1241 = vadd.f32 %v1209, %v1237
      %v1242 = vadd.f32 %v1210, %v1237
      %v1243 = vadd.f32 %v1211, %v1237
      %v1244 = vadd.f32 %v1212, %v1237
      %v1245 = vadd.f32 %v1213, %v1237
      %v1246 = vadd.f32 %v1214, %v1237
      %v1247 = vadd.f32 %v1215, %v1237
      %v1248 = vadd.f32 %v1216, %v1237
      %v1249 = vadd.f32 %v1217, %v1237
      %v1250 = vadd.f32 %v1218, %v1237
      %v1251 = vadd.f32 %v1219, %v1237
      %v1252 = vadd.f32 %v1220, %v1237
      %v1253 = vadd.f32 %v1221, %v1237
      %v1254 = vadd.f32 %v1222, %v1237
      %v1255 = vadd.f32 %v1223, %v1237
      %v1256 = vadd.f32 %v1224, %v1237
      %v1257 = vadd.f32 %v1225, %v1237
      %v1258 = vadd.f32 %v1226, %v1237
      %v1259 = vadd.f32 %v1227, %v1237
      %v1260 = vadd.f32 %v1228, %v1237
      %v1261 = vadd.f32 %v1229, %v1237
      %v1262 = vadd.f32 %v1230, %v1237
      %v1263 = vadd.f32 %v1231, %v1237
      %v1264 = vmax.f32 %v1239, 0.0
      %v1265 = vmax.f32 %v1240, 0.0
      %v1266 = vmax.f32 %v1241, 0.0
      %v1267 = vmax.f32 %v1242, 0.0
      %v1268 = vmax.f32 %v1243, 0.0
      %v1269 = vmax.f32 %v1244, 0.0
      %v1270 = vmax.f32 %v1245, 0.0
      %v1271 = vmax.f32 %v1246, 0.0
      %v1272 = vmax.f32 %v1247, 0.0
      %v1273 = vmax.f32 %v1248, 0.0
      %v1274 = vmax.f32 %v1249, 0.0
      %v1275 = vmax.f32 %v1250, 0.0
      %v1276 = vmax.f32 %v1251, 0.0
      %v1277 = vmax.f32 %v1252, 0.0
      %v1278 = vmax.f32 %v1253, 0.0
      %v1279 = vmax.f32 %v1254, 0.0
      %v1280 = vmax.f32 %v1255, 0.0
      %v1281 = vmax.f32 %v1256, 0.0
      %v1282 = vmax.f32 %v1257, 0.0
      %v1283 = vmax.f32 %v1258, 0.0
      %v1284 = vmax.f32 %v1259, 0.0
      %v1285 = vmax.f32 %v1260, 0.0
      %v1286 = vmax.f32 %v1261, 0.0
      %v1287 = vmax.f32 %v1262, 0.0
      %v1288 = vmax.f32 %v1263, 0.0
      %v1289 = vpack.c.bf16 %v1265, %v1264
      %v1290 = vpack.c.bf16 %v1267, %v1266
      %v1291 = vpack.c.bf16 %v1269, %v1268
      %v1292 = vpack.c.bf16 %v1271, %v1270
      %v1293 = vpack.c.bf16 %v1273, %v1272
      %v1294 = vpack.c.bf16 %v1275, %v1274
      %v1295 = vpack.c.bf16 %v1277, %v1276
      %v1296 = vpack.c.bf16 %v1279, %v1278
      %v1297 = vpack.c.bf16 %v1281, %v1280
      %v1298 = vpack.c.bf16 %v1283, %v1282
      %v1299 = vpack.c.bf16 %v1285, %v1284
      %v1300 = vpack.c.bf16 %v1287, %v1286
      %v1301 = vpack.c.bf16 %v1288, %v1288
      %v1315 = vunpack.c.l.b16 %v1289
      %v1316 = vunpack.c.h.b16 %v1289
      %v1317 = vunpack.c.l.b16 %v1290
      %v1318 = vunpack.c.h.b16 %v1290
      %v1319 = vunpack.c.l.b16 %v1291
      %v1320 = vunpack.c.h.b16 %v1291
      %v1321 = vunpack.c.l.b16 %v1292
      %v1322 = vunpack.c.h.b16 %v1292
      %v1323 = vunpack.c.l.b16 %v1293
      %v1324 = vunpack.c.h.b16 %v1293
      %v1325 = vunpack.c.l.b16 %v1294
      %v1326 = vunpack.c.h.b16 %v1294
      %v1327 = vunpack.c.l.b16 %v1295
      %v1328 = vunpack.c.h.b16 %v1295
      %v1329 = vunpack.c.l.b16 %v1296
      %v1330 = vunpack.c.h.b16 %v1296
      %v1331 = vunpack.c.l.b16 %v1297
      %v1332 = vunpack.c.h.b16 %v1297
      %v1333 = vunpack.c.l.b16 %v1298
      %v1334 = vunpack.c.h.b16 %v1298
      %v1335 = vunpack.c.l.b16 %v1299
      %v1336 = vunpack.c.h.b16 %v1299
      %v1337 = vunpack.c.l.b16 %v1300
      %v1338 = vunpack.c.h.b16 %v1300
      %v1339 = vunpack.c.l.b16 %v1301
      %v1340 = vpack.c.b16 %v1315, %v1315
      %v1341 = vpack.c.b16 %v1316, %v1316
      %v1342 = vpack.c.b16 %v1317, %v1317
      %v1343 = vpack.c.b16 %v1318, %v1318
      %v1344 = vpack.c.b16 %v1319, %v1319
      %v1345 = vpack.c.b16 %v1320, %v1320
      %v1346 = vpack.c.b16 %v1321, %v1321
      %v1347 = vpack.c.b16 %v1322, %v1322
      %v1348 = vpack.c.b16 %v1323, %v1323
      %v1349 = vpack.c.b16 %v1324, %v1324
      %v1350 = vpack.c.b16 %v1325, %v1325
      %v1351 = vpack.c.b16 %v1326, %v1326
      %v1352 = vpack.c.b16 %v1327, %v1327
      %v1353 = vpack.c.b16 %v1328, %v1328
      %v1354 = vpack.c.b16 %v1329, %v1329
      %v1355 = vpack.c.b16 %v1330, %v1330
      %v1356 = vpack.c.b16 %v1331, %v1331
      %v1357 = vpack.c.b16 %v1332, %v1332
      %v1358 = vpack.c.b16 %v1333, %v1333
      %v1359 = vpack.c.b16 %v1334, %v1334
      %v1360 = vpack.c.b16 %v1335, %v1335
      %v1361 = vpack.c.b16 %v1336, %v1336
      %v1362 = vpack.c.b16 %v1337, %v1337
      %v1363 = vpack.c.b16 %v1338, %v1338
      %v1364 = vpack.c.b16 %v1339, %v1339
      %1390 = vst [vmem:[%s253] sm:$0xf] %v1340
      %1391 = vst [vmem:[%s253 + $0x4] sm:$0xf] %v1341
      %1392 = vst [vmem:[%s253 + $0x8] sm:$0xf] %v1342
      %1393 = vst [vmem:[%s253 + $0xc] sm:$0xf] %v1343
      %1394 = vst [vmem:[%s253 + $0x10] sm:$0xf] %v1344
      %1395 = vst [vmem:[%s253 + $0x14] sm:$0xf] %v1345
      %1396 = vst [vmem:[%s253 + $0x18] sm:$0xf] %v1346
      %1397 = vst [vmem:[%s253 + $0x1c] sm:$0xf] %v1347
      %1398 = vst [vmem:[%s253 + $0x20] sm:$0xf] %v1348
      %1399 = vst [vmem:[%s253 + $0x24] sm:$0xf] %v1349
      %1400 = vst [vmem:[%s253 + $0x28] sm:$0xf] %v1350
      %1401 = vst [vmem:[%s253 + $0x2c] sm:$0xf] %v1351
      %1402 = vst [vmem:[%s253 + $0x30] sm:$0xf] %v1352
      %1403 = vst [vmem:[%s253 + $0x34] sm:$0xf] %v1353
      %1404 = vst [vmem:[%s253 + $0x38] sm:$0xf] %v1354
      %1405 = vst [vmem:[%s253 + $0x3c] sm:$0xf] %v1355
      %1406 = vst [vmem:[%s253 + $0x40] sm:$0xf] %v1356
      %1407 = vst [vmem:[%s253 + $0x44] sm:$0xf] %v1357
      %1408 = vst [vmem:[%s253 + $0x48] sm:$0xf] %v1358
      %1409 = vst [vmem:[%s253 + $0x4c] sm:$0xf] %v1359
      %1410 = vst [vmem:[%s253 + $0x50] sm:$0xf] %v1360
      %1411 = vst [vmem:[%s253 + $0x54] sm:$0xf] %v1361
      %1412 = vst [vmem:[%s253 + $0x58] sm:$0xf] %v1362
      %1413 = vst [vmem:[%s253 + $0x5c] sm:$0xf] %v1363
      %1414 = vst [vmem:[%s253 + $0x60] sm:$0xf] %v1364
      %s1415 = smul.u32 25, %s17
      %p1416 = scmp.lt.s32.totalorder %s1415, 49
      %s1417 = scalar_select %p1416, %s1415, 49
      %s1418 = smul.addr %s1417, 4
      %s1419 = scalar_lea.vmem %s6, %s1418
      // Predicated region
      $region45: #{small_forward.3} parent=43 // pred_check
        %p1420 = pneg %p166
      $region46: #{small_forward.3} parent=43 // pred_check_branch
        %1422 = sbr.rel (%p1420) target = $region48
      $region47: #{small_forward.3} parent=43 // pred_region
        %s1423 = smul.u32 25, %s17
      $region48: #{small_forward.3} parent=43 // pred_fallthru
        _
    $region44: #{small_forward.3} parent=5 // pred_fallthru
      _
    %p1424 = scmp.le.s32.totalorder 2, %s12
    // Predicated region
    $region49: #{small_forward.3} parent=5 // pred_check
      %p1425 = pneg %p1424
    $region50: #{small_forward.3} parent=5 // pred_check_branch
      %1427 = sbr.rel (%p1425) target = $region52
    $region51: #{small_forward.3} parent=5 // pred_region
      %s1428 = ssub.s32 %s12, 2
      // Predicated region
      $region53: #{small_forward.3} parent=51 // pred_check
        %p1429 = pneg %p172
      $region54: #{small_forward.3} parent=51 // pred_check_branch
        %1431 = sbr.rel (%p1429) target = $region56
      $region55: #{small_forward.3} parent=51 // pred_region
        %s1432 = smul.u32 25, %s18
        %p1433 = scmp.lt.s32.totalorder %s1432, 49
        %s1434 = scalar_select %p1433, %s1432, 49
        %s1435 = smul.addr %s1434, 4
        %s1436 = scalar_lea.vmem %s6, %s1435
      $region56: #{small_forward.3} parent=51 // pred_fallthru
        _
    $region52: #{small_forward.3} parent=5 // pred_fallthru
      _
  $region6: #{small_forward.3} parent=0 // loop_footer
    %s16 = sadd.s32 1, %s12
  $region7: #{small_forward.3} parent=0 // loop_footer_branch
    %11 = sbr.rel target = $region3
  $region8: #{small_forward.3} parent=0 // loop_exit
    _

// kernel: small_forward.4
$region0: #{small_forward.4}
  #allocation0 [shape = 'u32[]', space=smem, size = 0x4, offset = 0x4, fixed_abs, tag = 'smem constant byte address 0x4 - core index']
  #allocation1 [shape = 'u32[144,128]{1,0:T(1,128)}', space=vmem, size = 0x12000, scoped, tag = 'internal scratch']
  %s0 = inlined_call_operand.vmem [shape: bf16[64,256], index: 0, kind: input, shape index: {}]
  %s1 = inlined_call_operand.vmem [shape: bf16[256,128], index: 1, kind: input, shape index: {}]
  %s2 = inlined_call_operand.vmem [shape: bf16[256,128], index: 2, kind: input, shape index: {}]
  %s3 = inlined_call_operand.vmem [shape: bf16[256,128], index: 3, kind: input, shape index: {}]
  %s4 = inlined_call_operand.vmem [shape: bf16[256,128], index: 4, kind: input, shape index: {}]
  %s5 = inlined_call_operand.vmem [shape: f32[1,128], index: 5, kind: input, shape index: {}]
  %s6 = inlined_call_operand.vmem [shape: bf16[64,128], index: 6, kind: output, shape index: {}]
  %s7 = sld [smem:[#allocation0]]
  $region57: #{small_forward.4} parent=0
    _
  %s9 = ssub.s32 1, %s7
  %s10 = scalar_select 0, %s9, %s7
  loop: start=0, step=1, limit=4
  $region2: #{small_forward.4} parent=0 // loop_pre_header
    _
  $region3: #{small_forward.4} parent=0 // loop_header
    %s12 = sphi 0, %s16
    %p13 = scmp.ge.s32.totalorder %s12, 4
    %s22 = sphi 0, %s24
    %s25 = sphi 0, %s22
    %s26 = sphi 0, %s25
    %s42 = sphi 0, %s26
    %s46 = sphi 0, %s46
    %s48 = sphi 0, %s46
    %s49 = sphi 0, %s48
    %s63 = sphi 0, %s49
    %s67 = sphi 0, %s67
    %s69 = sphi 0, %s67
    %s70 = sphi 0, %s69
    %s84 = sphi 0, %s70
    %s88 = sphi 0, %s88
    %s90 = sphi 0, %s88
    %s91 = sphi 0, %s90
    %s105 = sphi 0, %s91
    %s109 = sphi 0, %s109
    %s111 = sphi 0, %s109
    %s112 = sphi 0, %s111
    %s126 = sphi 0, %s112
    %s130 = sphi 0, %s130
    %s132 = sphi 0, %s130
    %s133 = sphi 0, %s132
    %s147 = sphi 0, %s133
    %s153 = sphi 0, %s155
    %s156 = sphi 0, %s153
    %s157 = sphi 0, %s156
    %s173 = sphi 0, %s157
  $region4: #{small_forward.4} parent=0 // loop_header_branch
    %15 = sbr.rel (%p13) target = $region8
  $region5: #{small_forward.4} parent=0 // loop_body
    %s17 = ssub.s32 %s12, 1
    %s18 = ssub.s32 %s12, 2
    %s19 = sadd.s32 %s12, 1
    %s20 = ssub.s32 %s12, %s19
    %p21 = scmp.eq.s32.totalorder %s20, 0
    %s23 = sadd.s32 %s22, 1
    %s24 = scalar_select %p21, %s22, %s23
    %p27 = pneg %p21
    %p28 = scmp.eq.s32.totalorder %s12, 1
    %p29 = por %p27, %p28
    %p30 = scmp.ne.s32.totalorder %s22, %s25
    %p31 = scmp.eq.s32.totalorder %s12, 0
    %p32 = por %p30, %p31
    %p33 = scmp.ne.s32.totalorder %s22, %s25
    %p34 = scmp.eq.s32.totalorder %s17, 1
    %p35 = por %p33, %p34
    %p36 = scmp.ne.s32.totalorder %s25, %s26
    %p37 = scmp.eq.s32.totalorder %s17, 0
    %p38 = por %p36, %p37
    %p39 = scmp.ne.s32.totalorder %s25, %s26
    %p40 = scmp.eq.s32.totalorder %s18, 1
    %p41 = por %p39, %p40
    %p43 = scmp.ne.s32.totalorder %s26, %s42
    %p44 = scmp.eq.s32.totalorder %s18, 0
    %p45 = por %p43, %p44
    %s47 = sadd.s32 %s46, 1
    %p50 = scmp.eq.s32.totalorder %s12, 1
    %p51 = scmp.ne.s32.totalorder %s46, %s48
    %p52 = scmp.eq.s32.totalorder %s12, 0
    %p53 = por %p51, %p52
    %p54 = scmp.ne.s32.totalorder %s46, %s48
    %p55 = scmp.eq.s32.totalorder %s17, 1
    %p56 = por %p54, %p55
    %p57 = scmp.ne.s32.totalorder %s48, %s49
    %p58 = scmp.eq.s32.totalorder %s17, 0
    %p59 = por %p57, %p58
    %p60 = scmp.ne.s32.totalorder %s48, %s49
    %p61 = scmp.eq.s32.totalorder %s18, 1
    %p62 = por %p60, %p61
    %p64 = scmp.ne.s32.totalorder %s49, %s63
    %p65 = scmp.eq.s32.totalorder %s18, 0
    %p66 = por %p64, %p65
    %s68 = sadd.s32 %s67, 1
    %p71 = scmp.eq.s32.totalorder %s12, 1
    %p72 = scmp.ne.s32.totalorder %s67, %s69
    %p73 = scmp.eq.s32.totalorder %s12, 0
    %p74 = por %p72, %p73
    %p75 = scmp.ne.s32.totalorder %s67, %s69
    %p76 = scmp.eq.s32.totalorder %s17, 1
    %p77 = por %p75, %p76
    %p78 = scmp.ne.s32.totalorder %s69, %s70
    %p79 = scmp.eq.s32.totalorder %s17, 0
    %p80 = por %p78, %p79
    %p81 = scmp.ne.s32.totalorder %s69, %s70
    %p82 = scmp.eq.s32.totalorder %s18, 1
    %p83 = por %p81, %p82
    %p85 = scmp.ne.s32.totalorder %s70, %s84
    %p86 = scmp.eq.s32.totalorder %s18, 0
    %p87 = por %p85, %p86
    %s89 = sadd.s32 %s88, 1
    %p92 = scmp.eq.s32.totalorder %s12, 1
    %p93 = scmp.ne.s32.totalorder %s88, %s90
    %p94 = scmp.eq.s32.totalorder %s12, 0
    %p95 = por %p93, %p94
    %p96 = scmp.ne.s32.totalorder %s88, %s90
    %p97 = scmp.eq.s32.totalorder %s17, 1
    %p98 = por %p96, %p97
    %p99 = scmp.ne.s32.totalorder %s90, %s91
    %p100 = scmp.eq.s32.totalorder %s17, 0
    %p101 = por %p99, %p100
    %p102 = scmp.ne.s32.totalorder %s90, %s91
    %p103 = scmp.eq.s32.totalorder %s18, 1
    %p104 = por %p102, %p103
    %p106 = scmp.ne.s32.totalorder %s91, %s105
    %p107 = scmp.eq.s32.totalorder %s18, 0
    %p108 = por %p106, %p107
    %s110 = sadd.s32 %s109, 1
    %p113 = scmp.eq.s32.totalorder %s12, 1
    %p114 = scmp.ne.s32.totalorder %s109, %s111
    %p115 = scmp.eq.s32.totalorder %s12, 0
    %p116 = por %p114, %p115
    %p117 = scmp.ne.s32.totalorder %s109, %s111
    %p118 = scmp.eq.s32.totalorder %s17, 1
    %p119 = por %p117, %p118
    %p120 = scmp.ne.s32.totalorder %s111, %s112
    %p121 = scmp.eq.s32.totalorder %s17, 0
    %p122 = por %p120, %p121
    %p123 = scmp.ne.s32.totalorder %s111, %s112
    %p124 = scmp.eq.s32.totalorder %s18, 1
    %p125 = por %p123, %p124
    %p127 = scmp.ne.s32.totalorder %s112, %s126
    %p128 = scmp.eq.s32.totalorder %s18, 0
    %p129 = por %p127, %p128
    %s131 = sadd.s32 %s130, 1
    %p134 = scmp.eq.s32.totalorder %s12, 1
    %p135 = scmp.ne.s32.totalorder %s130, %s132
    %p136 = scmp.eq.s32.totalorder %s12, 0
    %p137 = por %p135, %p136
    %p138 = scmp.ne.s32.totalorder %s130, %s132
    %p139 = scmp.eq.s32.totalorder %s17, 1
    %p140 = por %p138, %p139
    %p141 = scmp.ne.s32.totalorder %s132, %s133
    %p142 = scmp.eq.s32.totalorder %s17, 0
    %p143 = por %p141, %p142
    %p144 = scmp.ne.s32.totalorder %s132, %s133
    %p145 = scmp.eq.s32.totalorder %s18, 1
    %p146 = por %p144, %p145
    %p148 = scmp.ne.s32.totalorder %s133, %s147
    %p149 = scmp.eq.s32.totalorder %s18, 0
    %p150 = por %p148, %p149
    %s151 = ssub.s32 %s12, %s19
    %p152 = scmp.eq.s32.totalorder %s151, 0
    %s154 = sadd.s32 %s153, 1
    %s155 = scalar_select %p152, %s153, %s154
    %p158 = pneg %p152
    %p159 = scmp.eq.s32.totalorder %s12, 1
    %p160 = por %p158, %p159
    %p161 = scmp.ne.s32.totalorder %s153, %s156
    %p162 = scmp.eq.s32.totalorder %s12, 0
    %p163 = por %p161, %p162
    %p164 = scmp.ne.s32.totalorder %s153, %s156
    %p165 = scmp.eq.s32.totalorder %s17, 1
    %p166 = por %p164, %p165
    %p167 = scmp.ne.s32.totalorder %s156, %s157
    %p168 = scmp.eq.s32.totalorder %s17, 0
    %p169 = por %p167, %p168
    %p170 = scmp.ne.s32.totalorder %s156, %s157
    %p171 = scmp.eq.s32.totalorder %s18, 1
    %p172 = por %p170, %p171
    %p174 = scmp.ne.s32.totalorder %s157, %s173
    %p175 = scmp.eq.s32.totalorder %s18, 0
    %p176 = por %p174, %p175
    %p177 = scmp.le.s32.totalorder 1, %s12
    %p178 = scmp.lt.s32.totalorder %s12, 3
    %p179 = pnand %p177, %p178
    %p180 = pneg %p179
    // Predicated region
    $region9: #{small_forward.4} parent=5 // pred_check
      _
    $region10: #{small_forward.4} parent=5 // pred_check_branch
      %182 = sbr.rel (%p179) target = $region12
    $region11: #{small_forward.4} parent=5 // pred_region
      %s183 = ssub.s32 %s12, 1
      // Predicated region
      $region13: #{small_forward.4} parent=11 // pred_check
        %p184 = pneg %p59
      $region14: #{small_forward.4} parent=11 // pred_check_branch
        %186 = sbr.rel (%p184) target = $region16
      $region15: #{small_forward.4} parent=11 // pred_region
        _
      $region16: #{small_forward.4} parent=11 // pred_fallthru
        _
      // Predicated region
      $region17: #{small_forward.4} parent=11 // pred_check
        %p187 = pneg %p80
      $region18: #{small_forward.4} parent=11 // pred_check_branch
        %189 = sbr.rel (%p187) target = $region20
      $region19: #{small_forward.4} parent=11 // pred_region
        _
      $region20: #{small_forward.4} parent=11 // pred_fallthru
        _
      // Predicated region
      $region21: #{small_forward.4} parent=11 // pred_check
        %p190 = pneg %p101
      $region22: #{small_forward.4} parent=11 // pred_check_branch
        %192 = sbr.rel (%p190) target = $region24
      $region23: #{small_forward.4} parent=11 // pred_region
        _
      $region24: #{small_forward.4} parent=11 // pred_fallthru
        _
      // Predicated region
      $region25: #{small_forward.4} parent=11 // pred_check
        %p193 = pneg %p122
      $region26: #{small_forward.4} parent=11 // pred_check_branch
        %195 = sbr.rel (%p193) target = $region28
      $region27: #{small_forward.4} parent=11 // pred_region
        _
      $region28: #{small_forward.4} parent=11 // pred_fallthru
        _
      // Predicated region
      $region29: #{small_forward.4} parent=11 // pred_check
        %p196 = pneg %p143
      $region30: #{small_forward.4} parent=11 // pred_check_branch
        %198 = sbr.rel (%p196) target = $region32
      $region31: #{small_forward.4} parent=11 // pred_region
        _
      $region32: #{small_forward.4} parent=11 // pred_fallthru
        _
    $region12: #{small_forward.4} parent=5 // pred_fallthru
      _
    %p199 = scmp.lt.s32.totalorder %s12, 2
    // Predicated region
    $region33: #{small_forward.4} parent=5 // pred_check
      %p200 = pneg %p199
    $region34: #{small_forward.4} parent=5 // pred_check_branch
      %202 = sbr.rel (%p200) target = $region36
    $region35: #{small_forward.4} parent=5 // pred_region
      // Predicated region
      $region37: #{small_forward.4} parent=35 // pred_check
        %p203 = pneg %p32
      $region38: #{small_forward.4} parent=35 // pred_check_branch
        %205 = sbr.rel (%p203) target = $region40
      $region39: #{small_forward.4} parent=35 // pred_region
        %s206 = smul.u32 4, %s12
        %p207 = scmp.lt.s32.totalorder %s206, 7
        %s208 = scalar_select %p207, %s206, 7
        %s209 = smul.addr %s208, 2
        %s210 = smul.addr %s209, 4
        %s211 = scalar_lea.vmem %s0, %s210
        %s212 = smul.u32 4, %s12
      $region40: #{small_forward.4} parent=35 // pred_fallthru
        _
    $region36: #{small_forward.4} parent=5 // pred_fallthru
      _
    %p213 = scmp.le.s32.totalorder 1, %s12
    %p214 = scmp.lt.s32.totalorder %s12, 3
    %p215 = pnand %p213, %p214
    %p216 = pneg %p215
    // Predicated region
    $region41: #{small_forward.4} parent=5 // pred_check
      _
    $region42: #{small_forward.4} parent=5 // pred_check_branch
      %218 = sbr.rel (%p215) target = $region44
    $region43: #{small_forward.4} parent=5 // pred_region
      %s219 = ssub.s32 %s12, 1
      %s220 = smul.u32 4, %s17
      %p221 = scmp.lt.s32.totalorder %s220, 7
      %s222 = scalar_select %p221, %s220, 7
      %s223 = smul.addr %s222, 2
      %s224 = smul.addr %s223, 4
      %s225 = scalar_lea.vmem %s0, %s224
      %p226 = pneg %p38
      %p227 = pneg %p35
      %p228 = pneg %p59
      %p229 = pneg %p56
      %p230 = pneg %p80
      %p231 = pneg %p77
      %p232 = pneg %p101
      %p233 = pneg %p98
      %p234 = pneg %p122
      %p235 = pneg %p119
      %p236 = pneg %p143
      %p237 = pneg %p140
      %p238 = pneg %p169
      %p239 = pneg %p166
      %s240 = smul.u32 4, %s17
      %p241 = scmp.lt.s32.totalorder %s240, 7
      %s242 = scalar_select %p241, %s240, 7
      %s243 = smul.addr %s242, 4
      %s244 = scalar_lea.vmem %s6, %s243
      %s245 = smul.u32 4, %s17
      %p246 = scmp.lt.s32.totalorder %s245, 7
      %s247 = scalar_select %p246, %s245, 7
      %s248 = smul.addr %s247, 2
      %s249 = smul.addr %s248, 4
      %s250 = scalar_lea.vmem %s0, %s249
      %s251 = smul.u32 4, %s17
      %s252 = smul.u32 4, %s17
      %p253 = scmp.lt.s32.totalorder %s252, 7
      %s254 = scalar_select %p253, %s252, 7
      %s255 = smul.addr %s254, 4
      %s256 = scalar_lea.vmem %s6, %s255
      %s257 = smul.u32 4, %s17
      %v259 = vld [vmem:[%s250] sm:$0xff]
      %v260 = vld [vmem:[%s250 + $0x8] sm:$0xff]
      %v261 = vld [vmem:[%s250 + $0x10] sm:$0xff]
      %v262 = vld [vmem:[%s250 + $0x18] sm:$0xff]
      %v263 = vld [vmem:[%s1] sm:$0xf]
      %v264 = vld [vmem:[%s1 + $0x4] sm:$0xf]
      %v265 = vld [vmem:[%s1 + $0x8] sm:$0xf]
      %v266 = vld [vmem:[%s1 + $0xc] sm:$0xf]
      %v267 = vld [vmem:[%s1 + $0x10] sm:$0xf]
      %v268 = vld [vmem:[%s1 + $0x14] sm:$0xf]
      %v269 = vld [vmem:[%s1 + $0x18] sm:$0xf]
      %v270 = vld [vmem:[%s1 + $0x1c] sm:$0xf]
      %v271 = vld [vmem:[%s1 + $0x20] sm:$0xf]
      %v272 = vld [vmem:[%s1 + $0x24] sm:$0xf]
      %v273 = vld [vmem:[%s1 + $0x28] sm:$0xf]
      %v274 = vld [vmem:[%s1 + $0x2c] sm:$0xf]
      %v275 = vld [vmem:[%s1 + $0x30] sm:$0xf]
      %v276 = vld [vmem:[%s1 + $0x34] sm:$0xf]
      %v277 = vld [vmem:[%s1 + $0x38] sm:$0xf]
      %v278 = vld [vmem:[%s1 + $0x3c] sm:$0xf]
      %v279 = vld [vmem:[%s1 + $0x40] sm:$0xf]
      %v280 = vld [vmem:[%s1 + $0x44] sm:$0xf]
      %v281 = vld [vmem:[%s1 + $0x48] sm:$0xf]
      %v282 = vld [vmem:[%s1 + $0x4c] sm:$0xf]
      %v283 = vld [vmem:[%s1 + $0x50] sm:$0xf]
      %v284 = vld [vmem:[%s1 + $0x54] sm:$0xf]
      %v285 = vld [vmem:[%s1 + $0x58] sm:$0xf]
      %v286 = vld [vmem:[%s1 + $0x5c] sm:$0xf]
      %v287 = vld [vmem:[%s1 + $0x60] sm:$0xf]
      %v288 = vld [vmem:[%s1 + $0x64] sm:$0xf]
      %v289 = vld [vmem:[%s1 + $0x68] sm:$0xf]
      %v290 = vld [vmem:[%s1 + $0x6c] sm:$0xf]
      %v291 = vld [vmem:[%s1 + $0x70] sm:$0xf]
      %v292 = vld [vmem:[%s1 + $0x74] sm:$0xf]
      %v293 = vld [vmem:[%s1 + $0x78] sm:$0xf]
      %v294 = vld [vmem:[%s1 + $0x7c] sm:$0xf]
      %v299 = vunpack.c.l.b16 %v259
      %v300 = vunpack.c.h.b16 %v259
      %v301 = vunpack.c.l.b16 %v260
      %v302 = vunpack.c.h.b16 %v260
      %v303 = vunpack.c.l.b16 %v261
      %v304 = vunpack.c.h.b16 %v261
      %v305 = vunpack.c.l.b16 %v262
      %v306 = vunpack.c.h.b16 %v262
      %v307 = vpack.c.b16 %v301, %v299
      %v308 = vpack.c.b16 %v302, %v300
      %v309 = vpack.c.b16 %v305, %v303
      %v310 = vpack.c.b16 %v306, %v304
      %v347 = vunpack.c.l.b16 %v263
      %v348 = vunpack.c.l.b16 %v264
      %v349 = vunpack.c.l.b16 %v265
      %v350 = vunpack.c.l.b16 %v266
      %v351 = vunpack.c.l.b16 %v267
      %v352 = vunpack.c.l.b16 %v268
      %v353 = vunpack.c.l.b16 %v269
      %v354 = vunpack.c.l.b16 %v270
      %v355 = vunpack.c.l.b16 %v271
      %v356 = vunpack.c.l.b16 %v272
      %v357 = vunpack.c.l.b16 %v273
      %v358 = vunpack.c.l.b16 %v274
      %v359 = vunpack.c.l.b16 %v275
      %v360 = vunpack.c.l.b16 %v276
      %v361 = vunpack.c.l.b16 %v277
      %v362 = vunpack.c.l.b16 %v278
      %v363 = vunpack.c.l.b16 %v279
      %v364 = vunpack.c.l.b16 %v280
      %v365 = vunpack.c.l.b16 %v281
      %v366 = vunpack.c.l.b16 %v282
      %v367 = vunpack.c.l.b16 %v283
      %v368 = vunpack.c.l.b16 %v284
      %v369 = vunpack.c.l.b16 %v285
      %v370 = vunpack.c.l.b16 %v286
      %v371 = vunpack.c.l.b16 %v287
      %v372 = vunpack.c.l.b16 %v288
      %v373 = vunpack.c.l.b16 %v289
      %v374 = vunpack.c.l.b16 %v290
      %v375 = vunpack.c.l.b16 %v291
      %v376 = vunpack.c.l.b16 %v292
      %v377 = vunpack.c.l.b16 %v293
      %v378 = vunpack.c.l.b16 %v294
      %v379 = vpack.c.b16 %v348, %v347
      %v380 = vpack.c.b16 %v350, %v349
      %v381 = vpack.c.b16 %v352, %v351
      %v382 = vpack.c.b16 %v354, %v353
      %v383 = vpack.c.b16 %v356, %v355
      %v384 = vpack.c.b16 %v358, %v357
      %v385 = vpack.c.b16 %v360, %v359
      %v386 = vpack.c.b16 %v362, %v361
      %v387 = vpack.c.b16 %v364, %v363
      %v388 = vpack.c.b16 %v366, %v365
      %v389 = vpack.c.b16 %v368, %v367
      %v390 = vpack.c.b16 %v370, %v369
      %v391 = vpack.c.b16 %v372, %v371
      %v392 = vpack.c.b16 %v374, %v373
      %v393 = vpack.c.b16 %v376, %v375
      %v394 = vpack.c.b16 %v378, %v377
      %411 = vmatprep.subr.bf16.mxu0 0
      %412 = vmatpush1.bf16.msra.mxu0 %v379
      %413 = vmatprep.subr.bf16.mxu0 0
      %414 = vmatpush1.bf16.msra.mxu0 %v380
      %415 = vmatprep.subr.bf16.mxu0 0
      %416 = vmatpush1.bf16.msra.mxu0 %v381
      %417 = vmatprep.subr.bf16.mxu0 0
      %418 = vmatpush1.bf16.msra.mxu0 %v382
      %419 = vmatprep.subr.bf16.mxu0 0
      %420 = vmatpush1.bf16.msra.mxu0 %v383
      %421 = vmatprep.subr.bf16.mxu0 0
      %422 = vmatpush1.bf16.msra.mxu0 %v384
      %423 = vmatprep.subr.bf16.mxu0 0
      %424 = vmatpush1.bf16.msra.mxu0 %v385
      %425 = vmatprep.subr.bf16.mxu0 0
      %426 = vmatpush1.bf16.msra.mxu0 %v386
      %427 = vmatprep.subr.bf16.mxu0 0
      %428 = vmatpush1.bf16.msra.mxu0 %v387
      %429 = vmatprep.subr.bf16.mxu0 0
      %430 = vmatpush1.bf16.msra.mxu0 %v388
      %431 = vmatprep.subr.bf16.mxu0 0
      %432 = vmatpush1.bf16.msra.mxu0 %v389
      %433 = vmatprep.subr.bf16.mxu0 0
      %434 = vmatpush1.bf16.msra.mxu0 %v390
      %435 = vmatprep.subr.bf16.mxu0 0
      %436 = vmatpush1.bf16.msra.mxu0 %v391
      %437 = vmatprep.subr.bf16.mxu0 0
      %438 = vmatpush1.bf16.msra.mxu0 %v392
      %439 = vmatprep.subr.bf16.mxu0 0
      %440 = vmatpush1.bf16.msra.mxu0 %v393
      %441 = vmatprep.subr.bf16.mxu0 0
      %442 = vmatpush1.bf16.msra.mxu0 %v394
      %443 = vmatprep.mubr.bf16.mxu0 %v308
      %444 = vmatmul.mubr.bf16.gmra.mrb[0].mxu0 %v307
      %v445 = vpop.f32.mrb[0].mxu0
      %v446 = vadd.f32 0.0, %v445
      %v447 = vpop.f32.mrb[0].mxu0
      %v448 = vpop.f32.mrb[0].mxu0
      %v449 = vadd.f32 0.0, %v448
      %v450 = vpop.f32.mrb[0].mxu0
      %451 = vmatprep.mubr.bf16.mxu0 %v310
      %452 = vmatmul.mubr.bf16.gmra.mrb[0].mxu0 %v309
      %v453 = vpop.f32.mrb[0].mxu0
      %v454 = vadd.f32 0.0, %v453
      %v455 = vpop.f32.mrb[0].mxu0
      %v456 = vpop.f32.mrb[0].mxu0
      %v457 = vadd.f32 0.0, %v456
      %v458 = vpop.f32.mrb[0].mxu0
      %459 = vdwg.mxu0
      %v460 = vld [vmem:[%s2] sm:$0xf]
      %v461 = vld [vmem:[%s2 + $0x4] sm:$0xf]
      %v462 = vld [vmem:[%s2 + $0x8] sm:$0xf]
      %v463 = vld [vmem:[%s2 + $0xc] sm:$0xf]
      %v464 = vld [vmem:[%s2 + $0x10] sm:$0xf]
      %v465 = vld [vmem:[%s2 + $0x14] sm:$0xf]
      %v466 = vld [vmem:[%s2 + $0x18] sm:$0xf]
      %v467 = vld [vmem:[%s2 + $0x1c] sm:$0xf]
      %v468 = vld [vmem:[%s2 + $0x20] sm:$0xf]
      %v469 = vld [vmem:[%s2 + $0x24] sm:$0xf]
      %v470 = vld [vmem:[%s2 + $0x28] sm:$0xf]
      %v471 = vld [vmem:[%s2 + $0x2c] sm:$0xf]
      %v472 = vld [vmem:[%s2 + $0x30] sm:$0xf]
      %v473 = vld [vmem:[%s2 + $0x34] sm:$0xf]
      %v474 = vld [vmem:[%s2 + $0x38] sm:$0xf]
      %v475 = vld [vmem:[%s2 + $0x3c] sm:$0xf]
      %v476 = vld [vmem:[%s2 + $0x40] sm:$0xf]
      %v477 = vld [vmem:[%s2 + $0x44] sm:$0xf]
      %v478 = vld [vmem:[%s2 + $0x48] sm:$0xf]
      %v479 = vld [vmem:[%s2 + $0x4c] sm:$0xf]
      %v480 = vld [vmem:[%s2 + $0x50] sm:$0xf]
      %v481 = vld [vmem:[%s2 + $0x54] sm:$0xf]
      %v482 = vld [vmem:[%s2 + $0x58] sm:$0xf]
      %v483 = vld [vmem:[%s2 + $0x5c] sm:$0xf]
      %v484 = vld [vmem:[%s2 + $0x60] sm:$0xf]
      %v485 = vld [vmem:[%s2 + $0x64] sm:$0xf]
      %v486 = vld [vmem:[%s2 + $0x68] sm:$0xf]
      %v487 = vld [vmem:[%s2 + $0x6c] sm:$0xf]
      %v488 = vld [vmem:[%s2 + $0x70] sm:$0xf]
      %v489 = vld [vmem:[%s2 + $0x74] sm:$0xf]
      %v490 = vld [vmem:[%s2 + $0x78] sm:$0xf]
      %v491 = vld [vmem:[%s2 + $0x7c] sm:$0xf]
      %v524 = vunpack.c.l.b16 %v460
      %v525 = vunpack.c.l.b16 %v461
      %v526 = vunpack.c.l.b16 %v462
      %v527 = vunpack.c.l.b16 %v463
      %v528 = vunpack.c.l.b16 %v464
      %v529 = vunpack.c.l.b16 %v465
      %v530 = vunpack.c.l.b16 %v466
      %v531 = vunpack.c.l.b16 %v467
      %v532 = vunpack.c.l.b16 %v468
      %v533 = vunpack.c.l.b16 %v469
      %v534 = vunpack.c.l.b16 %v470
      %v535 = vunpack.c.l.b16 %v471
      %v536 = vunpack.c.l.b16 %v472
      %v537 = vunpack.c.l.b16 %v473
      %v538 = vunpack.c.l.b16 %v474
      %v539 = vunpack.c.l.b16 %v475
      %v540 = vunpack.c.l.b16 %v476
      %v541 = vunpack.c.l.b16 %v477
      %v542 = vunpack.c.l.b16 %v478
      %v543 = vunpack.c.l.b16 %v479
      %v544 = vunpack.c.l.b16 %v480
      %v545 = vunpack.c.l.b16 %v481
      %v546 = vunpack.c.l.b16 %v482
      %v547 = vunpack.c.l.b16 %v483
      %v548 = vunpack.c.l.b16 %v484
      %v549 = vunpack.c.l.b16 %v485
      %v550 = vunpack.c.l.b16 %v486
      %v551 = vunpack.c.l.b16 %v487
      %v552 = vunpack.c.l.b16 %v488
      %v553 = vunpack.c.l.b16 %v489
      %v554 = vunpack.c.l.b16 %v490
      %v555 = vunpack.c.l.b16 %v491
      %v556 = vpack.c.b16 %v525, %v524
      %v557 = vpack.c.b16 %v527, %v526
      %v558 = vpack.c.b16 %v529, %v528
      %v559 = vpack.c.b16 %v531, %v530
      %v560 = vpack.c.b16 %v533, %v532
      %v561 = vpack.c.b16 %v535, %v534
      %v562 = vpack.c.b16 %v537, %v536
      %v563 = vpack.c.b16 %v539, %v538
      %v564 = vpack.c.b16 %v541, %v540
      %v565 = vpack.c.b16 %v543, %v542
      %v566 = vpack.c.b16 %v545, %v544
      %v567 = vpack.c.b16 %v547, %v546
      %v568 = vpack.c.b16 %v549, %v548
      %v569 = vpack.c.b16 %v551, %v550
      %v570 = vpack.c.b16 %v553, %v552
      %v571 = vpack.c.b16 %v555, %v554
      %588 = vmatprep.subr.bf16.mxu0 0
      %589 = vmatpush1.bf16.msra.mxu0 %v556
      %590 = vmatprep.subr.bf16.mxu0 0
      %591 = vmatpush1.bf16.msra.mxu0 %v557
      %592 = vmatprep.subr.bf16.mxu0 0
      %593 = vmatpush1.bf16.msra.mxu0 %v558
      %594 = vmatprep.subr.bf16.mxu0 0
      %595 = vmatpush1.bf16.msra.mxu0 %v559
      %596 = vmatprep.subr.bf16.mxu0 0
      %597 = vmatpush1.bf16.msra.mxu0 %v560
      %598 = vmatprep.subr.bf16.mxu0 0
      %599 = vmatpush1.bf16.msra.mxu0 %v561
      %600 = vmatprep.subr.bf16.mxu0 0
      %601 = vmatpush1.bf16.msra.mxu0 %v562
      %602 = vmatprep.subr.bf16.mxu0 0
      %603 = vmatpush1.bf16.msra.mxu0 %v563
      %604 = vmatprep.subr.bf16.mxu0 0
      %605 = vmatpush1.bf16.msra.mxu0 %v564
      %606 = vmatprep.subr.bf16.mxu0 0
      %607 = vmatpush1.bf16.msra.mxu0 %v565
      %608 = vmatprep.subr.bf16.mxu0 0
      %609 = vmatpush1.bf16.msra.mxu0 %v566
      %610 = vmatprep.subr.bf16.mxu0 0
      %611 = vmatpush1.bf16.msra.mxu0 %v567
      %612 = vmatprep.subr.bf16.mxu0 0
      %613 = vmatpush1.bf16.msra.mxu0 %v568
      %614 = vmatprep.subr.bf16.mxu0 0
      %615 = vmatpush1.bf16.msra.mxu0 %v569
      %616 = vmatprep.subr.bf16.mxu0 0
      %617 = vmatpush1.bf16.msra.mxu0 %v570
      %618 = vmatprep.subr.bf16.mxu0 0
      %619 = vmatpush1.bf16.msra.mxu0 %v571
      %620 = vmatprep.mubr.bf16.mxu0 %v308
      %621 = vmatmul.mubr.bf16.gmra.mrb[0].mxu0 %v307
      %v622 = vpop.f32.mrb[0].mxu0
      %v623 = vadd.f32 0.0, %v622
      %v624 = vpop.f32.mrb[0].mxu0
      %v625 = vpop.f32.mrb[0].mxu0
      %v626 = vadd.f32 0.0, %v625
      %v627 = vpop.f32.mrb[0].mxu0
      %628 = vmatprep.mubr.bf16.mxu0 %v310
      %629 = vmatmul.mubr.bf16.gmra.mrb[0].mxu0 %v309
      %v630 = vpop.f32.mrb[0].mxu0
      %v631 = vadd.f32 0.0, %v630
      %v632 = vpop.f32.mrb[0].mxu0
      %v633 = vpop.f32.mrb[0].mxu0
      %v634 = vadd.f32 0.0, %v633
      %v635 = vpop.f32.mrb[0].mxu0
      %636 = vdwg.mxu0
      %v637 = vmax.f32 %v446, %v623
      %v638 = vmax.f32 %v449, %v626
      %v639 = vmax.f32 %v454, %v631
      %v640 = vmax.f32 %v457, %v634
      %v641 = vld [vmem:[%s3] sm:$0xf]
      %v642 = vld [vmem:[%s3 + $0x4] sm:$0xf]
      %v643 = vld [vmem:[%s3 + $0x8] sm:$0xf]
      %v644 = vld [vmem:[%s3 + $0xc] sm:$0xf]
      %v645 = vld [vmem:[%s3 + $0x10] sm:$0xf]
      %v646 = vld [vmem:[%s3 + $0x14] sm:$0xf]
      %v647 = vld [vmem:[%s3 + $0x18] sm:$0xf]
      %v648 = vld [vmem:[%s3 + $0x1c] sm:$0xf]
      %v649 = vld [vmem:[%s3 + $0x20] sm:$0xf]
      %v650 = vld [vmem:[%s3 + $0x24] sm:$0xf]
      %v651 = vld [vmem:[%s3 + $0x28] sm:$0xf]
      %v652 = vld [vmem:[%s3 + $0x2c] sm:$0xf]
      %v653 = vld [vmem:[%s3 + $0x30] sm:$0xf]
      %v654 = vld [vmem:[%s3 + $0x34] sm:$0xf]
      %v655 = vld [vmem:[%s3 + $0x38] sm:$0xf]
      %v656 = vld [vmem:[%s3 + $0x3c] sm:$0xf]
      %v657 = vld [vmem:[%s3 + $0x40] sm:$0xf]
      %v658 = vld [vmem:[%s3 + $0x44] sm:$0xf]
      %v659 = vld [vmem:[%s3 + $0x48] sm:$0xf]
      %v660 = vld [vmem:[%s3 + $0x4c] sm:$0xf]
      %v661 = vld [vmem:[%s3 + $0x50] sm:$0xf]
      %v662 = vld [vmem:[%s3 + $0x54] sm:$0xf]
      %v663 = vld [vmem:[%s3 + $0x58] sm:$0xf]
      %v664 = vld [vmem:[%s3 + $0x5c] sm:$0xf]
      %v665 = vld [vmem:[%s3 + $0x60] sm:$0xf]
      %v666 = vld [vmem:[%s3 + $0x64] sm:$0xf]
      %v667 = vld [vmem:[%s3 + $0x68] sm:$0xf]
      %v668 = vld [vmem:[%s3 + $0x6c] sm:$0xf]
      %v669 = vld [vmem:[%s3 + $0x70] sm:$0xf]
      %v670 = vld [vmem:[%s3 + $0x74] sm:$0xf]
      %v671 = vld [vmem:[%s3 + $0x78] sm:$0xf]
      %v672 = vld [vmem:[%s3 + $0x7c] sm:$0xf]
      %v705 = vunpack.c.l.b16 %v641
      %v706 = vunpack.c.l.b16 %v642
      %v707 = vunpack.c.l.b16 %v643
      %v708 = vunpack.c.l.b16 %v644
      %v709 = vunpack.c.l.b16 %v645
      %v710 = vunpack.c.l.b16 %v646
      %v711 = vunpack.c.l.b16 %v647
      %v712 = vunpack.c.l.b16 %v648
      %v713 = vunpack.c.l.b16 %v649
      %v714 = vunpack.c.l.b16 %v650
      %v715 = vunpack.c.l.b16 %v651
      %v716 = vunpack.c.l.b16 %v652
      %v717 = vunpack.c.l.b16 %v653
      %v718 = vunpack.c.l.b16 %v654
      %v719 = vunpack.c.l.b16 %v655
      %v720 = vunpack.c.l.b16 %v656
      %v721 = vunpack.c.l.b16 %v657
      %v722 = vunpack.c.l.b16 %v658
      %v723 = vunpack.c.l.b16 %v659
      %v724 = vunpack.c.l.b16 %v660
      %v725 = vunpack.c.l.b16 %v661
      %v726 = vunpack.c.l.b16 %v662
      %v727 = vunpack.c.l.b16 %v663
      %v728 = vunpack.c.l.b16 %v664
      %v729 = vunpack.c.l.b16 %v665
      %v730 = vunpack.c.l.b16 %v666
      %v731 = vunpack.c.l.b16 %v667
      %v732 = vunpack.c.l.b16 %v668
      %v733 = vunpack.c.l.b16 %v669
      %v734 = vunpack.c.l.b16 %v670
      %v735 = vunpack.c.l.b16 %v671
      %v736 = vunpack.c.l.b16 %v672
      %v737 = vpack.c.b16 %v706, %v705
      %v738 = vpack.c.b16 %v708, %v707
      %v739 = vpack.c.b16 %v710, %v709
      %v740 = vpack.c.b16 %v712, %v711
      %v741 = vpack.c.b16 %v714, %v713
      %v742 = vpack.c.b16 %v716, %v715
      %v743 = vpack.c.b16 %v718, %v717
      %v744 = vpack.c.b16 %v720, %v719
      %v745 = vpack.c.b16 %v722, %v721
      %v746 = vpack.c.b16 %v724, %v723
      %v747 = vpack.c.b16 %v726, %v725
      %v748 = vpack.c.b16 %v728, %v727
      %v749 = vpack.c.b16 %v730, %v729
      %v750 = vpack.c.b16 %v732, %v731
      %v751 = vpack.c.b16 %v734, %v733
      %v752 = vpack.c.b16 %v736, %v735
      %769 = vmatprep.subr.bf16.mxu0 0
      %770 = vmatpush1.bf16.msra.mxu0 %v737
      %771 = vmatprep.subr.bf16.mxu0 0
      %772 = vmatpush1.bf16.msra.mxu0 %v738
      %773 = vmatprep.subr.bf16.mxu0 0
      %774 = vmatpush1.bf16.msra.mxu0 %v739
      %775 = vmatprep.subr.bf16.mxu0 0
      %776 = vmatpush1.bf16.msra.mxu0 %v740
      %777 = vmatprep.subr.bf16.mxu0 0
      %778 = vmatpush1.bf16.msra.mxu0 %v741
      %779 = vmatprep.subr.bf16.mxu0 0
      %780 = vmatpush1.bf16.msra.mxu0 %v742
      %781 = vmatprep.subr.bf16.mxu0 0
      %782 = vmatpush1.bf16.msra.mxu0 %v743
      %783 = vmatprep.subr.bf16.mxu0 0
      %784 = vmatpush1.bf16.msra.mxu0 %v744
      %785 = vmatprep.subr.bf16.mxu0 0
      %786 = vmatpush1.bf16.msra.mxu0 %v745
      %787 = vmatprep.subr.bf16.mxu0 0
      %788 = vmatpush1.bf16.msra.mxu0 %v746
      %789 = vmatprep.subr.bf16.mxu0 0
      %790 = vmatpush1.bf16.msra.mxu0 %v747
      %791 = vmatprep.subr.bf16.mxu0 0
      %792 = vmatpush1.bf16.msra.mxu0 %v748
      %793 = vmatprep.subr.bf16.mxu0 0
      %794 = vmatpush1.bf16.msra.mxu0 %v749
      %795 = vmatprep.subr.bf16.mxu0 0
      %796 = vmatpush1.bf16.msra.mxu0 %v750
      %797 = vmatprep.subr.bf16.mxu0 0
      %798 = vmatpush1.bf16.msra.mxu0 %v751
      %799 = vmatprep.subr.bf16.mxu0 0
      %800 = vmatpush1.bf16.msra.mxu0 %v752
      %801 = vmatprep.mubr.bf16.mxu0 %v308
      %802 = vmatmul.mubr.bf16.gmra.mrb[0].mxu0 %v307
      %v803 = vpop.f32.mrb[0].mxu0
      %v804 = vadd.f32 0.0, %v803
      %v805 = vpop.f32.mrb[0].mxu0
      %v806 = vpop.f32.mrb[0].mxu0
      %v807 = vadd.f32 0.0, %v806
      %v808 = vpop.f32.mrb[0].mxu0
      %809 = vmatprep.mubr.bf16.mxu0 %v310
      %810 = vmatmul.mubr.bf16.gmra.mrb[0].mxu0 %v309
      %v811 = vpop.f32.mrb[0].mxu0
      %v812 = vadd.f32 0.0, %v811
      %v813 = vpop.f32.mrb[0].mxu0
      %v814 = vpop.f32.mrb[0].mxu0
      %v815 = vadd.f32 0.0, %v814
      %v816 = vpop.f32.mrb[0].mxu0
      %817 = vdwg.mxu0
      %v818 = vmax.f32 %v637, %v804
      %v819 = vmax.f32 %v638, %v807
      %v820 = vmax.f32 %v639, %v812
      %v821 = vmax.f32 %v640, %v815
      %v822 = vld [vmem:[%s4] sm:$0xf]
      %v823 = vld [vmem:[%s4 + $0x4] sm:$0xf]
      %v824 = vld [vmem:[%s4 + $0x8] sm:$0xf]
      %v825 = vld [vmem:[%s4 + $0xc] sm:$0xf]
      %v826 = vld [vmem:[%s4 + $0x10] sm:$0xf]
      %v827 = vld [vmem:[%s4 + $0x14] sm:$0xf]
      %v828 = vld [vmem:[%s4 + $0x18] sm:$0xf]
      %v829 = vld [vmem:[%s4 + $0x1c] sm:$0xf]
      %v830 = vld [vmem:[%s4 + $0x20] sm:$0xf]
      %v831 = vld [vmem:[%s4 + $0x24] sm:$0xf]
      %v832 = vld [vmem:[%s4 + $0x28] sm:$0xf]
      %v833 = vld [vmem:[%s4 + $0x2c] sm:$0xf]
      %v834 = vld [vmem:[%s4 + $0x30] sm:$0xf]
      %v835 = vld [vmem:[%s4 + $0x34] sm:$0xf]
      %v836 = vld [vmem:[%s4 + $0x38] sm:$0xf]
      %v837 = vld [vmem:[%s4 + $0x3c] sm:$0xf]
      %v838 = vld [vmem:[%s4 + $0x40] sm:$0xf]
      %v839 = vld [vmem:[%s4 + $0x44] sm:$0xf]
      %v840 = vld [vmem:[%s4 + $0x48] sm:$0xf]
      %v841 = vld [vmem:[%s4 + $0x4c] sm:$0xf]
      %v842 = vld [vmem:[%s4 + $0x50] sm:$0xf]
      %v843 = vld [vmem:[%s4 + $0x54] sm:$0xf]
      %v844 = vld [vmem:[%s4 + $0x58] sm:$0xf]
      %v845 = vld [vmem:[%s4 + $0x5c] sm:$0xf]
      %v846 = vld [vmem:[%s4 + $0x60] sm:$0xf]
      %v847 = vld [vmem:[%s4 + $0x64] sm:$0xf]
      %v848 = vld [vmem:[%s4 + $0x68] sm:$0xf]
      %v849 = vld [vmem:[%s4 + $0x6c] sm:$0xf]
      %v850 = vld [vmem:[%s4 + $0x70] sm:$0xf]
      %v851 = vld [vmem:[%s4 + $0x74] sm:$0xf]
      %v852 = vld [vmem:[%s4 + $0x78] sm:$0xf]
      %v853 = vld [vmem:[%s4 + $0x7c] sm:$0xf]
      %v886 = vunpack.c.l.b16 %v822
      %v887 = vunpack.c.l.b16 %v823
      %v888 = vunpack.c.l.b16 %v824
      %v889 = vunpack.c.l.b16 %v825
      %v890 = vunpack.c.l.b16 %v826
      %v891 = vunpack.c.l.b16 %v827
      %v892 = vunpack.c.l.b16 %v828
      %v893 = vunpack.c.l.b16 %v829
      %v894 = vunpack.c.l.b16 %v830
      %v895 = vunpack.c.l.b16 %v831
      %v896 = vunpack.c.l.b16 %v832
      %v897 = vunpack.c.l.b16 %v833
      %v898 = vunpack.c.l.b16 %v834
      %v899 = vunpack.c.l.b16 %v835
      %v900 = vunpack.c.l.b16 %v836
      %v901 = vunpack.c.l.b16 %v837
      %v902 = vunpack.c.l.b16 %v838
      %v903 = vunpack.c.l.b16 %v839
      %v904 = vunpack.c.l.b16 %v840
      %v905 = vunpack.c.l.b16 %v841
      %v906 = vunpack.c.l.b16 %v842
      %v907 = vunpack.c.l.b16 %v843
      %v908 = vunpack.c.l.b16 %v844
      %v909 = vunpack.c.l.b16 %v845
      %v910 = vunpack.c.l.b16 %v846
      %v911 = vunpack.c.l.b16 %v847
      %v912 = vunpack.c.l.b16 %v848
      %v913 = vunpack.c.l.b16 %v849
      %v914 = vunpack.c.l.b16 %v850
      %v915 = vunpack.c.l.b16 %v851
      %v916 = vunpack.c.l.b16 %v852
      %v917 = vunpack.c.l.b16 %v853
      %v918 = vpack.c.b16 %v887, %v886
      %v919 = vpack.c.b16 %v889, %v888
      %v920 = vpack.c.b16 %v891, %v890
      %v921 = vpack.c.b16 %v893, %v892
      %v922 = vpack.c.b16 %v895, %v894
      %v923 = vpack.c.b16 %v897, %v896
      %v924 = vpack.c.b16 %v899, %v898
      %v925 = vpack.c.b16 %v901, %v900
      %v926 = vpack.c.b16 %v903, %v902
      %v927 = vpack.c.b16 %v905, %v904
      %v928 = vpack.c.b16 %v907, %v906
      %v929 = vpack.c.b16 %v909, %v908
      %v930 = vpack.c.b16 %v911, %v910
      %v931 = vpack.c.b16 %v913, %v912
      %v932 = vpack.c.b16 %v915, %v914
      %v933 = vpack.c.b16 %v917, %v916
      %950 = vmatprep.subr.bf16.mxu0 0
      %951 = vmatpush1.bf16.msra.mxu0 %v918
      %952 = vmatprep.subr.bf16.mxu0 0
      %953 = vmatpush1.bf16.msra.mxu0 %v919
      %954 = vmatprep.subr.bf16.mxu0 0
      %955 = vmatpush1.bf16.msra.mxu0 %v920
      %956 = vmatprep.subr.bf16.mxu0 0
      %957 = vmatpush1.bf16.msra.mxu0 %v921
      %958 = vmatprep.subr.bf16.mxu0 0
      %959 = vmatpush1.bf16.msra.mxu0 %v922
      %960 = vmatprep.subr.bf16.mxu0 0
      %961 = vmatpush1.bf16.msra.mxu0 %v923
      %962 = vmatprep.subr.bf16.mxu0 0
      %963 = vmatpush1.bf16.msra.mxu0 %v924
      %964 = vmatprep.subr.bf16.mxu0 0
      %965 = vmatpush1.bf16.msra.mxu0 %v925
      %966 = vmatprep.subr.bf16.mxu0 0
      %967 = vmatpush1.bf16.msra.mxu0 %v926
      %968 = vmatprep.subr.bf16.mxu0 0
      %969 = vmatpush1.bf16.msra.mxu0 %v927
      %970 = vmatprep.subr.bf16.mxu0 0
      %971 = vmatpush1.bf16.msra.mxu0 %v928
      %972 = vmatprep.subr.bf16.mxu0 0
      %973 = vmatpush1.bf16.msra.mxu0 %v929
      %974 = vmatprep.subr.bf16.mxu0 0
      %975 = vmatpush1.bf16.msra.mxu0 %v930
      %976 = vmatprep.subr.bf16.mxu0 0
      %977 = vmatpush1.bf16.msra.mxu0 %v931
      %978 = vmatprep.subr.bf16.mxu0 0
      %979 = vmatpush1.bf16.msra.mxu0 %v932
      %980 = vmatprep.subr.bf16.mxu0 0
      %981 = vmatpush1.bf16.msra.mxu0 %v933
      %982 = vmatprep.mubr.bf16.mxu0 %v308
      %983 = vmatmul.mubr.bf16.gmra.mrb[0].mxu0 %v307
      %v984 = vpop.f32.mrb[0].mxu0
      %v985 = vadd.f32 0.0, %v984
      %v986 = vpop.f32.mrb[0].mxu0
      %v987 = vpop.f32.mrb[0].mxu0
      %v988 = vadd.f32 0.0, %v987
      %v989 = vpop.f32.mrb[0].mxu0
      %990 = vmatprep.mubr.bf16.mxu0 %v310
      %991 = vmatmul.mubr.bf16.gmra.mrb[0].mxu0 %v309
      %v992 = vpop.f32.mrb[0].mxu0
      %v993 = vadd.f32 0.0, %v992
      %v994 = vpop.f32.mrb[0].mxu0
      %v995 = vpop.f32.mrb[0].mxu0
      %v996 = vadd.f32 0.0, %v995
      %v997 = vpop.f32.mrb[0].mxu0
      %998 = vdwg.mxu0
      %v999 = vmax.f32 %v818, %v985
      %v1000 = vmax.f32 %v819, %v988
      %v1001 = vmax.f32 %v820, %v993
      %v1002 = vmax.f32 %v821, %v996
      %v1003 = vld [vmem:[%s5] sm:$0x1]
      %v1005 = vlaneseq
      %v1006 = vshrl.u32 %v1005, 7
      %v1007 = vsub.s32 0, %v1006
      %v1008 = vrot.slane %v1003, %v1007
      %v1010 = vadd.f32 %v999, %v1008
      %v1011 = vadd.f32 %v1000, %v1008
      %v1012 = vadd.f32 %v1001, %v1008
      %v1013 = vadd.f32 %v1002, %v1008
      %v1014 = vmax.f32 %v1010, 0.0
      %v1015 = vmax.f32 %v1011, 0.0
      %v1016 = vmax.f32 %v1012, 0.0
      %v1017 = vmax.f32 %v1013, 0.0
      %v1018 = vpack.c.bf16 %v1015, %v1014
      %v1019 = vpack.c.bf16 %v1017, %v1016
      %v1022 = vunpack.c.l.b16 %v1018
      %v1023 = vunpack.c.h.b16 %v1018
      %v1024 = vunpack.c.l.b16 %v1019
      %v1025 = vunpack.c.h.b16 %v1019
      %v1026 = vpack.c.b16 %v1022, %v1022
      %v1027 = vpack.c.b16 %v1023, %v1023
      %v1028 = vpack.c.b16 %v1024, %v1024
      %v1029 = vpack.c.b16 %v1025, %v1025
      %1034 = vst [vmem:[%s256] sm:$0xf] %v1026
      %1035 = vst [vmem:[%s256 + $0x4] sm:$0xf] %v1027
      %1036 = vst [vmem:[%s256 + $0x8] sm:$0xf] %v1028
      %1037 = vst [vmem:[%s256 + $0xc] sm:$0xf] %v1029
      %s1038 = smul.u32 4, %s17
      %p1039 = scmp.lt.s32.totalorder %s1038, 7
      %s1040 = scalar_select %p1039, %s1038, 7
      %s1041 = smul.addr %s1040, 4
      %s1042 = scalar_lea.vmem %s6, %s1041
      // Predicated region
      $region45: #{small_forward.4} parent=43 // pred_check
        %p1043 = pneg %p166
      $region46: #{small_forward.4} parent=43 // pred_check_branch
        %1045 = sbr.rel (%p1043) target = $region48
      $region47: #{small_forward.4} parent=43 // pred_region
        %s1046 = smul.u32 4, %s17
      $region48: #{small_forward.4} parent=43 // pred_fallthru
        _
    $region44: #{small_forward.4} parent=5 // pred_fallthru
      _
    %p1047 = scmp.le.s32.totalorder 2, %s12
    // Predicated region
    $region49: #{small_forward.4} parent=5 // pred_check
      %p1048 = pneg %p1047
    $region50: #{small_forward.4} parent=5 // pred_check_branch
      %1050 = sbr.rel (%p1048) target = $region52
    $region51: #{small_forward.4} parent=5 // pred_region
      %s1051 = ssub.s32 %s12, 2
      // Predicated region
      $region53: #{small_forward.4} parent=51 // pred_check
        %p1052 = pneg %p172
      $region54: #{small_forward.4} parent=51 // pred_check_branch
        %1054 = sbr.rel (%p1052) target = $region56
      $region55: #{small_forward.4} parent=51 // pred_region
        %s1055 = smul.u32 4, %s18
        %p1056 = scmp.lt.s32.totalorder %s1055, 7
        %s1057 = scalar_select %p1056, %s1055, 7
        %s1058 = smul.addr %s1057, 4
        %s1059 = scalar_lea.vmem %s6, %s1058
      $region56: #{small_forward.4} parent=51 // pred_fallthru
        _
    $region52: #{small_forward.4} parent=5 // pred_fallthru
      _
  $region6: #{small_forward.4} parent=0 // loop_footer
    %s16 = sadd.s32 1, %s12
  $region7: #{small_forward.4} parent=0 // loop_footer_branch
    %11 = sbr.rel target = $region3
  $region8: #{small_forward.4} parent=0 // loop_exit
    _

// kernel: small_forward.5
$region0: #{small_forward.5}
  #allocation0 [shape = 'u32[]', space=smem, size = 0x4, offset = 0x4, fixed_abs, tag = 'smem constant byte address 0x4 - core index']
  #allocation1 [shape = 'u32[144,128]{1,0:T(1,128)}', space=vmem, size = 0x12000, scoped, tag = 'internal scratch']
  %s0 = inlined_call_operand.vmem [shape: bf16[8,512], index: 0, kind: input, shape index: {}]
  %s1 = inlined_call_operand.vmem [shape: bf16[512,128], index: 1, kind: input, shape index: {}]
  %s2 = inlined_call_operand.vmem [shape: f32[1,128], index: 2, kind: input, shape index: {}]
  %s3 = inlined_call_operand.vmem [shape: f32[128,128], index: 3, kind: input, shape index: {}]
  %s4 = inlined_call_operand.vmem [shape: f32[1,128], index: 4, kind: input, shape index: {}]
  %s5 = inlined_call_operand.vmem [shape: f32[128,128], index: 5, kind: input, shape index: {}]
  %s6 = inlined_call_operand.vmem [shape: f32[1,128], index: 6, kind: input, shape index: {}]
  %s7 = inlined_call_operand.vmem [shape: f32[8,128], index: 7, kind: output, shape index: {}]
  %s8 = sld [smem:[#allocation0]]
  $region38: #{small_forward.5} parent=0
    _
  %s10 = ssub.s32 1, %s8
  %s11 = scalar_select 0, %s10, %s8
  // Predicated region
  $region2: #{small_forward.5} parent=0 // pred_check
    _
  $region3: #{small_forward.5} parent=0 // pred_check_branch
    %13 = sbr.rel (0) target = $region5
  $region4: #{small_forward.5} parent=0 // pred_region
    _
  $region5: #{small_forward.5} parent=0 // pred_fallthru
    _
  // Predicated region
  $region6: #{small_forward.5} parent=0 // pred_check
    _
  $region7: #{small_forward.5} parent=0 // pred_check_branch
    %15 = sbr.rel (0) target = $region9
  $region8: #{small_forward.5} parent=0 // pred_region
    _
  $region9: #{small_forward.5} parent=0 // pred_fallthru
    _
  // Predicated region
  $region10: #{small_forward.5} parent=0 // pred_check
    _
  $region11: #{small_forward.5} parent=0 // pred_check_branch
    %17 = sbr.rel (0) target = $region13
  $region12: #{small_forward.5} parent=0 // pred_region
    _
  $region13: #{small_forward.5} parent=0 // pred_fallthru
    _
  // Predicated region
  $region14: #{small_forward.5} parent=0 // pred_check
    _
  $region15: #{small_forward.5} parent=0 // pred_check_branch
    %19 = sbr.rel (0) target = $region17
  $region16: #{small_forward.5} parent=0 // pred_region
    _
  $region17: #{small_forward.5} parent=0 // pred_fallthru
    _
  // Predicated region
  $region18: #{small_forward.5} parent=0 // pred_check
    _
  $region19: #{small_forward.5} parent=0 // pred_check_branch
    %21 = sbr.rel (0) target = $region21
  $region20: #{small_forward.5} parent=0 // pred_region
    _
  $region21: #{small_forward.5} parent=0 // pred_fallthru
    _
  // Predicated region
  $region22: #{small_forward.5} parent=0 // pred_check
    _
  $region23: #{small_forward.5} parent=0 // pred_check_branch
    %23 = sbr.rel (0) target = $region25
  $region24: #{small_forward.5} parent=0 // pred_region
    _
  $region25: #{small_forward.5} parent=0 // pred_fallthru
    _
  // Predicated region
  $region26: #{small_forward.5} parent=0 // pred_check
    _
  $region27: #{small_forward.5} parent=0 // pred_check_branch
    %25 = sbr.rel (0) target = $region29
  $region28: #{small_forward.5} parent=0 // pred_region
    _
  $region29: #{small_forward.5} parent=0 // pred_fallthru
    _
  %v27 = vld [vmem:[%s0] sm:$0xff]
  %v28 = vld [vmem:[%s0 + $0x8] sm:$0xff]
  %v29 = vld [vmem:[%s1] sm:$0xf]
  %v30 = vld [vmem:[%s1 + $0x4] sm:$0xf]
  %v31 = vld [vmem:[%s1 + $0x8] sm:$0xf]
  %v32 = vld [vmem:[%s1 + $0xc] sm:$0xf]
  %v33 = vld [vmem:[%s1 + $0x10] sm:$0xf]
  %v34 = vld [vmem:[%s1 + $0x14] sm:$0xf]
  %v35 = vld [vmem:[%s1 + $0x18] sm:$0xf]
  %v36 = vld [vmem:[%s1 + $0x1c] sm:$0xf]
  %v37 = vld [vmem:[%s1 + $0x20] sm:$0xf]
  %v38 = vld [vmem:[%s1 + $0x24] sm:$0xf]
  %v39 = vld [vmem:[%s1 + $0x28] sm:$0xf]
  %v40 = vld [vmem:[%s1 + $0x2c] sm:$0xf]
  %v41 = vld [vmem:[%s1 + $0x30] sm:$0xf]
  %v42 = vld [vmem:[%s1 + $0x34] sm:$0xf]
  %v43 = vld [vmem:[%s1 + $0x38] sm:$0xf]
  %v44 = vld [vmem:[%s1 + $0x3c] sm:$0xf]
  %v45 = vld [vmem:[%s1 + $0x40] sm:$0xf]
  %v46 = vld [vmem:[%s1 + $0x44] sm:$0xf]
  %v47 = vld [vmem:[%s1 + $0x48] sm:$0xf]
  %v48 = vld [vmem:[%s1 + $0x4c] sm:$0xf]
  %v49 = vld [vmem:[%s1 + $0x50] sm:$0xf]
  %v50 = vld [vmem:[%s1 + $0x54] sm:$0xf]
  %v51 = vld [vmem:[%s1 + $0x58] sm:$0xf]
  %v52 = vld [vmem:[%s1 + $0x5c] sm:$0xf]
  %v53 = vld [vmem:[%s1 + $0x60] sm:$0xf]
  %v54 = vld [vmem:[%s1 + $0x64] sm:$0xf]
  %v55 = vld [vmem:[%s1 + $0x68] sm:$0xf]
  %v56 = vld [vmem:[%s1 + $0x6c] sm:$0xf]
  %v57 = vld [vmem:[%s1 + $0x70] sm:$0xf]
  %v58 = vld [vmem:[%s1 + $0x74] sm:$0xf]
  %v59 = vld [vmem:[%s1 + $0x78] sm:$0xf]
  %v60 = vld [vmem:[%s1 + $0x7c] sm:$0xf]
  %v61 = vld [vmem:[%s1 + $0x80] sm:$0xf]
  %v62 = vld [vmem:[%s1 + $0x84] sm:$0xf]
  %v63 = vld [vmem:[%s1 + $0x88] sm:$0xf]
  %v64 = vld [vmem:[%s1 + $0x8c] sm:$0xf]
  %v65 = vld [vmem:[%s1 + $0x90] sm:$0xf]
  %v66 = vld [vmem:[%s1 + $0x94] sm:$0xf]
  %v67 = vld [vmem:[%s1 + $0x98] sm:$0xf]
  %v68 = vld [vmem:[%s1 + $0x9c] sm:$0xf]
  %v69 = vld [vmem:[%s1 + $0xa0] sm:$0xf]
  %v70 = vld [vmem:[%s1 + $0xa4] sm:$0xf]
  %v71 = vld [vmem:[%s1 + $0xa8] sm:$0xf]
  %v72 = vld [vmem:[%s1 + $0xac] sm:$0xf]
  %v73 = vld [vmem:[%s1 + $0xb0] sm:$0xf]
  %v74 = vld [vmem:[%s1 + $0xb4] sm:$0xf]
  %v75 = vld [vmem:[%s1 + $0xb8] sm:$0xf]
  %v76 = vld [vmem:[%s1 + $0xbc] sm:$0xf]
  %v77 = vld [vmem:[%s1 + $0xc0] sm:$0xf]
  %v78 = vld [vmem:[%s1 + $0xc4] sm:$0xf]
  %v79 = vld [vmem:[%s1 + $0xc8] sm:$0xf]
  %v80 = vld [vmem:[%s1 + $0xcc] sm:$0xf]
  %v81 = vld [vmem:[%s1 + $0xd0] sm:$0xf]
  %v82 = vld [vmem:[%s1 + $0xd4] sm:$0xf]
  %v83 = vld [vmem:[%s1 + $0xd8] sm:$0xf]
  %v84 = vld [vmem:[%s1 + $0xdc] sm:$0xf]
  %v85 = vld [vmem:[%s1 + $0xe0] sm:$0xf]
  %v86 = vld [vmem:[%s1 + $0xe4] sm:$0xf]
  %v87 = vld [vmem:[%s1 + $0xe8] sm:$0xf]
  %v88 = vld [vmem:[%s1 + $0xec] sm:$0xf]
  %v89 = vld [vmem:[%s1 + $0xf0] sm:$0xf]
  %v90 = vld [vmem:[%s1 + $0xf4] sm:$0xf]
  %v91 = vld [vmem:[%s1 + $0xf8] sm:$0xf]
  %v92 = vld [vmem:[%s1 + $0xfc] sm:$0xf]
  %v93 = vld [vmem:[%s2] sm:$0x1]
  %v95 = vlaneseq
  %v96 = vshrl.u32 %v95, 7
  %v97 = vsub.s32 0, %v96
  %v98 = vrot.slane %v93, %v97
  %v102 = vunpack.c.l.b16 %v27
  %v103 = vunpack.c.h.b16 %v27
  %v104 = vunpack.c.l.b16 %v28
  %v105 = vunpack.c.h.b16 %v28
  %v106 = vpack.c.b16 %v102, %v102
  %v107 = vpack.c.b16 %v103, %v103
  %v108 = vpack.c.b16 %v104, %v104
  %v109 = vpack.c.b16 %v105, %v105
  %v178 = vunpack.c.l.b16 %v29
  %v179 = vunpack.c.l.b16 %v30
  %v180 = vunpack.c.l.b16 %v31
  %v181 = vunpack.c.l.b16 %v32
  %v182 = vunpack.c.l.b16 %v33
  %v183 = vunpack.c.l.b16 %v34
  %v184 = vunpack.c.l.b16 %v35
  %v185 = vunpack.c.l.b16 %v36
  %v186 = vunpack.c.l.b16 %v37
  %v187 = vunpack.c.l.b16 %v38
  %v188 = vunpack.c.l.b16 %v39
  %v189 = vunpack.c.l.b16 %v40
  %v190 = vunpack.c.l.b16 %v41
  %v191 = vunpack.c.l.b16 %v42
  %v192 = vunpack.c.l.b16 %v43
  %v193 = vunpack.c.l.b16 %v44
  %v194 = vunpack.c.l.b16 %v45
  %v195 = vunpack.c.l.b16 %v46
  %v196 = vunpack.c.l.b16 %v47
  %v197 = vunpack.c.l.b16 %v48
  %v198 = vunpack.c.l.b16 %v49
  %v199 = vunpack.c.l.b16 %v50
  %v200 = vunpack.c.l.b16 %v51
  %v201 = vunpack.c.l.b16 %v52
  %v202 = vunpack.c.l.b16 %v53
  %v203 = vunpack.c.l.b16 %v54
  %v204 = vunpack.c.l.b16 %v55
  %v205 = vunpack.c.l.b16 %v56
  %v206 = vunpack.c.l.b16 %v57
  %v207 = vunpack.c.l.b16 %v58
  %v208 = vunpack.c.l.b16 %v59
  %v209 = vunpack.c.l.b16 %v60
  %v210 = vunpack.c.l.b16 %v61
  %v211 = vunpack.c.l.b16 %v62
  %v212 = vunpack.c.l.b16 %v63
  %v213 = vunpack.c.l.b16 %v64
  %v214 = vunpack.c.l.b16 %v65
  %v215 = vunpack.c.l.b16 %v66
  %v216 = vunpack.c.l.b16 %v67
  %v217 = vunpack.c.l.b16 %v68
  %v218 = vunpack.c.l.b16 %v69
  %v219 = vunpack.c.l.b16 %v70
  %v220 = vunpack.c.l.b16 %v71
  %v221 = vunpack.c.l.b16 %v72
  %v222 = vunpack.c.l.b16 %v73
  %v223 = vunpack.c.l.b16 %v74
  %v224 = vunpack.c.l.b16 %v75
  %v225 = vunpack.c.l.b16 %v76
  %v226 = vunpack.c.l.b16 %v77
  %v227 = vunpack.c.l.b16 %v78
  %v228 = vunpack.c.l.b16 %v79
  %v229 = vunpack.c.l.b16 %v80
  %v230 = vunpack.c.l.b16 %v81
  %v231 = vunpack.c.l.b16 %v82
  %v232 = vunpack.c.l.b16 %v83
  %v233 = vunpack.c.l.b16 %v84
  %v234 = vunpack.c.l.b16 %v85
  %v235 = vunpack.c.l.b16 %v86
  %v236 = vunpack.c.l.b16 %v87
  %v237 = vunpack.c.l.b16 %v88
  %v238 = vunpack.c.l.b16 %v89
  %v239 = vunpack.c.l.b16 %v90
  %v240 = vunpack.c.l.b16 %v91
  %v241 = vunpack.c.l.b16 %v92
  %v242 = vpack.c.b16 %v179, %v178
  %v243 = vpack.c.b16 %v181, %v180
  %v244 = vpack.c.b16 %v183, %v182
  %v245 = vpack.c.b16 %v185, %v184
  %v246 = vpack.c.b16 %v187, %v186
  %v247 = vpack.c.b16 %v189, %v188
  %v248 = vpack.c.b16 %v191, %v190
  %v249 = vpack.c.b16 %v193, %v192
  %v250 = vpack.c.b16 %v195, %v194
  %v251 = vpack.c.b16 %v197, %v196
  %v252 = vpack.c.b16 %v199, %v198
  %v253 = vpack.c.b16 %v201, %v200
  %v254 = vpack.c.b16 %v203, %v202
  %v255 = vpack.c.b16 %v205, %v204
  %v256 = vpack.c.b16 %v207, %v206
  %v257 = vpack.c.b16 %v209, %v208
  %v258 = vpack.c.b16 %v211, %v210
  %v259 = vpack.c.b16 %v213, %v212
  %v260 = vpack.c.b16 %v215, %v214
  %v261 = vpack.c.b16 %v217, %v216
  %v262 = vpack.c.b16 %v219, %v218
  %v263 = vpack.c.b16 %v221, %v220
  %v264 = vpack.c.b16 %v223, %v222
  %v265 = vpack.c.b16 %v225, %v224
  %v266 = vpack.c.b16 %v227, %v226
  %v267 = vpack.c.b16 %v229, %v228
  %v268 = vpack.c.b16 %v231, %v230
  %v269 = vpack.c.b16 %v233, %v232
  %v270 = vpack.c.b16 %v235, %v234
  %v271 = vpack.c.b16 %v237, %v236
  %v272 = vpack.c.b16 %v239, %v238
  %v273 = vpack.c.b16 %v241, %v240
  %306 = vmatprep.subr.bf16.mxu0 0
  %307 = vmatpush1.bf16.msra.mxu0 %v242
  %308 = vmatprep.subr.bf16.mxu0 0
  %309 = vmatpush1.bf16.msra.mxu0 %v243
  %310 = vmatprep.subr.bf16.mxu0 0
  %311 = vmatpush1.bf16.msra.mxu0 %v244
  %312 = vmatprep.subr.bf16.mxu0 0
  %313 = vmatpush1.bf16.msra.mxu0 %v245
  %314 = vmatprep.subr.bf16.mxu0 0
  %315 = vmatpush1.bf16.msra.mxu0 %v246
  %316 = vmatprep.subr.bf16.mxu0 0
  %317 = vmatpush1.bf16.msra.mxu0 %v247
  %318 = vmatprep.subr.bf16.mxu0 0
  %319 = vmatpush1.bf16.msra.mxu0 %v248
  %320 = vmatprep.subr.bf16.mxu0 0
  %321 = vmatpush1.bf16.msra.mxu0 %v249
  %322 = vmatprep.subr.bf16.mxu0 0
  %323 = vmatpush1.bf16.msra.mxu0 %v250
  %324 = vmatprep.subr.bf16.mxu0 0
  %325 = vmatpush1.bf16.msra.mxu0 %v251
  %326 = vmatprep.subr.bf16.mxu0 0
  %327 = vmatpush1.bf16.msra.mxu0 %v252
  %328 = vmatprep.subr.bf16.mxu0 0
  %329 = vmatpush1.bf16.msra.mxu0 %v253
  %330 = vmatprep.subr.bf16.mxu0 0
  %331 = vmatpush1.bf16.msra.mxu0 %v254
  %332 = vmatprep.subr.bf16.mxu0 0
  %333 = vmatpush1.bf16.msra.mxu0 %v255
  %334 = vmatprep.subr.bf16.mxu0 0
  %335 = vmatpush1.bf16.msra.mxu0 %v256
  %336 = vmatprep.subr.bf16.mxu0 0
  %337 = vmatpush1.bf16.msra.mxu0 %v257
  %338 = vmatprep.mubr.bf16.mxu0 %v107
  %339 = vmatmul.mubr.bf16.gmra.mrb[0].mxu0 %v106
  %v340 = vpop.f32.mrb[0].mxu0
  %v341 = vadd.f32 %v98, %v340
  %v342 = vpop.f32.mrb[0].mxu0
  %v343 = vpop.f32.mrb[0].mxu0
  %v344 = vpop.f32.mrb[0].mxu0
  %345 = vdwg.mxu0
  %346 = vmatprep.subr.bf16.mxu0 0
  %347 = vmatpush1.bf16.msra.mxu0 %v258
  %348 = vmatprep.subr.bf16.mxu0 0
  %349 = vmatpush1.bf16.msra.mxu0 %v259
  %350 = vmatprep.subr.bf16.mxu0 0
  %351 = vmatpush1.bf16.msra.mxu0 %v260
  %352 = vmatprep.subr.bf16.mxu0 0
  %353 = vmatpush1.bf16.msra.mxu0 %v261
  %354 = vmatprep.subr.bf16.mxu0 0
  %355 = vmatpush1.bf16.msra.mxu0 %v262
  %356 = vmatprep.subr.bf16.mxu0 0
  %357 = vmatpush1.bf16.msra.mxu0 %v263
  %358 = vmatprep.subr.bf16.mxu0 0
  %359 = vmatpush1.bf16.msra.mxu0 %v264
  %360 = vmatprep.subr.bf16.mxu0 0
  %361 = vmatpush1.bf16.msra.mxu0 %v265
  %362 = vmatprep.subr.bf16.mxu0 0
  %363 = vmatpush1.bf16.msra.mxu0 %v266
  %364 = vmatprep.subr.bf16.mxu0 0
  %365 = vmatpush1.bf16.msra.mxu0 %v267
  %366 = vmatprep.subr.bf16.mxu0 0
  %367 = vmatpush1.bf16.msra.mxu0 %v268
  %368 = vmatprep.subr.bf16.mxu0 0
  %369 = vmatpush1.bf16.msra.mxu0 %v269
  %370 = vmatprep.subr.bf16.mxu0 0
  %371 = vmatpush1.bf16.msra.mxu0 %v270
  %372 = vmatprep.subr.bf16.mxu0 0
  %373 = vmatpush1.bf16.msra.mxu0 %v271
  %374 = vmatprep.subr.bf16.mxu0 0
  %375 = vmatpush1.bf16.msra.mxu0 %v272
  %376 = vmatprep.subr.bf16.mxu0 0
  %377 = vmatpush1.bf16.msra.mxu0 %v273
  %378 = vmatprep.mubr.bf16.mxu0 %v109
  %379 = vmatmul.mubr.bf16.gmra.mrb[0].mxu0 %v108
  %v380 = vpop.f32.mrb[0].mxu0
  %v381 = vadd.f32 %v341, %v380
  %v382 = vpop.f32.mrb[0].mxu0
  %v383 = vpop.f32.mrb[0].mxu0
  %v384 = vpop.f32.mrb[0].mxu0
  %385 = vdwg.mxu0
  %v386 = vmax.f32 %v381, 0.0
  %v387 = vld [vmem:[%s3] sm:$0xff]
  %v388 = vld [vmem:[%s3 + $0x8] sm:$0xff]
  %v389 = vld [vmem:[%s3 + $0x10] sm:$0xff]
  %v390 = vld [vmem:[%s3 + $0x18] sm:$0xff]
  %v391 = vld [vmem:[%s3 + $0x20] sm:$0xff]
  %v392 = vld [vmem:[%s3 + $0x28] sm:$0xff]
  %v393 = vld [vmem:[%s3 + $0x30] sm:$0xff]
  %v394 = vld [vmem:[%s3 + $0x38] sm:$0xff]
  %v395 = vld [vmem:[%s3 + $0x40] sm:$0xff]
  %v396 = vld [vmem:[%s3 + $0x48] sm:$0xff]
  %v397 = vld [vmem:[%s3 + $0x50] sm:$0xff]
  %v398 = vld [vmem:[%s3 + $0x58] sm:$0xff]
  %v399 = vld [vmem:[%s3 + $0x60] sm:$0xff]
  %v400 = vld [vmem:[%s3 + $0x68] sm:$0xff]
  %v401 = vld [vmem:[%s3 + $0x70] sm:$0xff]
  %v402 = vld [vmem:[%s3 + $0x78] sm:$0xff]
  %v403 = vld [vmem:[%s4] sm:$0x1]
  %v405 = vlaneseq
  %v406 = vshrl.u32 %v405, 7
  %v407 = vsub.s32 0, %v406
  %v408 = vrot.slane %v403, %v407
  %410 = vmatprep.subr.mxu0 0.0
  %411 = vmatpush1.msra.mxu0 %v387
  %412 = vmatprep.subr.mxu0 0.0
  %413 = vmatpush1.msra.mxu0 %v388
  %414 = vmatprep.subr.mxu0 0.0
  %415 = vmatpush1.msra.mxu0 %v389
  %416 = vmatprep.subr.mxu0 0.0
  %417 = vmatpush1.msra.mxu0 %v390
  %418 = vmatprep.subr.mxu0 0.0
  %419 = vmatpush1.msra.mxu0 %v391
  %420 = vmatprep.subr.mxu0 0.0
  %421 = vmatpush1.msra.mxu0 %v392
  %422 = vmatprep.subr.mxu0 0.0
  %423 = vmatpush1.msra.mxu0 %v393
  %424 = vmatprep.subr.mxu0 0.0
  %425 = vmatpush1.msra.mxu0 %v394
  %426 = vmatprep.subr.mxu0 0.0
  %427 = vmatpush1.msra.mxu0 %v395
  %428 = vmatprep.subr.mxu0 0.0
  %429 = vmatpush1.msra.mxu0 %v396
  %430 = vmatprep.subr.mxu0 0.0
  %431 = vmatpush1.msra.mxu0 %v397
  %432 = vmatprep.subr.mxu0 0.0
  %433 = vmatpush1.msra.mxu0 %v398
  %434 = vmatprep.subr.mxu0 0.0
  %435 = vmatpush1.msra.mxu0 %v399
  %436 = vmatprep.subr.mxu0 0.0
  %437 = vmatpush1.msra.mxu0 %v400
  %438 = vmatprep.subr.mxu0 0.0
  %439 = vmatpush1.msra.mxu0 %v401
  %440 = vmatprep.subr.mxu0 0.0
  %441 = vmatpush1.msra.mxu0 %v402
  %442 = vmatprep.subr.mxu0 0.0
  %443 = vmatpush1.msra.mxu0 0.0
  %444 = vmatprep.subr.mxu0 0.0
  %445 = vmatpush1.msra.mxu0 0.0
  %446 = vmatprep.subr.mxu0 0.0
  %447 = vmatpush1.msra.mxu0 0.0
  %448 = vmatprep.subr.mxu0 0.0
  %449 = vmatpush1.msra.mxu0 0.0
  %450 = vmatprep.subr.mxu0 0.0
  %451 = vmatpush1.msra.mxu0 0.0
  %452 = vmatprep.subr.mxu0 0.0
  %453 = vmatpush1.msra.mxu0 0.0
  %454 = vmatprep.subr.mxu0 0.0
  %455 = vmatpush1.msra.mxu0 0.0
  %456 = vmatprep.subr.mxu0 0.0
  %457 = vmatpush1.msra.mxu0 0.0
  %458 = vmatprep.subr.mxu0 0.0
  %459 = vmatpush1.msra.mxu0 0.0
  %460 = vmatprep.subr.mxu0 0.0
  %461 = vmatpush1.msra.mxu0 0.0
  %462 = vmatprep.subr.mxu0 0.0
  %463 = vmatpush1.msra.mxu0 0.0
  %464 = vmatprep.subr.mxu0 0.0
  %465 = vmatpush1.msra.mxu0 0.0
  %466 = vmatprep.subr.mxu0 0.0
  %467 = vmatpush1.msra.mxu0 0.0
  %468 = vmatprep.subr.mxu0 0.0
  %469 = vmatpush1.msra.mxu0 0.0
  %470 = vmatprep.subr.mxu0 0.0
  %471 = vmatpush1.msra.mxu0 0.0
  %472 = vmatprep.subr.mxu0 0.0
  %473 = vmatpush1.msra.mxu0 0.0
  %474 = vmatprep.mubr.f32.mxu0 0.0
  %475 = vmatmul.mubr.f32.gmra.mrb[0].mxu0 %v386
  %v476 = vpop.f32.mrb[0].mxu0
  %v477 = vadd.f32 %v408, %v476
  %v478 = vpop.f32.mrb[0].mxu0
  %479 = vdwg.mxu0
  %v480 = vmax.f32 %v477, 0.0
  %v481 = vld [vmem:[%s5] sm:$0xff]
  %v482 = vld [vmem:[%s5 + $0x8] sm:$0xff]
  %v483 = vld [vmem:[%s5 + $0x10] sm:$0xff]
  %v484 = vld [vmem:[%s5 + $0x18] sm:$0xff]
  %v485 = vld [vmem:[%s5 + $0x20] sm:$0xff]
  %v486 = vld [vmem:[%s5 + $0x28] sm:$0xff]
  %v487 = vld [vmem:[%s5 + $0x30] sm:$0xff]
  %v488 = vld [vmem:[%s5 + $0x38] sm:$0xff]
  %v489 = vld [vmem:[%s5 + $0x40] sm:$0xff]
  %v490 = vld [vmem:[%s5 + $0x48] sm:$0xff]
  %v491 = vld [vmem:[%s5 + $0x50] sm:$0xff]
  %v492 = vld [vmem:[%s5 + $0x58] sm:$0xff]
  %v493 = vld [vmem:[%s5 + $0x60] sm:$0xff]
  %v494 = vld [vmem:[%s5 + $0x68] sm:$0xff]
  %v495 = vld [vmem:[%s5 + $0x70] sm:$0xff]
  %v496 = vld [vmem:[%s5 + $0x78] sm:$0xff]
  %v497 = vld [vmem:[%s6] sm:$0x1]
  %v499 = vlaneseq
  %v500 = vshrl.u32 %v499, 7
  %v501 = vsub.s32 0, %v500
  %v502 = vrot.slane %v497, %v501
  %504 = vmatprep.subr.mxu0 0.0
  %505 = vmatpush1.msra.mxu0 %v481
  %506 = vmatprep.subr.mxu0 0.0
  %507 = vmatpush1.msra.mxu0 %v482
  %508 = vmatprep.subr.mxu0 0.0
  %509 = vmatpush1.msra.mxu0 %v483
  %510 = vmatprep.subr.mxu0 0.0
  %511 = vmatpush1.msra.mxu0 %v484
  %512 = vmatprep.subr.mxu0 0.0
  %513 = vmatpush1.msra.mxu0 %v485
  %514 = vmatprep.subr.mxu0 0.0
  %515 = vmatpush1.msra.mxu0 %v486
  %516 = vmatprep.subr.mxu0 0.0
  %517 = vmatpush1.msra.mxu0 %v487
  %518 = vmatprep.subr.mxu0 0.0
  %519 = vmatpush1.msra.mxu0 %v488
  %520 = vmatprep.subr.mxu0 0.0
  %521 = vmatpush1.msra.mxu0 %v489
  %522 = vmatprep.subr.mxu0 0.0
  %523 = vmatpush1.msra.mxu0 %v490
  %524 = vmatprep.subr.mxu0 0.0
  %525 = vmatpush1.msra.mxu0 %v491
  %526 = vmatprep.subr.mxu0 0.0
  %527 = vmatpush1.msra.mxu0 %v492
  %528 = vmatprep.subr.mxu0 0.0
  %529 = vmatpush1.msra.mxu0 %v493
  %530 = vmatprep.subr.mxu0 0.0
  %531 = vmatpush1.msra.mxu0 %v494
  %532 = vmatprep.subr.mxu0 0.0
  %533 = vmatpush1.msra.mxu0 %v495
  %534 = vmatprep.subr.mxu0 0.0
  %535 = vmatpush1.msra.mxu0 %v496
  %536 = vmatprep.subr.mxu0 0.0
  %537 = vmatpush1.msra.mxu0 0.0
  %538 = vmatprep.subr.mxu0 0.0
  %539 = vmatpush1.msra.mxu0 0.0
  %540 = vmatprep.subr.mxu0 0.0
  %541 = vmatpush1.msra.mxu0 0.0
  %542 = vmatprep.subr.mxu0 0.0
  %543 = vmatpush1.msra.mxu0 0.0
  %544 = vmatprep.subr.mxu0 0.0
  %545 = vmatpush1.msra.mxu0 0.0
  %546 = vmatprep.subr.mxu0 0.0
  %547 = vmatpush1.msra.mxu0 0.0
  %548 = vmatprep.subr.mxu0 0.0
  %549 = vmatpush1.msra.mxu0 0.0
  %550 = vmatprep.subr.mxu0 0.0
  %551 = vmatpush1.msra.mxu0 0.0
  %552 = vmatprep.subr.mxu0 0.0
  %553 = vmatpush1.msra.mxu0 0.0
  %554 = vmatprep.subr.mxu0 0.0
  %555 = vmatpush1.msra.mxu0 0.0
  %556 = vmatprep.subr.mxu0 0.0
  %557 = vmatpush1.msra.mxu0 0.0
  %558 = vmatprep.subr.mxu0 0.0
  %559 = vmatpush1.msra.mxu0 0.0
  %560 = vmatprep.subr.mxu0 0.0
  %561 = vmatpush1.msra.mxu0 0.0
  %562 = vmatprep.subr.mxu0 0.0
  %563 = vmatpush1.msra.mxu0 0.0
  %564 = vmatprep.subr.mxu0 0.0
  %565 = vmatpush1.msra.mxu0 0.0
  %566 = vmatprep.subr.mxu0 0.0
  %567 = vmatpush1.msra.mxu0 0.0
  %568 = vmatprep.mubr.f32.mxu0 0.0
  %569 = vmatmul.mubr.f32.gmra.mrb[0].mxu0 %v480
  %v570 = vpop.f32.mrb[0].mxu0
  %v571 = vadd.f32 %v502, %v570
  %v572 = vpop.f32.mrb[0].mxu0
  %573 = vdwg.mxu0
  %574 = vst [vmem:[%s7] sm:$0xff] %v571
  // Predicated region
  $region30: #{small_forward.5} parent=0 // pred_check
    _
  $region31: #{small_forward.5} parent=0 // pred_check_branch
    %576 = sbr.rel (0) target = $region33
  $region32: #{small_forward.5} parent=0 // pred_region
    _
  $region33: #{small_forward.5} parent=0 // pred_fallthru
    _
  // Predicated region
  $region34: #{small_forward.5} parent=0 // pred_check
    _
  $region35: #{small_forward.5} parent=0 // pred_check_branch
    %578 = sbr.rel (0) target = $region37
  $region36: #{small_forward.5} parent=0 // pred_region
    _
  $region37: #{small_forward.5} parent=0 // pred_fallthru
    _

</llo_original>
